<compile_context>
chip_gen: v7x
topology: tpu7x:2x2x1
jax: 0.10.0
libtpu: 0.0.40
codegen_flags: <defaults>
</compile_context>

<pallas_src>
import math
import jax
import jax.numpy as jnp
from jax.experimental import pallas as pl
from jax.experimental.pallas import tpu as pltpu

LN_EPS = 1e-5


def _round_up(n, m):
    return ((n + m - 1) // m) * m


def _layernorm_relu(x, gamma, beta):
    # LayerNorm over the feature axis (torch.nn.LayerNorm defaults), fused with ReLU.
    mean = jnp.mean(x, axis=-1, keepdims=True)
    var = jnp.mean(jnp.square(x - mean), axis=-1, keepdims=True)
    inv = jax.lax.rsqrt(var + LN_EPS)  # EUP rsqrt -> off the MXU/VPU critical path
    return jnp.maximum((x - mean) * inv * gamma + beta, 0.0)


def fnn_kernel(x_ref,
               w1_ref, b1_ref, g1_ref, be1_ref,
               w2_ref, b2_ref, g2_ref, be2_ref,
               w3_ref, b3_ref, g3_ref, be3_ref,
               w4_ref, b4_ref,
               o_ref):
    # fc1 -> ln1 -> relu   (dropout1 = identity)
    h = jnp.dot(x_ref[...], w1_ref[...],
                preferred_element_type=jnp.float32) + b1_ref[...]
    h = _layernorm_relu(h, g1_ref[...], be1_ref[...])

    # fc2 -> ln2 -> relu   (dropout2 = identity)
    h = jnp.dot(h.astype(w2_ref.dtype), w2_ref[...],
                preferred_element_type=jnp.float32) + b2_ref[...]
    h = _layernorm_relu(h, g2_ref[...], be2_ref[...])

    # fc3 -> ln3 -> relu   (dropout3 = identity)
    h = jnp.dot(h.astype(w3_ref.dtype), w3_ref[...],
                preferred_element_type=jnp.float32) + b3_ref[...]
    h = _layernorm_relu(h, g3_ref[...], be3_ref[...])

    # fc4 (regression head, out_features=1): VPU multiply + cross-lane sum
    # instead of a 1-column MXU pass.  w4 is a (1, 64) f32 row vector.
    y = jnp.sum(h * w4_ref[...], axis=-1, keepdims=True) + b4_ref[...]

    # Lane-dense store: broadcast the per-row scalar across the 128-lane output
    # slab; the wrapper slices column 0.
    o_ref[...] = jnp.broadcast_to(y, o_ref.shape).astype(o_ref.dtype)


def fnn_forward(x, params, *, block_b=256):
    """x: [B, input_dim] float32. Returns [B, 1] float32."""
    B, D_in = x.shape
    (w1, b1, g1, be1,
     w2, b2, g2, be2,
     w3, b3, g3, be3,
     w4, b4) = params

    # bf16 matmul operands (MXU-native on all TPU gens); accumulation, biases,
    # LayerNorm and ReLU stay in f32.
    x_in = x.astype(jnp.bfloat16)
    w1b = w1.astype(jnp.bfloat16)
    w2b = w2.astype(jnp.bfloat16)
    w3b = w3.astype(jnp.bfloat16)

    # Batch tile: large (default 256) for MXU utilization, shrunk for tiny batches.
    # Keep it a multiple of 16 (bf16 sublane packing).
    bb = min(block_b, _round_up(B, 16))
    Bp = _round_up(B, bb)
    if Bp != B:
        x_in = jnp.pad(x_in, ((0, Bp - B), (0, 0)))

    def full_spec(arr):
        # Whole (small) parameter array resident in VMEM, same block every grid step.
        return pl.BlockSpec(arr.shape, lambda i: (0,) * arr.ndim)

    grid = (Bp // bb,)

    out = pl.pallas_call(
        fnn_kernel,
        out_shape=jax.ShapeDtypeStruct((Bp, 128), jnp.float32),
        grid_spec=pltpu.PrefetchScalarGridSpec(
            num_scalar_prefetch=0,
            grid=grid,
            in_specs=[
                pl.BlockSpec((bb, D_in), lambda i: (i, 0)),
                full_spec(w1b), full_spec(b1), full_spec(g1), full_spec(be1),
                full_spec(w2b), full_spec(b2), full_spec(g2), full_spec(be2),
                full_spec(w3b), full_spec(b3), full_spec(g3), full_spec(be3),
                full_spec(w4), full_spec(b4),
            ],
            out_specs=pl.BlockSpec((bb, 128), lambda i: (i, 0)),
        ),
        compiler_params=pltpu.CompilerParams(
            dimension_semantics=("parallel",),   # batch axis shards across cores
            vmem_limit_bytes=32 << 20,           # fits v7x's 64 MiB physical VMEM
        ),
    )(x_in, w1b, b1, g1, be1, w2b, b2, g2, be2, w3b, b3, g3, be3, w4, b4)

    return out[:B, :1]


def init_params(key, input_dim):
    """Deterministic init matching the PyTorch module:
       kaiming_normal_(fan_in, relu) weights, zero biases, LN gamma=1 / beta=0.
       Hidden weights stored as [in, out]; head weight stored as a (1, 64) row."""
    dims = [(input_dim, 2048), (2048, 512), (512, 64)]
    keys = jax.random.split(key, 4)
    params = []
    for (fan_in, fan_out), k in zip(dims, keys[:3]):
        std = math.sqrt(2.0 / fan_in)  # kaiming normal, fan_in, relu gain
        params.append(std * jax.random.normal(k, (fan_in, fan_out), dtype=jnp.float32))
        params.append(jnp.zeros((1, fan_out), dtype=jnp.float32))   # bias
        params.append(jnp.ones((1, fan_out), dtype=jnp.float32))    # LN gamma
        params.append(jnp.zeros((1, fan_out), dtype=jnp.float32))   # LN beta
    std4 = math.sqrt(2.0 / 64)
    params.append(std4 * jax.random.normal(keys[3], (1, 64), dtype=jnp.float32))  # fc4 w
    params.append(jnp.zeros((1, 1), dtype=jnp.float32))                           # fc4 b
    return tuple(params)


def reference_forward(x, params):
    """Pure-JAX reference with the same precision recipe (bf16 matmul operands,
       f32 accumulation, f32 LayerNorm/ReLU)."""
    (w1, b1, g1, be1, w2, b2, g2, be2, w3, b3, g3, be3, w4, b4) = params

    def ln_relu(h, g, be):
        m = jnp.mean(h, axis=-1, keepdims=True)
        v = jnp.mean(jnp.square(h - m), axis=-1, keepdims=True)
        return jnp.maximum((h - m) * jax.lax.rsqrt(v + LN_EPS) * g + be, 0.0)

    def mm(a, w, b):
        return jnp.dot(a.astype(jnp.bfloat16), w.astype(jnp.bfloat16),
                       preferred_element_type=jnp.float32) + b

    h = ln_relu(mm(x, w1, b1), g1, be1)
    h = ln_relu(mm(h, w2, b2), g2, be2)
    h = ln_relu(mm(h, w3, b3), g3, be3)
    return jnp.sum(h * w4, axis=-1, keepdims=True) + b4


if __name__ == "__main__":
    key = jax.random.PRNGKey(0)
    k_param, k_x = jax.random.split(key)

    B, INPUT_DIM = 16, 128  # small synthetic "ViT feature" batch
    params = init_params(k_param, INPUT_DIM)
    x = jax.random.normal(k_x, (B, INPUT_DIM), dtype=jnp.float32)

    out = fnn_forward(x, params)
    out = jax.block_until_ready(out)

    ref = reference_forward(x, params)
    assert out.shape == (B, 1), out.shape
    err = float(jnp.max(jnp.abs(out - ref)))
    assert err < 1e-2, err

    print("KERNEL_OK")
</pallas_src>

<mosaic_0001>
module attributes {stable_mosaic.version = 11 : i64} {
  func.func @fnn_kernel(%arg0: i32, %arg1: memref<16x128xbf16, #tpu.memory_space<vmem>>, %arg2: memref<128x2048xbf16, #tpu.memory_space<vmem>>, %arg3: memref<1x2048xf32, #tpu.memory_space<vmem>>, %arg4: memref<1x2048xf32, #tpu.memory_space<vmem>>, %arg5: memref<1x2048xf32, #tpu.memory_space<vmem>>, %arg6: memref<2048x512xbf16, #tpu.memory_space<vmem>>, %arg7: memref<1x512xf32, #tpu.memory_space<vmem>>, %arg8: memref<1x512xf32, #tpu.memory_space<vmem>>, %arg9: memref<1x512xf32, #tpu.memory_space<vmem>>, %arg10: memref<512x64xbf16, #tpu.memory_space<vmem>>, %arg11: memref<1x64xf32, #tpu.memory_space<vmem>>, %arg12: memref<1x64xf32, #tpu.memory_space<vmem>>, %arg13: memref<1x64xf32, #tpu.memory_space<vmem>>, %arg14: memref<1x64xf32, #tpu.memory_space<vmem>>, %arg15: memref<1x1xf32, #tpu.memory_space<vmem>>, %arg16: memref<16x128xf32, #tpu.memory_space<vmem>>) attributes {dimension_semantics = [#tpu.dimension_semantics<parallel>], iteration_bounds = array<i64: 1>, scalar_prefetch = 0 : i64, scratch_operands = 0 : i64, tpu.core_type = #tpu.core_type<tc>, window_params = [{transform_indices = @transform_0, window_bounds = array<i64: 16, 128>}, {pipeline_mode = #tpu.pipeline_mode<synchronous>, transform_indices = @transform_1, window_bounds = array<i64: 128, 2048>}, {pipeline_mode = #tpu.pipeline_mode<synchronous>, transform_indices = @transform_2, window_bounds = array<i64: 1, 2048>}, {pipeline_mode = #tpu.pipeline_mode<synchronous>, transform_indices = @transform_3, window_bounds = array<i64: 1, 2048>}, {pipeline_mode = #tpu.pipeline_mode<synchronous>, transform_indices = @transform_4, window_bounds = array<i64: 1, 2048>}, {pipeline_mode = #tpu.pipeline_mode<synchronous>, transform_indices = @transform_5, window_bounds = array<i64: 2048, 512>}, {pipeline_mode = #tpu.pipeline_mode<synchronous>, transform_indices = @transform_6, window_bounds = array<i64: 1, 512>}, {pipeline_mode = #tpu.pipeline_mode<synchronous>, transform_indices = @transform_7, window_bounds = array<i64: 1, 512>}, {pipeline_mode = #tpu.pipeline_mode<synchronous>, transform_indices = @transform_8, window_bounds = array<i64: 1, 512>}, {pipeline_mode = #tpu.pipeline_mode<synchronous>, transform_indices = @transform_9, window_bounds = array<i64: 512, 64>}, {pipeline_mode = #tpu.pipeline_mode<synchronous>, transform_indices = @transform_10, window_bounds = array<i64: 1, 64>}, {pipeline_mode = #tpu.pipeline_mode<synchronous>, transform_indices = @transform_11, window_bounds = array<i64: 1, 64>}, {pipeline_mode = #tpu.pipeline_mode<synchronous>, transform_indices = @transform_12, window_bounds = array<i64: 1, 64>}, {pipeline_mode = #tpu.pipeline_mode<synchronous>, transform_indices = @transform_13, window_bounds = array<i64: 1, 64>}, {pipeline_mode = #tpu.pipeline_mode<synchronous>, transform_indices = @transform_14, window_bounds = array<i64: 1, 1>}, {transform_indices = @transform_15, window_bounds = array<i64: 16, 128>}]} {
    %c0 = arith.constant 0 : index
    %c0_0 = arith.constant 0 : index
    %0 = vector.load %arg1[%c0, %c0_0] : memref<16x128xbf16, #tpu.memory_space<vmem>>, vector<16x128xbf16>
    %c0_1 = arith.constant 0 : index
    %c0_2 = arith.constant 0 : index
    %1 = vector.load %arg2[%c0_1, %c0_2] : memref<128x2048xbf16, #tpu.memory_space<vmem>>, vector<128x2048xbf16>
    %cst = arith.constant dense<0.000000e+00> : vector<16x2048xf32>
    %2 = tpu.matmul %0, %1, %cst {dimension_numbers = #tpu.dot_dimension_numbers<[1], [0], [0], [1], [0, 0, 1, 1], [], []>} : vector<16x128xbf16>, vector<128x2048xbf16>, vector<16x2048xf32> -> vector<16x2048xf32>
    %c0_3 = arith.constant 0 : index
    %c0_4 = arith.constant 0 : index
    %3 = vector.load %arg3[%c0_3, %c0_4] : memref<1x2048xf32, #tpu.memory_space<vmem>>, vector<1x2048xf32>
    %4 = vector.broadcast %3 : vector<1x2048xf32> to vector<16x2048xf32>
    %5 = arith.addf %2, %4 : vector<16x2048xf32>
    %c0_5 = arith.constant 0 : index
    %c0_6 = arith.constant 0 : index
    %6 = vector.load %arg4[%c0_5, %c0_6] : memref<1x2048xf32, #tpu.memory_space<vmem>>, vector<1x2048xf32>
    %c0_7 = arith.constant 0 : index
    %c0_8 = arith.constant 0 : index
    %7 = vector.load %arg5[%c0_7, %c0_8] : memref<1x2048xf32, #tpu.memory_space<vmem>>, vector<1x2048xf32>
    %cst_9 = arith.constant dense<0.000000e+00> : vector<16xf32>
    %8 = vector.multi_reduction <add>, %5, %cst_9 [1] : vector<16x2048xf32> to vector<16xf32>
    %9 = vector.shape_cast %8 : vector<16xf32> to vector<16x1xf32>
    %cst_10 = arith.constant 2.048000e+03 : f32
    %10 = vector.broadcast %cst_10 : f32 to vector<16x1xf32>
    %11 = arith.divf %9, %10 : vector<16x1xf32>
    %12 = vector.broadcast %11 : vector<16x1xf32> to vector<16x2048xf32>
    %13 = arith.subf %5, %12 : vector<16x2048xf32>
    %14 = arith.mulf %13, %13 : vector<16x2048xf32>
    %cst_11 = arith.constant dense<0.000000e+00> : vector<16xf32>
    %15 = vector.multi_reduction <add>, %14, %cst_11 [1] : vector<16x2048xf32> to vector<16xf32>
    %16 = vector.shape_cast %15 : vector<16xf32> to vector<16x1xf32>
    %cst_12 = arith.constant 2.048000e+03 : f32
    %17 = vector.broadcast %cst_12 : f32 to vector<16x1xf32>
    %18 = arith.divf %16, %17 : vector<16x1xf32>
    %cst_13 = arith.constant 9.99999974E-6 : f32
    %19 = vector.broadcast %cst_13 : f32 to vector<16x1xf32>
    %20 = arith.addf %18, %19 : vector<16x1xf32>
    %21 = math.rsqrt %20 : vector<16x1xf32>
    %22 = vector.broadcast %11 : vector<16x1xf32> to vector<16x2048xf32>
    %23 = arith.subf %5, %22 : vector<16x2048xf32>
    %24 = vector.broadcast %21 : vector<16x1xf32> to vector<16x2048xf32>
    %25 = arith.mulf %23, %24 : vector<16x2048xf32>
    %26 = vector.broadcast %6 : vector<1x2048xf32> to vector<16x2048xf32>
    %27 = arith.mulf %25, %26 : vector<16x2048xf32>
    %28 = vector.broadcast %7 : vector<1x2048xf32> to vector<16x2048xf32>
    %29 = arith.addf %27, %28 : vector<16x2048xf32>
    %cst_14 = arith.constant 0.000000e+00 : f32
    %30 = vector.broadcast %cst_14 : f32 to vector<16x2048xf32>
    %31 = arith.maximumf %29, %30 : vector<16x2048xf32>
    %32 = arith.truncf %31 : vector<16x2048xf32> to vector<16x2048xbf16>
    %c0_15 = arith.constant 0 : index
    %c0_16 = arith.constant 0 : index
    %33 = vector.load %arg6[%c0_15, %c0_16] : memref<2048x512xbf16, #tpu.memory_space<vmem>>, vector<2048x512xbf16>
    %cst_17 = arith.constant dense<0.000000e+00> : vector<16x512xf32>
    %34 = tpu.matmul %32, %33, %cst_17 {dimension_numbers = #tpu.dot_dimension_numbers<[1], [0], [0], [1], [0, 0, 1, 1], [], []>} : vector<16x2048xbf16>, vector<2048x512xbf16>, vector<16x512xf32> -> vector<16x512xf32>
    %c0_18 = arith.constant 0 : index
    %c0_19 = arith.constant 0 : index
    %35 = vector.load %arg7[%c0_18, %c0_19] : memref<1x512xf32, #tpu.memory_space<vmem>>, vector<1x512xf32>
    %36 = vector.broadcast %35 : vector<1x512xf32> to vector<16x512xf32>
    %37 = arith.addf %34, %36 : vector<16x512xf32>
    %c0_20 = arith.constant 0 : index
    %c0_21 = arith.constant 0 : index
    %38 = vector.load %arg8[%c0_20, %c0_21] : memref<1x512xf32, #tpu.memory_space<vmem>>, vector<1x512xf32>
    %c0_22 = arith.constant 0 : index
    %c0_23 = arith.constant 0 : index
    %39 = vector.load %arg9[%c0_22, %c0_23] : memref<1x512xf32, #tpu.memory_space<vmem>>, vector<1x512xf32>
    %cst_24 = arith.constant dense<0.000000e+00> : vector<16xf32>
    %40 = vector.multi_reduction <add>, %37, %cst_24 [1] : vector<16x512xf32> to vector<16xf32>
    %41 = vector.shape_cast %40 : vector<16xf32> to vector<16x1xf32>
    %cst_25 = arith.constant 5.120000e+02 : f32
    %42 = vector.broadcast %cst_25 : f32 to vector<16x1xf32>
    %43 = arith.divf %41, %42 : vector<16x1xf32>
    %44 = vector.broadcast %43 : vector<16x1xf32> to vector<16x512xf32>
    %45 = arith.subf %37, %44 : vector<16x512xf32>
    %46 = arith.mulf %45, %45 : vector<16x512xf32>
    %cst_26 = arith.constant dense<0.000000e+00> : vector<16xf32>
    %47 = vector.multi_reduction <add>, %46, %cst_26 [1] : vector<16x512xf32> to vector<16xf32>
    %48 = vector.shape_cast %47 : vector<16xf32> to vector<16x1xf32>
    %cst_27 = arith.constant 5.120000e+02 : f32
    %49 = vector.broadcast %cst_27 : f32 to vector<16x1xf32>
    %50 = arith.divf %48, %49 : vector<16x1xf32>
    %cst_28 = arith.constant 9.99999974E-6 : f32
    %51 = vector.broadcast %cst_28 : f32 to vector<16x1xf32>
    %52 = arith.addf %50, %51 : vector<16x1xf32>
    %53 = math.rsqrt %52 : vector<16x1xf32>
    %54 = vector.broadcast %43 : vector<16x1xf32> to vector<16x512xf32>
    %55 = arith.subf %37, %54 : vector<16x512xf32>
    %56 = vector.broadcast %53 : vector<16x1xf32> to vector<16x512xf32>
    %57 = arith.mulf %55, %56 : vector<16x512xf32>
    %58 = vector.broadcast %38 : vector<1x512xf32> to vector<16x512xf32>
    %59 = arith.mulf %57, %58 : vector<16x512xf32>
    %60 = vector.broadcast %39 : vector<1x512xf32> to vector<16x512xf32>
    %61 = arith.addf %59, %60 : vector<16x512xf32>
    %cst_29 = arith.constant 0.000000e+00 : f32
    %62 = vector.broadcast %cst_29 : f32 to vector<16x512xf32>
    %63 = arith.maximumf %61, %62 : vector<16x512xf32>
    %64 = arith.truncf %63 : vector<16x512xf32> to vector<16x512xbf16>
    %c0_30 = arith.constant 0 : index
    %c0_31 = arith.constant 0 : index
    %65 = vector.load %arg10[%c0_30, %c0_31] : memref<512x64xbf16, #tpu.memory_space<vmem>>, vector<512x64xbf16>
    %cst_32 = arith.constant dense<0.000000e+00> : vector<16x64xf32>
    %66 = tpu.matmul %64, %65, %cst_32 {dimension_numbers = #tpu.dot_dimension_numbers<[1], [0], [0], [1], [0, 0, 1, 1], [], []>} : vector<16x512xbf16>, vector<512x64xbf16>, vector<16x64xf32> -> vector<16x64xf32>
    %c0_33 = arith.constant 0 : index
    %c0_34 = arith.constant 0 : index
    %67 = vector.load %arg11[%c0_33, %c0_34] : memref<1x64xf32, #tpu.memory_space<vmem>>, vector<1x64xf32>
    %68 = vector.broadcast %67 : vector<1x64xf32> to vector<16x64xf32>
    %69 = arith.addf %66, %68 : vector<16x64xf32>
    %c0_35 = arith.constant 0 : index
    %c0_36 = arith.constant 0 : index
    %70 = vector.load %arg12[%c0_35, %c0_36] : memref<1x64xf32, #tpu.memory_space<vmem>>, vector<1x64xf32>
    %c0_37 = arith.constant 0 : index
    %c0_38 = arith.constant 0 : index
    %71 = vector.load %arg13[%c0_37, %c0_38] : memref<1x64xf32, #tpu.memory_space<vmem>>, vector<1x64xf32>
    %cst_39 = arith.constant dense<0.000000e+00> : vector<16xf32>
    %72 = vector.multi_reduction <add>, %69, %cst_39 [1] : vector<16x64xf32> to vector<16xf32>
    %73 = vector.shape_cast %72 : vector<16xf32> to vector<16x1xf32>
    %cst_40 = arith.constant 6.400000e+01 : f32
    %74 = vector.broadcast %cst_40 : f32 to vector<16x1xf32>
    %75 = arith.divf %73, %74 : vector<16x1xf32>
    %76 = vector.broadcast %75 : vector<16x1xf32> to vector<16x64xf32>
    %77 = arith.subf %69, %76 : vector<16x64xf32>
    %78 = arith.mulf %77, %77 : vector<16x64xf32>
    %cst_41 = arith.constant dense<0.000000e+00> : vector<16xf32>
    %79 = vector.multi_reduction <add>, %78, %cst_41 [1] : vector<16x64xf32> to vector<16xf32>
    %80 = vector.shape_cast %79 : vector<16xf32> to vector<16x1xf32>
    %cst_42 = arith.constant 6.400000e+01 : f32
    %81 = vector.broadcast %cst_42 : f32 to vector<16x1xf32>
    %82 = arith.divf %80, %81 : vector<16x1xf32>
    %cst_43 = arith.constant 9.99999974E-6 : f32
    %83 = vector.broadcast %cst_43 : f32 to vector<16x1xf32>
    %84 = arith.addf %82, %83 : vector<16x1xf32>
    %85 = math.rsqrt %84 : vector<16x1xf32>
    %86 = vector.broadcast %75 : vector<16x1xf32> to vector<16x64xf32>
    %87 = arith.subf %69, %86 : vector<16x64xf32>
    %88 = vector.broadcast %85 : vector<16x1xf32> to vector<16x64xf32>
    %89 = arith.mulf %87, %88 : vector<16x64xf32>
    %90 = vector.broadcast %70 : vector<1x64xf32> to vector<16x64xf32>
    %91 = arith.mulf %89, %90 : vector<16x64xf32>
    %92 = vector.broadcast %71 : vector<1x64xf32> to vector<16x64xf32>
    %93 = arith.addf %91, %92 : vector<16x64xf32>
    %cst_44 = arith.constant 0.000000e+00 : f32
    %94 = vector.broadcast %cst_44 : f32 to vector<16x64xf32>
    %95 = arith.maximumf %93, %94 : vector<16x64xf32>
    %c0_45 = arith.constant 0 : index
    %c0_46 = arith.constant 0 : index
    %96 = vector.load %arg14[%c0_45, %c0_46] : memref<1x64xf32, #tpu.memory_space<vmem>>, vector<1x64xf32>
    %97 = vector.broadcast %96 : vector<1x64xf32> to vector<16x64xf32>
    %98 = arith.mulf %95, %97 : vector<16x64xf32>
    %cst_47 = arith.constant dense<0.000000e+00> : vector<16xf32>
    %99 = vector.multi_reduction <add>, %98, %cst_47 [1] : vector<16x64xf32> to vector<16xf32>
    %100 = vector.shape_cast %99 : vector<16xf32> to vector<16x1xf32>
    %c0_48 = arith.constant 0 : index
    %c0_49 = arith.constant 0 : index
    %101 = vector.load %arg15[%c0_48, %c0_49] : memref<1x1xf32, #tpu.memory_space<vmem>>, vector<1x1xf32>
    %102 = vector.broadcast %101 : vector<1x1xf32> to vector<16x1xf32>
    %103 = arith.addf %100, %102 : vector<16x1xf32>
    %104 = vector.shape_cast %103 : vector<16x1xf32> to vector<16x1xf32>
    %105 = vector.broadcast %104 : vector<16x1xf32> to vector<16x128xf32>
    %c0_50 = arith.constant 0 : index
    %c0_51 = arith.constant 0 : index
    %106 = vector.load %arg16[%c0_50, %c0_51] : memref<16x128xf32, #tpu.memory_space<vmem>>, vector<16x128xf32>
    tpu.vector_store %arg16[%c0_50, %c0_51], %105 {strides = array<i32>} : memref<16x128xf32, #tpu.memory_space<vmem>>, vector<16x128xf32>,
    return
  }
  func.func @transform_0(%arg0: i32) -> (i32, i32) {
    %c0_i32 = arith.constant 0 : i32
    %c0_i32_0 = arith.constant 0 : i32
    return %arg0, %c0_i32 : i32, i32
  }
  func.func @transform_1(%arg0: i32) -> (i32, i32) {
    %c0_i32 = arith.constant 0 : i32
    %c0_i32_0 = arith.constant 0 : i32
    %c0_i32_1 = arith.constant 0 : i32
    return %c0_i32, %c0_i32_0 : i32, i32
  }
  func.func @transform_2(%arg0: i32) -> (i32, i32) {
    %c0_i32 = arith.constant 0 : i32
    %c0_i32_0 = arith.constant 0 : i32
    %c0_i32_1 = arith.constant 0 : i32
    return %c0_i32, %c0_i32_0 : i32, i32
  }
  func.func @transform_3(%arg0: i32) -> (i32, i32) {
    %c0_i32 = arith.constant 0 : i32
    %c0_i32_0 = arith.constant 0 : i32
    %c0_i32_1 = arith.constant 0 : i32
    return %c0_i32, %c0_i32_0 : i32, i32
  }
  func.func @transform_4(%arg0: i32) -> (i32, i32) {
    %c0_i32 = arith.constant 0 : i32
    %c0_i32_0 = arith.constant 0 : i32
    %c0_i32_1 = arith.constant 0 : i32
    return %c0_i32, %c0_i32_0 : i32, i32
  }
  func.func @transform_5(%arg0: i32) -> (i32, i32) {
    %c0_i32 = arith.constant 0 : i32
    %c0_i32_0 = arith.constant 0 : i32
    %c0_i32_1 = arith.constant 0 : i32
    return %c0_i32, %c0_i32_0 : i32, i32
  }
  func.func @transform_6(%arg0: i32) -> (i32, i32) {
    %c0_i32 = arith.constant 0 : i32
    %c0_i32_0 = arith.constant 0 : i32
    %c0_i32_1 = arith.constant 0 : i32
    return %c0_i32, %c0_i32_0 : i32, i32
  }
  func.func @transform_7(%arg0: i32) -> (i32, i32) {
    %c0_i32 = arith.constant 0 : i32
    %c0_i32_0 = arith.constant 0 : i32
    %c0_i32_1 = arith.constant 0 : i32
    return %c0_i32, %c0_i32_0 : i32, i32
  }
  func.func @transform_8(%arg0: i32) -> (i32, i32) {
    %c0_i32 = arith.constant 0 : i32
    %c0_i32_0 = arith.constant 0 : i32
    %c0_i32_1 = arith.constant 0 : i32
    return %c0_i32, %c0_i32_0 : i32, i32
  }
  func.func @transform_9(%arg0: i32) -> (i32, i32) {
    %c0_i32 = arith.constant 0 : i32
    %c0_i32_0 = arith.constant 0 : i32
    %c0_i32_1 = arith.constant 0 : i32
    return %c0_i32, %c0_i32_0 : i32, i32
  }
  func.func @transform_10(%arg0: i32) -> (i32, i32) {
    %c0_i32 = arith.constant 0 : i32
    %c0_i32_0 = arith.constant 0 : i32
    %c0_i32_1 = arith.constant 0 : i32
    return %c0_i32, %c0_i32_0 : i32, i32
  }
  func.func @transform_11(%arg0: i32) -> (i32, i32) {
    %c0_i32 = arith.constant 0 : i32
    %c0_i32_0 = arith.constant 0 : i32
    %c0_i32_1 = arith.constant 0 : i32
    return %c0_i32, %c0_i32_0 : i32, i32
  }
  func.func @transform_12(%arg0: i32) -> (i32, i32) {
    %c0_i32 = arith.constant 0 : i32
    %c0_i32_0 = arith.constant 0 : i32
    %c0_i32_1 = arith.constant 0 : i32
    return %c0_i32, %c0_i32_0 : i32, i32
  }
  func.func @transform_13(%arg0: i32) -> (i32, i32) {
    %c0_i32 = arith.constant 0 : i32
    %c0_i32_0 = arith.constant 0 : i32
    %c0_i32_1 = arith.constant 0 : i32
    return %c0_i32, %c0_i32_0 : i32, i32
  }
  func.func @transform_14(%arg0: i32) -> (i32, i32) {
    %c0_i32 = arith.constant 0 : i32
    %c0_i32_0 = arith.constant 0 : i32
    %c0_i32_1 = arith.constant 0 : i32
    return %c0_i32, %c0_i32_0 : i32, i32
  }
  func.func @transform_15(%arg0: i32) -> (i32, i32) {
    %c0_i32 = arith.constant 0 : i32
    %c0_i32_0 = arith.constant 0 : i32
    return %arg0, %c0_i32 : i32, i32
  }
}

</mosaic_0001>

<llo_original>
// kernel: tpu_custom_call.1
$region0: #{tpu_custom_call.1}
  #allocation0 [shape = 'u32[]', space=smem, size = 0x4, offset = 0x4, fixed_abs, tag = 'smem constant byte address 0x4 - core index']
  #allocation1 [shape = 'u32[144,128]{1,0:T(1,128)}', space=vmem, size = 0x12000, scoped, tag = 'internal scratch']
  #allocation2 [shape = 'f32[1,1]{1,0:T(1,128)S(1)}', space=vmem, size = 0x200, scoped, tag = 'scoped memory for tpu_custom_call.1']
  %s0 = inlined_call_operand.hbm [shape: bf16[16,128], index: 0, kind: input, shape index: {}]
  %s1 = inlined_call_operand.hbm [shape: bf16[128,2048], index: 1, kind: input, shape index: {}]
  %s2 = inlined_call_operand.hbm [shape: f32[1,2048], index: 2, kind: input, shape index: {}]
  %s3 = inlined_call_operand.hbm [shape: f32[1,2048], index: 3, kind: input, shape index: {}]
  %s4 = inlined_call_operand.hbm [shape: f32[1,2048], index: 4, kind: input, shape index: {}]
  %s5 = inlined_call_operand.hbm [shape: bf16[2048,512], index: 5, kind: input, shape index: {}]
  %s6 = inlined_call_operand.hbm [shape: f32[1,512], index: 6, kind: input, shape index: {}]
  %s7 = inlined_call_operand.hbm [shape: f32[1,512], index: 7, kind: input, shape index: {}]
  %s8 = inlined_call_operand.hbm [shape: f32[1,512], index: 8, kind: input, shape index: {}]
  %s9 = inlined_call_operand.vmem [shape: bf16[512,64], index: 9, kind: input, shape index: {}]
  %s10 = inlined_call_operand.hbm [shape: f32[1,64], index: 10, kind: input, shape index: {}]
  %s11 = inlined_call_operand.hbm [shape: f32[1,64], index: 11, kind: input, shape index: {}]
  %s12 = inlined_call_operand.hbm [shape: f32[1,64], index: 12, kind: input, shape index: {}]
  %s13 = inlined_call_operand.hbm [shape: f32[1,64], index: 13, kind: input, shape index: {}]
  %s14 = inlined_call_operand.<no memory space> [shape: f32[1,1], index: 14, kind: input, shape index: {}]
  %s15 = inlined_call_operand.hbm [shape: f32[16,128], index: 15, kind: output, shape index: {}]
  %s16 = sld [smem:[#allocation0]]
  $region122: #{tpu_custom_call.1} parent=0
    _
  %s18 = ssub.s32 1, %s16
  %s19 = scalar_select 0, %s18, %s16
  %v20 = vstv %s14
  %21 = vst [vmem:[#allocation2] sm:$0x1] %v20
  $region1: #{tpu_custom_call.1} parent=0
    #allocation3 [shape = 'u8[4096]{0}', space=vmem, size = 0x1000, scoped, tag = 'input window, operand 0, single buffered']
    #allocation4 [shape = 's32[1]{0}', space=sflag, size = 0x4, scoped, tag = 'scoped memory for tpu_custom_call.1']
    #allocation5 [shape = 's32[1]{0}', space=sflag, size = 0x4, scoped, tag = 'scoped memory for tpu_custom_call.1']
    #allocation6 [shape = 'u8[524288]{0}', space=vmem, size = 0x80000, scoped, tag = 'input window, operand 1, single buffered']
    #allocation7 [shape = 's32[1]{0}', space=sflag, size = 0x4, scoped, tag = 'scoped memory for tpu_custom_call.1']
    #allocation8 [shape = 'u8[8192]{0}', space=vmem, size = 0x2000, scoped, tag = 'input window, operand 2, single buffered']
    #allocation9 [shape = 'u8[8192]{0}', space=vmem, size = 0x2000, scoped, tag = 'input window, operand 3, single buffered']
    #allocation10 [shape = 's32[1]{0}', space=sflag, size = 0x4, scoped, tag = 'scoped memory for tpu_custom_call.1']
    #allocation11 [shape = 'u8[8192]{0}', space=vmem, size = 0x2000, scoped, tag = 'input window, operand 4, single buffered']
    #allocation12 [shape = 'u8[2097152]{0}', space=vmem, size = 0x200000, scoped, tag = 'input window, operand 5, single buffered']
    #allocation13 [shape = 's32[1]{0}', space=sflag, size = 0x4, scoped, tag = 'scoped memory for tpu_custom_call.1']
    #allocation14 [shape = 'u8[2048]{0}', space=vmem, size = 0x800, scoped, tag = 'input window, operand 6, single buffered']
    #allocation15 [shape = 'u8[2048]{0}', space=vmem, size = 0x800, scoped, tag = 'input window, operand 7, single buffered']
    #allocation16 [shape = 's32[1]{0}', space=sflag, size = 0x4, scoped, tag = 'scoped memory for tpu_custom_call.1']
    #allocation17 [shape = 'u8[2048]{0}', space=vmem, size = 0x800, scoped, tag = 'input window, operand 8, single buffered']
    #allocation18 [shape = 'u8[512]{0}', space=vmem, size = 0x400, scoped, tag = 'input window, operand 10, single buffered']
    #allocation19 [shape = 's32[1]{0}', space=sflag, size = 0x4, scoped, tag = 'scoped memory for tpu_custom_call.1']
    #allocation20 [shape = 'u8[512]{0}', space=vmem, size = 0x400, scoped, tag = 'input window, operand 11, single buffered']
    #allocation21 [shape = 'u8[512]{0}', space=vmem, size = 0x400, scoped, tag = 'input window, operand 12, single buffered']
    #allocation22 [shape = 's32[1]{0}', space=sflag, size = 0x4, scoped, tag = 'scoped memory for tpu_custom_call.1']
    #allocation23 [shape = 'u8[512]{0}', space=vmem, size = 0x400, scoped, tag = 'input window, operand 13, single buffered']
    #allocation24 [shape = 'u8[8192]{0}', space=vmem, size = 0x2000, scoped, tag = 'output window, operand 0, single buffered']
    %22 = vsyncpa [#allocation4], 0
    %23 = vsyncpa [#allocation7], 0
    %24 = vsyncpa [#allocation10], 0
    %25 = vsyncpa [#allocation13], 0
    %26 = vsyncpa [#allocation16], 0
    %27 = vsyncpa [#allocation19], 0
    %28 = vsyncpa [#allocation22], 0
    %29 = vsyncpa [#allocation5], 0
    // Predicated region
    $region2: #{tpu_custom_call.1} parent=1 // pred_check
      _
    $region3: #{tpu_custom_call.1} parent=1 // pred_check_branch
      %31 = sbr.rel (0) target = $region5
    $region4: #{tpu_custom_call.1} parent=1 // pred_region
      %s33 = ssub.s32 128, 128
      %34 = vsyncadd [#allocation4], %s33
      %s35 = sshll.u32 [#allocation3], 4
      %s36 = int_to_ptr.vmem [resolvable:$true] %s35
      %41 = dma.hbm_to_vmem [thread:$0]  %s0, 128, %s36, [#allocation4], 64, 64, 4
    $region5: #{tpu_custom_call.1} parent=1 // pred_fallthru
      _
    // Predicated region
    $region6: #{tpu_custom_call.1} parent=1 // pred_check
      _
    $region7: #{tpu_custom_call.1} parent=1 // pred_check_branch
      %43 = sbr.rel (0) target = $region9
    $region8: #{tpu_custom_call.1} parent=1 // pred_region
      %s45 = ssub.s32 16384, 16384
      %46 = vsyncadd [#allocation7], %s45
      %s47 = sshll.u32 [#allocation6], 4
      %s48 = int_to_ptr.vmem [resolvable:$true] %s47
      %53 = dma.hbm_to_vmem [thread:$0]  %s1, 16384, %s48, [#allocation7], 1024, 1024, 64
    $region9: #{tpu_custom_call.1} parent=1 // pred_fallthru
      _
    // Predicated region
    $region10: #{tpu_custom_call.1} parent=1 // pred_check
      _
    $region11: #{tpu_custom_call.1} parent=1 // pred_check_branch
      %55 = sbr.rel (0) target = $region13
    $region12: #{tpu_custom_call.1} parent=1 // pred_region
      %s57 = ssub.s32 256, 256
      %58 = vsyncadd [#allocation7], %s57
      %s60 = sshll.u32 [#allocation8], 4
      %s61 = int_to_ptr.vmem [resolvable:$true] %s60
      %63 = dma.hbm_to_vmem [thread:$0]  %s2, 256, %s61, [#allocation7]
    $region13: #{tpu_custom_call.1} parent=1 // pred_fallthru
      _
    // Predicated region
    $region14: #{tpu_custom_call.1} parent=1 // pred_check
      _
    $region15: #{tpu_custom_call.1} parent=1 // pred_check_branch
      %65 = sbr.rel (0) target = $region17
    $region16: #{tpu_custom_call.1} parent=1 // pred_region
      %s67 = ssub.s32 256, 256
      %68 = vsyncadd [#allocation10], %s67
      %s70 = sshll.u32 [#allocation9], 4
      %s71 = int_to_ptr.vmem [resolvable:$true] %s70
      %73 = dma.hbm_to_vmem [thread:$0]  %s3, 256, %s71, [#allocation10]
    $region17: #{tpu_custom_call.1} parent=1 // pred_fallthru
      _
    // Predicated region
    $region18: #{tpu_custom_call.1} parent=1 // pred_check
      _
    $region19: #{tpu_custom_call.1} parent=1 // pred_check_branch
      %75 = sbr.rel (0) target = $region21
    $region20: #{tpu_custom_call.1} parent=1 // pred_region
      %s77 = ssub.s32 256, 256
      %78 = vsyncadd [#allocation10], %s77
      %s80 = sshll.u32 [#allocation11], 4
      %s81 = int_to_ptr.vmem [resolvable:$true] %s80
      %83 = dma.hbm_to_vmem [thread:$0]  %s4, 256, %s81, [#allocation10]
    $region21: #{tpu_custom_call.1} parent=1 // pred_fallthru
      _
    // Predicated region
    $region22: #{tpu_custom_call.1} parent=1 // pred_check
      _
    $region23: #{tpu_custom_call.1} parent=1 // pred_check_branch
      %85 = sbr.rel (0) target = $region25
    $region24: #{tpu_custom_call.1} parent=1 // pred_region
      %s87 = ssub.s32 65536, 65536
      %88 = vsyncadd [#allocation13], %s87
      %s89 = sshll.u32 [#allocation12], 4
      %s90 = int_to_ptr.vmem [resolvable:$true] %s89
      %95 = dma.hbm_to_vmem [thread:$0]  %s5, 65536, %s90, [#allocation13], 256, 256, 16
    $region25: #{tpu_custom_call.1} parent=1 // pred_fallthru
      _
    // Predicated region
    $region26: #{tpu_custom_call.1} parent=1 // pred_check
      _
    $region27: #{tpu_custom_call.1} parent=1 // pred_check_branch
      %97 = sbr.rel (0) target = $region29
    $region28: #{tpu_custom_call.1} parent=1 // pred_region
      %s99 = ssub.s32 64, 64
      %100 = vsyncadd [#allocation13], %s99
      %s102 = sshll.u32 [#allocation14], 4
      %s103 = int_to_ptr.vmem [resolvable:$true] %s102
      %105 = dma.hbm_to_vmem [thread:$0]  %s6, 64, %s103, [#allocation13]
    $region29: #{tpu_custom_call.1} parent=1 // pred_fallthru
      _
    // Predicated region
    $region30: #{tpu_custom_call.1} parent=1 // pred_check
      _
    $region31: #{tpu_custom_call.1} parent=1 // pred_check_branch
      %107 = sbr.rel (0) target = $region33
    $region32: #{tpu_custom_call.1} parent=1 // pred_region
      %s109 = ssub.s32 64, 64
      %110 = vsyncadd [#allocation16], %s109
      %s112 = sshll.u32 [#allocation15], 4
      %s113 = int_to_ptr.vmem [resolvable:$true] %s112
      %115 = dma.hbm_to_vmem [thread:$0]  %s7, 64, %s113, [#allocation16]
    $region33: #{tpu_custom_call.1} parent=1 // pred_fallthru
      _
    // Predicated region
    $region34: #{tpu_custom_call.1} parent=1 // pred_check
      _
    $region35: #{tpu_custom_call.1} parent=1 // pred_check_branch
      %117 = sbr.rel (0) target = $region37
    $region36: #{tpu_custom_call.1} parent=1 // pred_region
      %s119 = ssub.s32 64, 64
      %120 = vsyncadd [#allocation16], %s119
      %s122 = sshll.u32 [#allocation17], 4
      %s123 = int_to_ptr.vmem [resolvable:$true] %s122
      %125 = dma.hbm_to_vmem [thread:$0]  %s8, 64, %s123, [#allocation16]
    $region37: #{tpu_custom_call.1} parent=1 // pred_fallthru
      _
    // Predicated region
    $region38: #{tpu_custom_call.1} parent=1 // pred_check
      _
    $region39: #{tpu_custom_call.1} parent=1 // pred_check_branch
      %127 = sbr.rel (0) target = $region41
    $region40: #{tpu_custom_call.1} parent=1 // pred_region
      _
    $region41: #{tpu_custom_call.1} parent=1 // pred_fallthru
      _
    // Predicated region
    $region42: #{tpu_custom_call.1} parent=1 // pred_check
      _
    $region43: #{tpu_custom_call.1} parent=1 // pred_check_branch
      %129 = sbr.rel (0) target = $region45
    $region44: #{tpu_custom_call.1} parent=1 // pred_region
      %s131 = ssub.s32 16, 16
      %132 = vsyncadd [#allocation19], %s131
      %s134 = sshll.u32 [#allocation18], 4
      %s135 = int_to_ptr.vmem [resolvable:$true] %s134
      %137 = dma.hbm_to_vmem [thread:$0]  %s10, 16, %s135, [#allocation19]
    $region45: #{tpu_custom_call.1} parent=1 // pred_fallthru
      _
    // Predicated region
    $region46: #{tpu_custom_call.1} parent=1 // pred_check
      _
    $region47: #{tpu_custom_call.1} parent=1 // pred_check_branch
      %139 = sbr.rel (0) target = $region49
    $region48: #{tpu_custom_call.1} parent=1 // pred_region
      %s141 = ssub.s32 16, 16
      %142 = vsyncadd [#allocation19], %s141
      %s144 = sshll.u32 [#allocation20], 4
      %s145 = int_to_ptr.vmem [resolvable:$true] %s144
      %147 = dma.hbm_to_vmem [thread:$0]  %s11, 16, %s145, [#allocation19]
    $region49: #{tpu_custom_call.1} parent=1 // pred_fallthru
      _
    // Predicated region
    $region50: #{tpu_custom_call.1} parent=1 // pred_check
      _
    $region51: #{tpu_custom_call.1} parent=1 // pred_check_branch
      %149 = sbr.rel (0) target = $region53
    $region52: #{tpu_custom_call.1} parent=1 // pred_region
      %s151 = ssub.s32 16, 16
      %152 = vsyncadd [#allocation22], %s151
      %s154 = sshll.u32 [#allocation21], 4
      %s155 = int_to_ptr.vmem [resolvable:$true] %s154
      %157 = dma.hbm_to_vmem [thread:$0]  %s12, 16, %s155, [#allocation22]
    $region53: #{tpu_custom_call.1} parent=1 // pred_fallthru
      _
    // Predicated region
    $region54: #{tpu_custom_call.1} parent=1 // pred_check
      _
    $region55: #{tpu_custom_call.1} parent=1 // pred_check_branch
      %159 = sbr.rel (0) target = $region57
    $region56: #{tpu_custom_call.1} parent=1 // pred_region
      %s161 = ssub.s32 16, 16
      %162 = vsyncadd [#allocation22], %s161
      %s164 = sshll.u32 [#allocation23], 4
      %s165 = int_to_ptr.vmem [resolvable:$true] %s164
      %167 = dma.hbm_to_vmem [thread:$0]  %s13, 16, %s165, [#allocation22]
    $region57: #{tpu_custom_call.1} parent=1 // pred_fallthru
      _
    // Predicated region
    $region58: #{tpu_custom_call.1} parent=1 // pred_check
      _
    $region59: #{tpu_custom_call.1} parent=1 // pred_check_branch
      %169 = sbr.rel (0) target = $region61
    $region60: #{tpu_custom_call.1} parent=1 // pred_region
      _
    $region61: #{tpu_custom_call.1} parent=1 // pred_fallthru
      _
    // Predicated region
    $region62: #{tpu_custom_call.1} parent=1 // pred_check
      _
    $region63: #{tpu_custom_call.1} parent=1 // pred_check_branch
      %171 = sbr.rel (0) target = $region65
    $region64: #{tpu_custom_call.1} parent=1 // pred_region
      %172 = dma.done [#allocation4], 128
    $region65: #{tpu_custom_call.1} parent=1 // pred_fallthru
      _
    // Predicated region
    $region66: #{tpu_custom_call.1} parent=1 // pred_check
      _
    $region67: #{tpu_custom_call.1} parent=1 // pred_check_branch
      %174 = sbr.rel (0) target = $region69
    $region68: #{tpu_custom_call.1} parent=1 // pred_region
      %175 = dma.done [#allocation7], 16384
    $region69: #{tpu_custom_call.1} parent=1 // pred_fallthru
      _
    // Predicated region
    $region70: #{tpu_custom_call.1} parent=1 // pred_check
      _
    $region71: #{tpu_custom_call.1} parent=1 // pred_check_branch
      %177 = sbr.rel (0) target = $region73
    $region72: #{tpu_custom_call.1} parent=1 // pred_region
      %178 = dma.done [#allocation7], 256
    $region73: #{tpu_custom_call.1} parent=1 // pred_fallthru
      _
    // Predicated region
    $region74: #{tpu_custom_call.1} parent=1 // pred_check
      _
    $region75: #{tpu_custom_call.1} parent=1 // pred_check_branch
      %180 = sbr.rel (0) target = $region77
    $region76: #{tpu_custom_call.1} parent=1 // pred_region
      %181 = dma.done [#allocation10], 256
    $region77: #{tpu_custom_call.1} parent=1 // pred_fallthru
      _
    // Predicated region
    $region78: #{tpu_custom_call.1} parent=1 // pred_check
      _
    $region79: #{tpu_custom_call.1} parent=1 // pred_check_branch
      %183 = sbr.rel (0) target = $region81
    $region80: #{tpu_custom_call.1} parent=1 // pred_region
      %184 = dma.done [#allocation10], 256
    $region81: #{tpu_custom_call.1} parent=1 // pred_fallthru
      _
    // Predicated region
    $region82: #{tpu_custom_call.1} parent=1 // pred_check
      _
    $region83: #{tpu_custom_call.1} parent=1 // pred_check_branch
      %186 = sbr.rel (0) target = $region85
    $region84: #{tpu_custom_call.1} parent=1 // pred_region
      %187 = dma.done [#allocation13], 65536
    $region85: #{tpu_custom_call.1} parent=1 // pred_fallthru
      _
    // Predicated region
    $region86: #{tpu_custom_call.1} parent=1 // pred_check
      _
    $region87: #{tpu_custom_call.1} parent=1 // pred_check_branch
      %189 = sbr.rel (0) target = $region89
    $region88: #{tpu_custom_call.1} parent=1 // pred_region
      %190 = dma.done [#allocation13], 64
    $region89: #{tpu_custom_call.1} parent=1 // pred_fallthru
      _
    // Predicated region
    $region90: #{tpu_custom_call.1} parent=1 // pred_check
      _
    $region91: #{tpu_custom_call.1} parent=1 // pred_check_branch
      %192 = sbr.rel (0) target = $region93
    $region92: #{tpu_custom_call.1} parent=1 // pred_region
      %193 = dma.done [#allocation16], 64
    $region93: #{tpu_custom_call.1} parent=1 // pred_fallthru
      _
    // Predicated region
    $region94: #{tpu_custom_call.1} parent=1 // pred_check
      _
    $region95: #{tpu_custom_call.1} parent=1 // pred_check_branch
      %195 = sbr.rel (0) target = $region97
    $region96: #{tpu_custom_call.1} parent=1 // pred_region
      %196 = dma.done [#allocation16], 64
    $region97: #{tpu_custom_call.1} parent=1 // pred_fallthru
      _
    // Predicated region
    $region98: #{tpu_custom_call.1} parent=1 // pred_check
      _
    $region99: #{tpu_custom_call.1} parent=1 // pred_check_branch
      %198 = sbr.rel (0) target = $region101
    $region100: #{tpu_custom_call.1} parent=1 // pred_region
      %199 = dma.done [#allocation19], 16
    $region101: #{tpu_custom_call.1} parent=1 // pred_fallthru
      _
    // Predicated region
    $region102: #{tpu_custom_call.1} parent=1 // pred_check
      _
    $region103: #{tpu_custom_call.1} parent=1 // pred_check_branch
      %201 = sbr.rel (0) target = $region105
    $region104: #{tpu_custom_call.1} parent=1 // pred_region
      %202 = dma.done [#allocation19], 16
    $region105: #{tpu_custom_call.1} parent=1 // pred_fallthru
      _
    // Predicated region
    $region106: #{tpu_custom_call.1} parent=1 // pred_check
      _
    $region107: #{tpu_custom_call.1} parent=1 // pred_check_branch
      %204 = sbr.rel (0) target = $region109
    $region108: #{tpu_custom_call.1} parent=1 // pred_region
      %205 = dma.done [#allocation22], 16
    $region109: #{tpu_custom_call.1} parent=1 // pred_fallthru
      _
    // Predicated region
    $region110: #{tpu_custom_call.1} parent=1 // pred_check
      _
    $region111: #{tpu_custom_call.1} parent=1 // pred_check_branch
      %207 = sbr.rel (0) target = $region113
    $region112: #{tpu_custom_call.1} parent=1 // pred_region
      %208 = dma.done [#allocation22], 16
    $region113: #{tpu_custom_call.1} parent=1 // pred_fallthru
      _
    %v210 = vld [vmem:[#allocation3] sm:$0xf]
    %v211 = vld [vmem:[#allocation3 + $0x4] sm:$0xf]
    %v212 = vld [vmem:[#allocation6] sm:$0xff]
    %v213 = vld [vmem:[#allocation6 + $0x8] sm:$0xff]
    %v214 = vld [vmem:[#allocation6 + $0x10] sm:$0xff]
    %v215 = vld [vmem:[#allocation6 + $0x18] sm:$0xff]
    %v216 = vld [vmem:[#allocation6 + $0x20] sm:$0xff]
    %v217 = vld [vmem:[#allocation6 + $0x28] sm:$0xff]
    %v218 = vld [vmem:[#allocation6 + $0x30] sm:$0xff]
    %v219 = vld [vmem:[#allocation6 + $0x38] sm:$0xff]
    %v220 = vld [vmem:[#allocation6 + $0x40] sm:$0xff]
    %v221 = vld [vmem:[#allocation6 + $0x48] sm:$0xff]
    %v222 = vld [vmem:[#allocation6 + $0x50] sm:$0xff]
    %v223 = vld [vmem:[#allocation6 + $0x58] sm:$0xff]
    %v224 = vld [vmem:[#allocation6 + $0x60] sm:$0xff]
    %v225 = vld [vmem:[#allocation6 + $0x68] sm:$0xff]
    %v226 = vld [vmem:[#allocation6 + $0x70] sm:$0xff]
    %v227 = vld [vmem:[#allocation6 + $0x78] sm:$0xff]
    %v228 = vld [vmem:[#allocation6 + $0x80] sm:$0xff]
    %v229 = vld [vmem:[#allocation6 + $0x88] sm:$0xff]
    %v230 = vld [vmem:[#allocation6 + $0x90] sm:$0xff]
    %v231 = vld [vmem:[#allocation6 + $0x98] sm:$0xff]
    %v232 = vld [vmem:[#allocation6 + $0xa0] sm:$0xff]
    %v233 = vld [vmem:[#allocation6 + $0xa8] sm:$0xff]
    %v234 = vld [vmem:[#allocation6 + $0xb0] sm:$0xff]
    %v235 = vld [vmem:[#allocation6 + $0xb8] sm:$0xff]
    %v236 = vld [vmem:[#allocation6 + $0xc0] sm:$0xff]
    %v237 = vld [vmem:[#allocation6 + $0xc8] sm:$0xff]
    %v238 = vld [vmem:[#allocation6 + $0xd0] sm:$0xff]
    %v239 = vld [vmem:[#allocation6 + $0xd8] sm:$0xff]
    %v240 = vld [vmem:[#allocation6 + $0xe0] sm:$0xff]
    %v241 = vld [vmem:[#allocation6 + $0xe8] sm:$0xff]
    %v242 = vld [vmem:[#allocation6 + $0xf0] sm:$0xff]
    %v243 = vld [vmem:[#allocation6 + $0xf8] sm:$0xff]
    %v244 = vld [vmem:[#allocation6 + $0x100] sm:$0xff]
    %v245 = vld [vmem:[#allocation6 + $0x108] sm:$0xff]
    %v246 = vld [vmem:[#allocation6 + $0x110] sm:$0xff]
    %v247 = vld [vmem:[#allocation6 + $0x118] sm:$0xff]
    %v248 = vld [vmem:[#allocation6 + $0x120] sm:$0xff]
    %v249 = vld [vmem:[#allocation6 + $0x128] sm:$0xff]
    %v250 = vld [vmem:[#allocation6 + $0x130] sm:$0xff]
    %v251 = vld [vmem:[#allocation6 + $0x138] sm:$0xff]
    %v252 = vld [vmem:[#allocation6 + $0x140] sm:$0xff]
    %v253 = vld [vmem:[#allocation6 + $0x148] sm:$0xff]
    %v254 = vld [vmem:[#allocation6 + $0x150] sm:$0xff]
    %v255 = vld [vmem:[#allocation6 + $0x158] sm:$0xff]
    %v256 = vld [vmem:[#allocation6 + $0x160] sm:$0xff]
    %v257 = vld [vmem:[#allocation6 + $0x168] sm:$0xff]
    %v258 = vld [vmem:[#allocation6 + $0x170] sm:$0xff]
    %v259 = vld [vmem:[#allocation6 + $0x178] sm:$0xff]
    %v260 = vld [vmem:[#allocation6 + $0x180] sm:$0xff]
    %v261 = vld [vmem:[#allocation6 + $0x188] sm:$0xff]
    %v262 = vld [vmem:[#allocation6 + $0x190] sm:$0xff]
    %v263 = vld [vmem:[#allocation6 + $0x198] sm:$0xff]
    %v264 = vld [vmem:[#allocation6 + $0x1a0] sm:$0xff]
    %v265 = vld [vmem:[#allocation6 + $0x1a8] sm:$0xff]
    %v266 = vld [vmem:[#allocation6 + $0x1b0] sm:$0xff]
    %v267 = vld [vmem:[#allocation6 + $0x1b8] sm:$0xff]
    %v268 = vld [vmem:[#allocation6 + $0x1c0] sm:$0xff]
    %v269 = vld [vmem:[#allocation6 + $0x1c8] sm:$0xff]
    %v270 = vld [vmem:[#allocation6 + $0x1d0] sm:$0xff]
    %v271 = vld [vmem:[#allocation6 + $0x1d8] sm:$0xff]
    %v272 = vld [vmem:[#allocation6 + $0x1e0] sm:$0xff]
    %v273 = vld [vmem:[#allocation6 + $0x1e8] sm:$0xff]
    %v274 = vld [vmem:[#allocation6 + $0x1f0] sm:$0xff]
    %v275 = vld [vmem:[#allocation6 + $0x1f8] sm:$0xff]
    %v276 = vld [vmem:[#allocation6 + $0x200] sm:$0xff]
    %v277 = vld [vmem:[#allocation6 + $0x208] sm:$0xff]
    %v278 = vld [vmem:[#allocation6 + $0x210] sm:$0xff]
    %v279 = vld [vmem:[#allocation6 + $0x218] sm:$0xff]
    %v280 = vld [vmem:[#allocation6 + $0x220] sm:$0xff]
    %v281 = vld [vmem:[#allocation6 + $0x228] sm:$0xff]
    %v282 = vld [vmem:[#allocation6 + $0x230] sm:$0xff]
    %v283 = vld [vmem:[#allocation6 + $0x238] sm:$0xff]
    %v284 = vld [vmem:[#allocation6 + $0x240] sm:$0xff]
    %v285 = vld [vmem:[#allocation6 + $0x248] sm:$0xff]
    %v286 = vld [vmem:[#allocation6 + $0x250] sm:$0xff]
    %v287 = vld [vmem:[#allocation6 + $0x258] sm:$0xff]
    %v288 = vld [vmem:[#allocation6 + $0x260] sm:$0xff]
    %v289 = vld [vmem:[#allocation6 + $0x268] sm:$0xff]
    %v290 = vld [vmem:[#allocation6 + $0x270] sm:$0xff]
    %v291 = vld [vmem:[#allocation6 + $0x278] sm:$0xff]
    %v292 = vld [vmem:[#allocation6 + $0x280] sm:$0xff]
    %v293 = vld [vmem:[#allocation6 + $0x288] sm:$0xff]
    %v294 = vld [vmem:[#allocation6 + $0x290] sm:$0xff]
    %v295 = vld [vmem:[#allocation6 + $0x298] sm:$0xff]
    %v296 = vld [vmem:[#allocation6 + $0x2a0] sm:$0xff]
    %v297 = vld [vmem:[#allocation6 + $0x2a8] sm:$0xff]
    %v298 = vld [vmem:[#allocation6 + $0x2b0] sm:$0xff]
    %v299 = vld [vmem:[#allocation6 + $0x2b8] sm:$0xff]
    %v300 = vld [vmem:[#allocation6 + $0x2c0] sm:$0xff]
    %v301 = vld [vmem:[#allocation6 + $0x2c8] sm:$0xff]
    %v302 = vld [vmem:[#allocation6 + $0x2d0] sm:$0xff]
    %v303 = vld [vmem:[#allocation6 + $0x2d8] sm:$0xff]
    %v304 = vld [vmem:[#allocation6 + $0x2e0] sm:$0xff]
    %v305 = vld [vmem:[#allocation6 + $0x2e8] sm:$0xff]
    %v306 = vld [vmem:[#allocation6 + $0x2f0] sm:$0xff]
    %v307 = vld [vmem:[#allocation6 + $0x2f8] sm:$0xff]
    %v308 = vld [vmem:[#allocation6 + $0x300] sm:$0xff]
    %v309 = vld [vmem:[#allocation6 + $0x308] sm:$0xff]
    %v310 = vld [vmem:[#allocation6 + $0x310] sm:$0xff]
    %v311 = vld [vmem:[#allocation6 + $0x318] sm:$0xff]
    %v312 = vld [vmem:[#allocation6 + $0x320] sm:$0xff]
    %v313 = vld [vmem:[#allocation6 + $0x328] sm:$0xff]
    %v314 = vld [vmem:[#allocation6 + $0x330] sm:$0xff]
    %v315 = vld [vmem:[#allocation6 + $0x338] sm:$0xff]
    %v316 = vld [vmem:[#allocation6 + $0x340] sm:$0xff]
    %v317 = vld [vmem:[#allocation6 + $0x348] sm:$0xff]
    %v318 = vld [vmem:[#allocation6 + $0x350] sm:$0xff]
    %v319 = vld [vmem:[#allocation6 + $0x358] sm:$0xff]
    %v320 = vld [vmem:[#allocation6 + $0x360] sm:$0xff]
    %v321 = vld [vmem:[#allocation6 + $0x368] sm:$0xff]
    %v322 = vld [vmem:[#allocation6 + $0x370] sm:$0xff]
    %v323 = vld [vmem:[#allocation6 + $0x378] sm:$0xff]
    %v324 = vld [vmem:[#allocation6 + $0x380] sm:$0xff]
    %v325 = vld [vmem:[#allocation6 + $0x388] sm:$0xff]
    %v326 = vld [vmem:[#allocation6 + $0x390] sm:$0xff]
    %v327 = vld [vmem:[#allocation6 + $0x398] sm:$0xff]
    %v328 = vld [vmem:[#allocation6 + $0x3a0] sm:$0xff]
    %v329 = vld [vmem:[#allocation6 + $0x3a8] sm:$0xff]
    %v330 = vld [vmem:[#allocation6 + $0x3b0] sm:$0xff]
    %v331 = vld [vmem:[#allocation6 + $0x3b8] sm:$0xff]
    %v332 = vld [vmem:[#allocation6 + $0x3c0] sm:$0xff]
    %v333 = vld [vmem:[#allocation6 + $0x3c8] sm:$0xff]
    %v334 = vld [vmem:[#allocation6 + $0x3d0] sm:$0xff]
    %v335 = vld [vmem:[#allocation6 + $0x3d8] sm:$0xff]
    %v336 = vld [vmem:[#allocation6 + $0x3e0] sm:$0xff]
    %v337 = vld [vmem:[#allocation6 + $0x3e8] sm:$0xff]
    %v338 = vld [vmem:[#allocation6 + $0x3f0] sm:$0xff]
    %v339 = vld [vmem:[#allocation6 + $0x3f8] sm:$0xff]
    %v340 = vld [vmem:[#allocation8] sm:$0xff]
    %v341 = vld [vmem:[#allocation8 + $0x8] sm:$0xff]
    %v344 = vlaneseq
    %v345 = vshrl.u32 %v344, 7
    %v346 = vsub.s32 0, %v345
    %v347 = vrot.slane %v340, %v346
    %v348 = vlaneseq
    %v349 = vshrl.u32 %v348, 7
    %v350 = vsub.s32 1, %v349
    %v351 = vrot.slane %v340, %v350
    %v352 = vlaneseq
    %v353 = vshrl.u32 %v352, 7
    %v354 = vsub.s32 2, %v353
    %v355 = vrot.slane %v340, %v354
    %v356 = vlaneseq
    %v357 = vshrl.u32 %v356, 7
    %v358 = vsub.s32 3, %v357
    %v359 = vrot.slane %v340, %v358
    %v360 = vlaneseq
    %v361 = vshrl.u32 %v360, 7
    %v362 = vsub.s32 4, %v361
    %v363 = vrot.slane %v340, %v362
    %v364 = vlaneseq
    %v365 = vshrl.u32 %v364, 7
    %v366 = vsub.s32 5, %v365
    %v367 = vrot.slane %v340, %v366
    %v368 = vlaneseq
    %v369 = vshrl.u32 %v368, 7
    %v370 = vsub.s32 6, %v369
    %v371 = vrot.slane %v340, %v370
    %v372 = vlaneseq
    %v373 = vshrl.u32 %v372, 7
    %v374 = vsub.s32 7, %v373
    %v375 = vrot.slane %v340, %v374
    %v376 = vlaneseq
    %v377 = vshrl.u32 %v376, 7
    %v378 = vsub.s32 0, %v377
    %v379 = vrot.slane %v341, %v378
    %v380 = vlaneseq
    %v381 = vshrl.u32 %v380, 7
    %v382 = vsub.s32 1, %v381
    %v383 = vrot.slane %v341, %v382
    %v384 = vlaneseq
    %v385 = vshrl.u32 %v384, 7
    %v386 = vsub.s32 2, %v385
    %v387 = vrot.slane %v341, %v386
    %v388 = vlaneseq
    %v389 = vshrl.u32 %v388, 7
    %v390 = vsub.s32 3, %v389
    %v391 = vrot.slane %v341, %v390
    %v392 = vlaneseq
    %v393 = vshrl.u32 %v392, 7
    %v394 = vsub.s32 4, %v393
    %v395 = vrot.slane %v341, %v394
    %v396 = vlaneseq
    %v397 = vshrl.u32 %v396, 7
    %v398 = vsub.s32 5, %v397
    %v399 = vrot.slane %v341, %v398
    %v400 = vlaneseq
    %v401 = vshrl.u32 %v400, 7
    %v402 = vsub.s32 6, %v401
    %v403 = vrot.slane %v341, %v402
    %v404 = vlaneseq
    %v405 = vshrl.u32 %v404, 7
    %v406 = vsub.s32 7, %v405
    %v407 = vrot.slane %v341, %v406
    %v426 = vunpack.c.l.b16 %v210
    %v427 = vunpack.c.l.b16 %v211
    %v428 = vpack.c.b16 %v427, %v426
    %v558 = vunpack.c.l.b16 %v212
    %v559 = vunpack.c.h.b16 %v212
    %v560 = vunpack.c.l.b16 %v213
    %v561 = vunpack.c.h.b16 %v213
    %v562 = vunpack.c.l.b16 %v214
    %v563 = vunpack.c.h.b16 %v214
    %v564 = vunpack.c.l.b16 %v215
    %v565 = vunpack.c.h.b16 %v215
    %v566 = vunpack.c.l.b16 %v216
    %v567 = vunpack.c.h.b16 %v216
    %v568 = vunpack.c.l.b16 %v217
    %v569 = vunpack.c.h.b16 %v217
    %v570 = vunpack.c.l.b16 %v218
    %v571 = vunpack.c.h.b16 %v218
    %v572 = vunpack.c.l.b16 %v219
    %v573 = vunpack.c.h.b16 %v219
    %v574 = vunpack.c.l.b16 %v220
    %v575 = vunpack.c.h.b16 %v220
    %v576 = vunpack.c.l.b16 %v221
    %v577 = vunpack.c.h.b16 %v221
    %v578 = vunpack.c.l.b16 %v222
    %v579 = vunpack.c.h.b16 %v222
    %v580 = vunpack.c.l.b16 %v223
    %v581 = vunpack.c.h.b16 %v223
    %v582 = vunpack.c.l.b16 %v224
    %v583 = vunpack.c.h.b16 %v224
    %v584 = vunpack.c.l.b16 %v225
    %v585 = vunpack.c.h.b16 %v225
    %v586 = vunpack.c.l.b16 %v226
    %v587 = vunpack.c.h.b16 %v226
    %v588 = vunpack.c.l.b16 %v227
    %v589 = vunpack.c.h.b16 %v227
    %v590 = vunpack.c.l.b16 %v228
    %v591 = vunpack.c.h.b16 %v228
    %v592 = vunpack.c.l.b16 %v229
    %v593 = vunpack.c.h.b16 %v229
    %v594 = vunpack.c.l.b16 %v230
    %v595 = vunpack.c.h.b16 %v230
    %v596 = vunpack.c.l.b16 %v231
    %v597 = vunpack.c.h.b16 %v231
    %v598 = vunpack.c.l.b16 %v232
    %v599 = vunpack.c.h.b16 %v232
    %v600 = vunpack.c.l.b16 %v233
    %v601 = vunpack.c.h.b16 %v233
    %v602 = vunpack.c.l.b16 %v234
    %v603 = vunpack.c.h.b16 %v234
    %v604 = vunpack.c.l.b16 %v235
    %v605 = vunpack.c.h.b16 %v235
    %v606 = vunpack.c.l.b16 %v236
    %v607 = vunpack.c.h.b16 %v236
    %v608 = vunpack.c.l.b16 %v237
    %v609 = vunpack.c.h.b16 %v237
    %v610 = vunpack.c.l.b16 %v238
    %v611 = vunpack.c.h.b16 %v238
    %v612 = vunpack.c.l.b16 %v239
    %v613 = vunpack.c.h.b16 %v239
    %v614 = vunpack.c.l.b16 %v240
    %v615 = vunpack.c.h.b16 %v240
    %v616 = vunpack.c.l.b16 %v241
    %v617 = vunpack.c.h.b16 %v241
    %v618 = vunpack.c.l.b16 %v242
    %v619 = vunpack.c.h.b16 %v242
    %v620 = vunpack.c.l.b16 %v243
    %v621 = vunpack.c.h.b16 %v243
    %v622 = vunpack.c.l.b16 %v244
    %v623 = vunpack.c.h.b16 %v244
    %v624 = vunpack.c.l.b16 %v245
    %v625 = vunpack.c.h.b16 %v245
    %v626 = vunpack.c.l.b16 %v246
    %v627 = vunpack.c.h.b16 %v246
    %v628 = vunpack.c.l.b16 %v247
    %v629 = vunpack.c.h.b16 %v247
    %v630 = vunpack.c.l.b16 %v248
    %v631 = vunpack.c.h.b16 %v248
    %v632 = vunpack.c.l.b16 %v249
    %v633 = vunpack.c.h.b16 %v249
    %v634 = vunpack.c.l.b16 %v250
    %v635 = vunpack.c.h.b16 %v250
    %v636 = vunpack.c.l.b16 %v251
    %v637 = vunpack.c.h.b16 %v251
    %v638 = vunpack.c.l.b16 %v252
    %v639 = vunpack.c.h.b16 %v252
    %v640 = vunpack.c.l.b16 %v253
    %v641 = vunpack.c.h.b16 %v253
    %v642 = vunpack.c.l.b16 %v254
    %v643 = vunpack.c.h.b16 %v254
    %v644 = vunpack.c.l.b16 %v255
    %v645 = vunpack.c.h.b16 %v255
    %v646 = vunpack.c.l.b16 %v256
    %v647 = vunpack.c.h.b16 %v256
    %v648 = vunpack.c.l.b16 %v257
    %v649 = vunpack.c.h.b16 %v257
    %v650 = vunpack.c.l.b16 %v258
    %v651 = vunpack.c.h.b16 %v258
    %v652 = vunpack.c.l.b16 %v259
    %v653 = vunpack.c.h.b16 %v259
    %v654 = vunpack.c.l.b16 %v260
    %v655 = vunpack.c.h.b16 %v260
    %v656 = vunpack.c.l.b16 %v261
    %v657 = vunpack.c.h.b16 %v261
    %v658 = vunpack.c.l.b16 %v262
    %v659 = vunpack.c.h.b16 %v262
    %v660 = vunpack.c.l.b16 %v263
    %v661 = vunpack.c.h.b16 %v263
    %v662 = vunpack.c.l.b16 %v264
    %v663 = vunpack.c.h.b16 %v264
    %v664 = vunpack.c.l.b16 %v265
    %v665 = vunpack.c.h.b16 %v265
    %v666 = vunpack.c.l.b16 %v266
    %v667 = vunpack.c.h.b16 %v266
    %v668 = vunpack.c.l.b16 %v267
    %v669 = vunpack.c.h.b16 %v267
    %v670 = vunpack.c.l.b16 %v268
    %v671 = vunpack.c.h.b16 %v268
    %v672 = vunpack.c.l.b16 %v269
    %v673 = vunpack.c.h.b16 %v269
    %v674 = vunpack.c.l.b16 %v270
    %v675 = vunpack.c.h.b16 %v270
    %v676 = vunpack.c.l.b16 %v271
    %v677 = vunpack.c.h.b16 %v271
    %v678 = vunpack.c.l.b16 %v272
    %v679 = vunpack.c.h.b16 %v272
    %v680 = vunpack.c.l.b16 %v273
    %v681 = vunpack.c.h.b16 %v273
    %v682 = vunpack.c.l.b16 %v274
    %v683 = vunpack.c.h.b16 %v274
    %v684 = vunpack.c.l.b16 %v275
    %v685 = vunpack.c.h.b16 %v275
    %v686 = vunpack.c.l.b16 %v276
    %v687 = vunpack.c.h.b16 %v276
    %v688 = vunpack.c.l.b16 %v277
    %v689 = vunpack.c.h.b16 %v277
    %v690 = vunpack.c.l.b16 %v278
    %v691 = vunpack.c.h.b16 %v278
    %v692 = vunpack.c.l.b16 %v279
    %v693 = vunpack.c.h.b16 %v279
    %v694 = vunpack.c.l.b16 %v280
    %v695 = vunpack.c.h.b16 %v280
    %v696 = vunpack.c.l.b16 %v281
    %v697 = vunpack.c.h.b16 %v281
    %v698 = vunpack.c.l.b16 %v282
    %v699 = vunpack.c.h.b16 %v282
    %v700 = vunpack.c.l.b16 %v283
    %v701 = vunpack.c.h.b16 %v283
    %v702 = vunpack.c.l.b16 %v284
    %v703 = vunpack.c.h.b16 %v284
    %v704 = vunpack.c.l.b16 %v285
    %v705 = vunpack.c.h.b16 %v285
    %v706 = vunpack.c.l.b16 %v286
    %v707 = vunpack.c.h.b16 %v286
    %v708 = vunpack.c.l.b16 %v287
    %v709 = vunpack.c.h.b16 %v287
    %v710 = vunpack.c.l.b16 %v288
    %v711 = vunpack.c.h.b16 %v288
    %v712 = vunpack.c.l.b16 %v289
    %v713 = vunpack.c.h.b16 %v289
    %v714 = vunpack.c.l.b16 %v290
    %v715 = vunpack.c.h.b16 %v290
    %v716 = vunpack.c.l.b16 %v291
    %v717 = vunpack.c.h.b16 %v291
    %v718 = vunpack.c.l.b16 %v292
    %v719 = vunpack.c.h.b16 %v292
    %v720 = vunpack.c.l.b16 %v293
    %v721 = vunpack.c.h.b16 %v293
    %v722 = vunpack.c.l.b16 %v294
    %v723 = vunpack.c.h.b16 %v294
    %v724 = vunpack.c.l.b16 %v295
    %v725 = vunpack.c.h.b16 %v295
    %v726 = vunpack.c.l.b16 %v296
    %v727 = vunpack.c.h.b16 %v296
    %v728 = vunpack.c.l.b16 %v297
    %v729 = vunpack.c.h.b16 %v297
    %v730 = vunpack.c.l.b16 %v298
    %v731 = vunpack.c.h.b16 %v298
    %v732 = vunpack.c.l.b16 %v299
    %v733 = vunpack.c.h.b16 %v299
    %v734 = vunpack.c.l.b16 %v300
    %v735 = vunpack.c.h.b16 %v300
    %v736 = vunpack.c.l.b16 %v301
    %v737 = vunpack.c.h.b16 %v301
    %v738 = vunpack.c.l.b16 %v302
    %v739 = vunpack.c.h.b16 %v302
    %v740 = vunpack.c.l.b16 %v303
    %v741 = vunpack.c.h.b16 %v303
    %v742 = vunpack.c.l.b16 %v304
    %v743 = vunpack.c.h.b16 %v304
    %v744 = vunpack.c.l.b16 %v305
    %v745 = vunpack.c.h.b16 %v305
    %v746 = vunpack.c.l.b16 %v306
    %v747 = vunpack.c.h.b16 %v306
    %v748 = vunpack.c.l.b16 %v307
    %v749 = vunpack.c.h.b16 %v307
    %v750 = vunpack.c.l.b16 %v308
    %v751 = vunpack.c.h.b16 %v308
    %v752 = vunpack.c.l.b16 %v309
    %v753 = vunpack.c.h.b16 %v309
    %v754 = vunpack.c.l.b16 %v310
    %v755 = vunpack.c.h.b16 %v310
    %v756 = vunpack.c.l.b16 %v311
    %v757 = vunpack.c.h.b16 %v311
    %v758 = vunpack.c.l.b16 %v312
    %v759 = vunpack.c.h.b16 %v312
    %v760 = vunpack.c.l.b16 %v313
    %v761 = vunpack.c.h.b16 %v313
    %v762 = vunpack.c.l.b16 %v314
    %v763 = vunpack.c.h.b16 %v314
    %v764 = vunpack.c.l.b16 %v315
    %v765 = vunpack.c.h.b16 %v315
    %v766 = vunpack.c.l.b16 %v316
    %v767 = vunpack.c.h.b16 %v316
    %v768 = vunpack.c.l.b16 %v317
    %v769 = vunpack.c.h.b16 %v317
    %v770 = vunpack.c.l.b16 %v318
    %v771 = vunpack.c.h.b16 %v318
    %v772 = vunpack.c.l.b16 %v319
    %v773 = vunpack.c.h.b16 %v319
    %v774 = vunpack.c.l.b16 %v320
    %v775 = vunpack.c.h.b16 %v320
    %v776 = vunpack.c.l.b16 %v321
    %v777 = vunpack.c.h.b16 %v321
    %v778 = vunpack.c.l.b16 %v322
    %v779 = vunpack.c.h.b16 %v322
    %v780 = vunpack.c.l.b16 %v323
    %v781 = vunpack.c.h.b16 %v323
    %v782 = vunpack.c.l.b16 %v324
    %v783 = vunpack.c.h.b16 %v324
    %v784 = vunpack.c.l.b16 %v325
    %v785 = vunpack.c.h.b16 %v325
    %v786 = vunpack.c.l.b16 %v326
    %v787 = vunpack.c.h.b16 %v326
    %v788 = vunpack.c.l.b16 %v327
    %v789 = vunpack.c.h.b16 %v327
    %v790 = vunpack.c.l.b16 %v328
    %v791 = vunpack.c.h.b16 %v328
    %v792 = vunpack.c.l.b16 %v329
    %v793 = vunpack.c.h.b16 %v329
    %v794 = vunpack.c.l.b16 %v330
    %v795 = vunpack.c.h.b16 %v330
    %v796 = vunpack.c.l.b16 %v331
    %v797 = vunpack.c.h.b16 %v331
    %v798 = vunpack.c.l.b16 %v332
    %v799 = vunpack.c.h.b16 %v332
    %v800 = vunpack.c.l.b16 %v333
    %v801 = vunpack.c.h.b16 %v333
    %v802 = vunpack.c.l.b16 %v334
    %v803 = vunpack.c.h.b16 %v334
    %v804 = vunpack.c.l.b16 %v335
    %v805 = vunpack.c.h.b16 %v335
    %v806 = vunpack.c.l.b16 %v336
    %v807 = vunpack.c.h.b16 %v336
    %v808 = vunpack.c.l.b16 %v337
    %v809 = vunpack.c.h.b16 %v337
    %v810 = vunpack.c.l.b16 %v338
    %v811 = vunpack.c.h.b16 %v338
    %v812 = vunpack.c.l.b16 %v339
    %v813 = vunpack.c.h.b16 %v339
    %v814 = vpack.c.b16 %v574, %v558
    %v815 = vpack.c.b16 %v575, %v559
    %v816 = vpack.c.b16 %v576, %v560
    %v817 = vpack.c.b16 %v577, %v561
    %v818 = vpack.c.b16 %v578, %v562
    %v819 = vpack.c.b16 %v579, %v563
    %v820 = vpack.c.b16 %v580, %v564
    %v821 = vpack.c.b16 %v581, %v565
    %v822 = vpack.c.b16 %v582, %v566
    %v823 = vpack.c.b16 %v583, %v567
    %v824 = vpack.c.b16 %v584, %v568
    %v825 = vpack.c.b16 %v585, %v569
    %v826 = vpack.c.b16 %v586, %v570
    %v827 = vpack.c.b16 %v587, %v571
    %v828 = vpack.c.b16 %v588, %v572
    %v829 = vpack.c.b16 %v589, %v573
    %v830 = vpack.c.b16 %v606, %v590
    %v831 = vpack.c.b16 %v607, %v591
    %v832 = vpack.c.b16 %v608, %v592
    %v833 = vpack.c.b16 %v609, %v593
    %v834 = vpack.c.b16 %v610, %v594
    %v835 = vpack.c.b16 %v611, %v595
    %v836 = vpack.c.b16 %v612, %v596
    %v837 = vpack.c.b16 %v613, %v597
    %v838 = vpack.c.b16 %v614, %v598
    %v839 = vpack.c.b16 %v615, %v599
    %v840 = vpack.c.b16 %v616, %v600
    %v841 = vpack.c.b16 %v617, %v601
    %v842 = vpack.c.b16 %v618, %v602
    %v843 = vpack.c.b16 %v619, %v603
    %v844 = vpack.c.b16 %v620, %v604
    %v845 = vpack.c.b16 %v621, %v605
    %v846 = vpack.c.b16 %v638, %v622
    %v847 = vpack.c.b16 %v639, %v623
    %v848 = vpack.c.b16 %v640, %v624
    %v849 = vpack.c.b16 %v641, %v625
    %v850 = vpack.c.b16 %v642, %v626
    %v851 = vpack.c.b16 %v643, %v627
    %v852 = vpack.c.b16 %v644, %v628
    %v853 = vpack.c.b16 %v645, %v629
    %v854 = vpack.c.b16 %v646, %v630
    %v855 = vpack.c.b16 %v647, %v631
    %v856 = vpack.c.b16 %v648, %v632
    %v857 = vpack.c.b16 %v649, %v633
    %v858 = vpack.c.b16 %v650, %v634
    %v859 = vpack.c.b16 %v651, %v635
    %v860 = vpack.c.b16 %v652, %v636
    %v861 = vpack.c.b16 %v653, %v637
    %v862 = vpack.c.b16 %v670, %v654
    %v863 = vpack.c.b16 %v671, %v655
    %v864 = vpack.c.b16 %v672, %v656
    %v865 = vpack.c.b16 %v673, %v657
    %v866 = vpack.c.b16 %v674, %v658
    %v867 = vpack.c.b16 %v675, %v659
    %v868 = vpack.c.b16 %v676, %v660
    %v869 = vpack.c.b16 %v677, %v661
    %v870 = vpack.c.b16 %v678, %v662
    %v871 = vpack.c.b16 %v679, %v663
    %v872 = vpack.c.b16 %v680, %v664
    %v873 = vpack.c.b16 %v681, %v665
    %v874 = vpack.c.b16 %v682, %v666
    %v875 = vpack.c.b16 %v683, %v667
    %v876 = vpack.c.b16 %v684, %v668
    %v877 = vpack.c.b16 %v685, %v669
    %v878 = vpack.c.b16 %v702, %v686
    %v879 = vpack.c.b16 %v703, %v687
    %v880 = vpack.c.b16 %v704, %v688
    %v881 = vpack.c.b16 %v705, %v689
    %v882 = vpack.c.b16 %v706, %v690
    %v883 = vpack.c.b16 %v707, %v691
    %v884 = vpack.c.b16 %v708, %v692
    %v885 = vpack.c.b16 %v709, %v693
    %v886 = vpack.c.b16 %v710, %v694
    %v887 = vpack.c.b16 %v711, %v695
    %v888 = vpack.c.b16 %v712, %v696
    %v889 = vpack.c.b16 %v713, %v697
    %v890 = vpack.c.b16 %v714, %v698
    %v891 = vpack.c.b16 %v715, %v699
    %v892 = vpack.c.b16 %v716, %v700
    %v893 = vpack.c.b16 %v717, %v701
    %v894 = vpack.c.b16 %v734, %v718
    %v895 = vpack.c.b16 %v735, %v719
    %v896 = vpack.c.b16 %v736, %v720
    %v897 = vpack.c.b16 %v737, %v721
    %v898 = vpack.c.b16 %v738, %v722
    %v899 = vpack.c.b16 %v739, %v723
    %v900 = vpack.c.b16 %v740, %v724
    %v901 = vpack.c.b16 %v741, %v725
    %v902 = vpack.c.b16 %v742, %v726
    %v903 = vpack.c.b16 %v743, %v727
    %v904 = vpack.c.b16 %v744, %v728
    %v905 = vpack.c.b16 %v745, %v729
    %v906 = vpack.c.b16 %v746, %v730
    %v907 = vpack.c.b16 %v747, %v731
    %v908 = vpack.c.b16 %v748, %v732
    %v909 = vpack.c.b16 %v749, %v733
    %v910 = vpack.c.b16 %v766, %v750
    %v911 = vpack.c.b16 %v767, %v751
    %v912 = vpack.c.b16 %v768, %v752
    %v913 = vpack.c.b16 %v769, %v753
    %v914 = vpack.c.b16 %v770, %v754
    %v915 = vpack.c.b16 %v771, %v755
    %v916 = vpack.c.b16 %v772, %v756
    %v917 = vpack.c.b16 %v773, %v757
    %v918 = vpack.c.b16 %v774, %v758
    %v919 = vpack.c.b16 %v775, %v759
    %v920 = vpack.c.b16 %v776, %v760
    %v921 = vpack.c.b16 %v777, %v761
    %v922 = vpack.c.b16 %v778, %v762
    %v923 = vpack.c.b16 %v779, %v763
    %v924 = vpack.c.b16 %v780, %v764
    %v925 = vpack.c.b16 %v781, %v765
    %v926 = vpack.c.b16 %v798, %v782
    %v927 = vpack.c.b16 %v799, %v783
    %v928 = vpack.c.b16 %v800, %v784
    %v929 = vpack.c.b16 %v801, %v785
    %v930 = vpack.c.b16 %v802, %v786
    %v931 = vpack.c.b16 %v803, %v787
    %v932 = vpack.c.b16 %v804, %v788
    %v933 = vpack.c.b16 %v805, %v789
    %v934 = vpack.c.b16 %v806, %v790
    %v935 = vpack.c.b16 %v807, %v791
    %v936 = vpack.c.b16 %v808, %v792
    %v937 = vpack.c.b16 %v809, %v793
    %v938 = vpack.c.b16 %v810, %v794
    %v939 = vpack.c.b16 %v811, %v795
    %v940 = vpack.c.b16 %v812, %v796
    %v941 = vpack.c.b16 %v813, %v797
    %1070 = vmatprep.subr.bf16.mxu0 %v815
    %1071 = vmatpush1.bf16.msra.mxu0 %v814
    %1072 = vmatprep.subr.bf16.mxu0 %v831
    %1073 = vmatpush1.bf16.msra.mxu0 %v830
    %1074 = vmatprep.subr.bf16.mxu0 %v847
    %1075 = vmatpush1.bf16.msra.mxu0 %v846
    %1076 = vmatprep.subr.bf16.mxu0 %v863
    %1077 = vmatpush1.bf16.msra.mxu0 %v862
    %1078 = vmatprep.subr.bf16.mxu0 %v879
    %1079 = vmatpush1.bf16.msra.mxu0 %v878
    %1080 = vmatprep.subr.bf16.mxu0 %v895
    %1081 = vmatpush1.bf16.msra.mxu0 %v894
    %1082 = vmatprep.subr.bf16.mxu0 %v911
    %1083 = vmatpush1.bf16.msra.mxu0 %v910
    %1084 = vmatprep.subr.bf16.mxu0 %v927
    %1085 = vmatpush1.bf16.msra.mxu0 %v926
    %1086 = vmatprep.subr.bf16.mxu0 0
    %1087 = vmatpush1.bf16.msra.mxu0 0
    %1088 = vmatprep.subr.bf16.mxu0 0
    %1089 = vmatpush1.bf16.msra.mxu0 0
    %1090 = vmatprep.subr.bf16.mxu0 0
    %1091 = vmatpush1.bf16.msra.mxu0 0
    %1092 = vmatprep.subr.bf16.mxu0 0
    %1093 = vmatpush1.bf16.msra.mxu0 0
    %1094 = vmatprep.subr.bf16.mxu0 0
    %1095 = vmatpush1.bf16.msra.mxu0 0
    %1096 = vmatprep.subr.bf16.mxu0 0
    %1097 = vmatpush1.bf16.msra.mxu0 0
    %1098 = vmatprep.subr.bf16.mxu0 0
    %1099 = vmatpush1.bf16.msra.mxu0 0
    %1100 = vmatprep.subr.bf16.mxu0 0
    %1101 = vmatpush1.bf16.msra.mxu0 0
    %1102 = vmatprep.mubr.bf16.mxu0 0
    %1103 = vmatmul.mubr.bf16.gmra.mrb[0].mxu0 %v428
    %v1104 = vpop.f32.mrb[0].mxu0
    %v1105 = vadd.f32 %v347, %v1104
    %v1106 = vpop.f32.mrb[0].mxu0
    %v1107 = vadd.f32 %v351, %v1106
    %v1108 = vpop.f32.mrb[0].mxu0
    %v1109 = vadd.f32 %v347, %v1108
    %v1110 = vpop.f32.mrb[0].mxu0
    %v1111 = vadd.f32 %v351, %v1110
    %1112 = vdwg.mxu0
    %1113 = vmatprep.subr.bf16.mxu0 %v817
    %1114 = vmatpush1.bf16.msra.mxu0 %v816
    %1115 = vmatprep.subr.bf16.mxu0 %v833
    %1116 = vmatpush1.bf16.msra.mxu0 %v832
    %1117 = vmatprep.subr.bf16.mxu0 %v849
    %1118 = vmatpush1.bf16.msra.mxu0 %v848
    %1119 = vmatprep.subr.bf16.mxu0 %v865
    %1120 = vmatpush1.bf16.msra.mxu0 %v864
    %1121 = vmatprep.subr.bf16.mxu0 %v881
    %1122 = vmatpush1.bf16.msra.mxu0 %v880
    %1123 = vmatprep.subr.bf16.mxu0 %v897
    %1124 = vmatpush1.bf16.msra.mxu0 %v896
    %1125 = vmatprep.subr.bf16.mxu0 %v913
    %1126 = vmatpush1.bf16.msra.mxu0 %v912
    %1127 = vmatprep.subr.bf16.mxu0 %v929
    %1128 = vmatpush1.bf16.msra.mxu0 %v928
    %1129 = vmatprep.subr.bf16.mxu0 0
    %1130 = vmatpush1.bf16.msra.mxu0 0
    %1131 = vmatprep.subr.bf16.mxu0 0
    %1132 = vmatpush1.bf16.msra.mxu0 0
    %1133 = vmatprep.subr.bf16.mxu0 0
    %1134 = vmatpush1.bf16.msra.mxu0 0
    %1135 = vmatprep.subr.bf16.mxu0 0
    %1136 = vmatpush1.bf16.msra.mxu0 0
    %1137 = vmatprep.subr.bf16.mxu0 0
    %1138 = vmatpush1.bf16.msra.mxu0 0
    %1139 = vmatprep.subr.bf16.mxu0 0
    %1140 = vmatpush1.bf16.msra.mxu0 0
    %1141 = vmatprep.subr.bf16.mxu0 0
    %1142 = vmatpush1.bf16.msra.mxu0 0
    %1143 = vmatprep.subr.bf16.mxu0 0
    %1144 = vmatpush1.bf16.msra.mxu0 0
    %1145 = vmatprep.mubr.bf16.mxu0 0
    %1146 = vmatmul.mubr.bf16.gmra.mrb[0].mxu0 %v428
    %v1147 = vpop.f32.mrb[0].mxu0
    %v1148 = vadd.f32 %v355, %v1147
    %v1149 = vpop.f32.mrb[0].mxu0
    %v1150 = vadd.f32 %v359, %v1149
    %v1151 = vpop.f32.mrb[0].mxu0
    %v1152 = vadd.f32 %v355, %v1151
    %v1153 = vpop.f32.mrb[0].mxu0
    %v1154 = vadd.f32 %v359, %v1153
    %1155 = vdwg.mxu0
    %1156 = vmatprep.subr.bf16.mxu0 %v819
    %1157 = vmatpush1.bf16.msra.mxu0 %v818
    %1158 = vmatprep.subr.bf16.mxu0 %v835
    %1159 = vmatpush1.bf16.msra.mxu0 %v834
    %1160 = vmatprep.subr.bf16.mxu0 %v851
    %1161 = vmatpush1.bf16.msra.mxu0 %v850
    %1162 = vmatprep.subr.bf16.mxu0 %v867
    %1163 = vmatpush1.bf16.msra.mxu0 %v866
    %1164 = vmatprep.subr.bf16.mxu0 %v883
    %1165 = vmatpush1.bf16.msra.mxu0 %v882
    %1166 = vmatprep.subr.bf16.mxu0 %v899
    %1167 = vmatpush1.bf16.msra.mxu0 %v898
    %1168 = vmatprep.subr.bf16.mxu0 %v915
    %1169 = vmatpush1.bf16.msra.mxu0 %v914
    %1170 = vmatprep.subr.bf16.mxu0 %v931
    %1171 = vmatpush1.bf16.msra.mxu0 %v930
    %1172 = vmatprep.subr.bf16.mxu0 0
    %1173 = vmatpush1.bf16.msra.mxu0 0
    %1174 = vmatprep.subr.bf16.mxu0 0
    %1175 = vmatpush1.bf16.msra.mxu0 0
    %1176 = vmatprep.subr.bf16.mxu0 0
    %1177 = vmatpush1.bf16.msra.mxu0 0
    %1178 = vmatprep.subr.bf16.mxu0 0
    %1179 = vmatpush1.bf16.msra.mxu0 0
    %1180 = vmatprep.subr.bf16.mxu0 0
    %1181 = vmatpush1.bf16.msra.mxu0 0
    %1182 = vmatprep.subr.bf16.mxu0 0
    %1183 = vmatpush1.bf16.msra.mxu0 0
    %1184 = vmatprep.subr.bf16.mxu0 0
    %1185 = vmatpush1.bf16.msra.mxu0 0
    %1186 = vmatprep.subr.bf16.mxu0 0
    %1187 = vmatpush1.bf16.msra.mxu0 0
    %1188 = vmatprep.mubr.bf16.mxu0 0
    %1189 = vmatmul.mubr.bf16.gmra.mrb[0].mxu0 %v428
    %v1190 = vpop.f32.mrb[0].mxu0
    %v1191 = vadd.f32 %v363, %v1190
    %v1192 = vpop.f32.mrb[0].mxu0
    %v1193 = vadd.f32 %v367, %v1192
    %v1194 = vpop.f32.mrb[0].mxu0
    %v1195 = vadd.f32 %v363, %v1194
    %v1196 = vpop.f32.mrb[0].mxu0
    %v1197 = vadd.f32 %v367, %v1196
    %1198 = vdwg.mxu0
    %1199 = vmatprep.subr.bf16.mxu0 %v821
    %1200 = vmatpush1.bf16.msra.mxu0 %v820
    %1201 = vmatprep.subr.bf16.mxu0 %v837
    %1202 = vmatpush1.bf16.msra.mxu0 %v836
    %1203 = vmatprep.subr.bf16.mxu0 %v853
    %1204 = vmatpush1.bf16.msra.mxu0 %v852
    %1205 = vmatprep.subr.bf16.mxu0 %v869
    %1206 = vmatpush1.bf16.msra.mxu0 %v868
    %1207 = vmatprep.subr.bf16.mxu0 %v885
    %1208 = vmatpush1.bf16.msra.mxu0 %v884
    %1209 = vmatprep.subr.bf16.mxu0 %v901
    %1210 = vmatpush1.bf16.msra.mxu0 %v900
    %1211 = vmatprep.subr.bf16.mxu0 %v917
    %1212 = vmatpush1.bf16.msra.mxu0 %v916
    %1213 = vmatprep.subr.bf16.mxu0 %v933
    %1214 = vmatpush1.bf16.msra.mxu0 %v932
    %1215 = vmatprep.subr.bf16.mxu0 0
    %1216 = vmatpush1.bf16.msra.mxu0 0
    %1217 = vmatprep.subr.bf16.mxu0 0
    %1218 = vmatpush1.bf16.msra.mxu0 0
    %1219 = vmatprep.subr.bf16.mxu0 0
    %1220 = vmatpush1.bf16.msra.mxu0 0
    %1221 = vmatprep.subr.bf16.mxu0 0
    %1222 = vmatpush1.bf16.msra.mxu0 0
    %1223 = vmatprep.subr.bf16.mxu0 0
    %1224 = vmatpush1.bf16.msra.mxu0 0
    %1225 = vmatprep.subr.bf16.mxu0 0
    %1226 = vmatpush1.bf16.msra.mxu0 0
    %1227 = vmatprep.subr.bf16.mxu0 0
    %1228 = vmatpush1.bf16.msra.mxu0 0
    %1229 = vmatprep.subr.bf16.mxu0 0
    %1230 = vmatpush1.bf16.msra.mxu0 0
    %1231 = vmatprep.mubr.bf16.mxu0 0
    %1232 = vmatmul.mubr.bf16.gmra.mrb[0].mxu0 %v428
    %v1233 = vpop.f32.mrb[0].mxu0
    %v1234 = vadd.f32 %v371, %v1233
    %v1235 = vpop.f32.mrb[0].mxu0
    %v1236 = vadd.f32 %v375, %v1235
    %v1237 = vpop.f32.mrb[0].mxu0
    %v1238 = vadd.f32 %v371, %v1237
    %v1239 = vpop.f32.mrb[0].mxu0
    %v1240 = vadd.f32 %v375, %v1239
    %1241 = vdwg.mxu0
    %1242 = vmatprep.subr.bf16.mxu0 %v823
    %1243 = vmatpush1.bf16.msra.mxu0 %v822
    %1244 = vmatprep.subr.bf16.mxu0 %v839
    %1245 = vmatpush1.bf16.msra.mxu0 %v838
    %1246 = vmatprep.subr.bf16.mxu0 %v855
    %1247 = vmatpush1.bf16.msra.mxu0 %v854
    %1248 = vmatprep.subr.bf16.mxu0 %v871
    %1249 = vmatpush1.bf16.msra.mxu0 %v870
    %1250 = vmatprep.subr.bf16.mxu0 %v887
    %1251 = vmatpush1.bf16.msra.mxu0 %v886
    %1252 = vmatprep.subr.bf16.mxu0 %v903
    %1253 = vmatpush1.bf16.msra.mxu0 %v902
    %1254 = vmatprep.subr.bf16.mxu0 %v919
    %1255 = vmatpush1.bf16.msra.mxu0 %v918
    %1256 = vmatprep.subr.bf16.mxu0 %v935
    %1257 = vmatpush1.bf16.msra.mxu0 %v934
    %1258 = vmatprep.subr.bf16.mxu0 0
    %1259 = vmatpush1.bf16.msra.mxu0 0
    %1260 = vmatprep.subr.bf16.mxu0 0
    %1261 = vmatpush1.bf16.msra.mxu0 0
    %1262 = vmatprep.subr.bf16.mxu0 0
    %1263 = vmatpush1.bf16.msra.mxu0 0
    %1264 = vmatprep.subr.bf16.mxu0 0
    %1265 = vmatpush1.bf16.msra.mxu0 0
    %1266 = vmatprep.subr.bf16.mxu0 0
    %1267 = vmatpush1.bf16.msra.mxu0 0
    %1268 = vmatprep.subr.bf16.mxu0 0
    %1269 = vmatpush1.bf16.msra.mxu0 0
    %1270 = vmatprep.subr.bf16.mxu0 0
    %1271 = vmatpush1.bf16.msra.mxu0 0
    %1272 = vmatprep.subr.bf16.mxu0 0
    %1273 = vmatpush1.bf16.msra.mxu0 0
    %1274 = vmatprep.mubr.bf16.mxu0 0
    %1275 = vmatmul.mubr.bf16.gmra.mrb[0].mxu0 %v428
    %v1276 = vpop.f32.mrb[0].mxu0
    %v1277 = vadd.f32 %v379, %v1276
    %v1278 = vpop.f32.mrb[0].mxu0
    %v1279 = vadd.f32 %v383, %v1278
    %v1280 = vpop.f32.mrb[0].mxu0
    %v1281 = vadd.f32 %v379, %v1280
    %v1282 = vpop.f32.mrb[0].mxu0
    %v1283 = vadd.f32 %v383, %v1282
    %1284 = vdwg.mxu0
    %1285 = vmatprep.subr.bf16.mxu0 %v825
    %1286 = vmatpush1.bf16.msra.mxu0 %v824
    %1287 = vmatprep.subr.bf16.mxu0 %v841
    %1288 = vmatpush1.bf16.msra.mxu0 %v840
    %1289 = vmatprep.subr.bf16.mxu0 %v857
    %1290 = vmatpush1.bf16.msra.mxu0 %v856
    %1291 = vmatprep.subr.bf16.mxu0 %v873
    %1292 = vmatpush1.bf16.msra.mxu0 %v872
    %1293 = vmatprep.subr.bf16.mxu0 %v889
    %1294 = vmatpush1.bf16.msra.mxu0 %v888
    %1295 = vmatprep.subr.bf16.mxu0 %v905
    %1296 = vmatpush1.bf16.msra.mxu0 %v904
    %1297 = vmatprep.subr.bf16.mxu0 %v921
    %1298 = vmatpush1.bf16.msra.mxu0 %v920
    %1299 = vmatprep.subr.bf16.mxu0 %v937
    %1300 = vmatpush1.bf16.msra.mxu0 %v936
    %1301 = vmatprep.subr.bf16.mxu0 0
    %1302 = vmatpush1.bf16.msra.mxu0 0
    %1303 = vmatprep.subr.bf16.mxu0 0
    %1304 = vmatpush1.bf16.msra.mxu0 0
    %1305 = vmatprep.subr.bf16.mxu0 0
    %1306 = vmatpush1.bf16.msra.mxu0 0
    %1307 = vmatprep.subr.bf16.mxu0 0
    %1308 = vmatpush1.bf16.msra.mxu0 0
    %1309 = vmatprep.subr.bf16.mxu0 0
    %1310 = vmatpush1.bf16.msra.mxu0 0
    %1311 = vmatprep.subr.bf16.mxu0 0
    %1312 = vmatpush1.bf16.msra.mxu0 0
    %1313 = vmatprep.subr.bf16.mxu0 0
    %1314 = vmatpush1.bf16.msra.mxu0 0
    %1315 = vmatprep.subr.bf16.mxu0 0
    %1316 = vmatpush1.bf16.msra.mxu0 0
    %1317 = vmatprep.mubr.bf16.mxu0 0
    %1318 = vmatmul.mubr.bf16.gmra.mrb[0].mxu0 %v428
    %v1319 = vpop.f32.mrb[0].mxu0
    %v1320 = vadd.f32 %v387, %v1319
    %v1321 = vpop.f32.mrb[0].mxu0
    %v1322 = vadd.f32 %v391, %v1321
    %v1323 = vpop.f32.mrb[0].mxu0
    %v1324 = vadd.f32 %v387, %v1323
    %v1325 = vpop.f32.mrb[0].mxu0
    %v1326 = vadd.f32 %v391, %v1325
    %1327 = vdwg.mxu0
    %1328 = vmatprep.subr.bf16.mxu0 %v827
    %1329 = vmatpush1.bf16.msra.mxu0 %v826
    %1330 = vmatprep.subr.bf16.mxu0 %v843
    %1331 = vmatpush1.bf16.msra.mxu0 %v842
    %1332 = vmatprep.subr.bf16.mxu0 %v859
    %1333 = vmatpush1.bf16.msra.mxu0 %v858
    %1334 = vmatprep.subr.bf16.mxu0 %v875
    %1335 = vmatpush1.bf16.msra.mxu0 %v874
    %1336 = vmatprep.subr.bf16.mxu0 %v891
    %1337 = vmatpush1.bf16.msra.mxu0 %v890
    %1338 = vmatprep.subr.bf16.mxu0 %v907
    %1339 = vmatpush1.bf16.msra.mxu0 %v906
    %1340 = vmatprep.subr.bf16.mxu0 %v923
    %1341 = vmatpush1.bf16.msra.mxu0 %v922
    %1342 = vmatprep.subr.bf16.mxu0 %v939
    %1343 = vmatpush1.bf16.msra.mxu0 %v938
    %1344 = vmatprep.subr.bf16.mxu0 0
    %1345 = vmatpush1.bf16.msra.mxu0 0
    %1346 = vmatprep.subr.bf16.mxu0 0
    %1347 = vmatpush1.bf16.msra.mxu0 0
    %1348 = vmatprep.subr.bf16.mxu0 0
    %1349 = vmatpush1.bf16.msra.mxu0 0
    %1350 = vmatprep.subr.bf16.mxu0 0
    %1351 = vmatpush1.bf16.msra.mxu0 0
    %1352 = vmatprep.subr.bf16.mxu0 0
    %1353 = vmatpush1.bf16.msra.mxu0 0
    %1354 = vmatprep.subr.bf16.mxu0 0
    %1355 = vmatpush1.bf16.msra.mxu0 0
    %1356 = vmatprep.subr.bf16.mxu0 0
    %1357 = vmatpush1.bf16.msra.mxu0 0
    %1358 = vmatprep.subr.bf16.mxu0 0
    %1359 = vmatpush1.bf16.msra.mxu0 0
    %1360 = vmatprep.mubr.bf16.mxu0 0
    %1361 = vmatmul.mubr.bf16.gmra.mrb[0].mxu0 %v428
    %v1362 = vpop.f32.mrb[0].mxu0
    %v1363 = vadd.f32 %v395, %v1362
    %v1364 = vpop.f32.mrb[0].mxu0
    %v1365 = vadd.f32 %v399, %v1364
    %v1366 = vpop.f32.mrb[0].mxu0
    %v1367 = vadd.f32 %v395, %v1366
    %v1368 = vpop.f32.mrb[0].mxu0
    %v1369 = vadd.f32 %v399, %v1368
    %1370 = vdwg.mxu0
    %1371 = vmatprep.subr.bf16.mxu0 %v829
    %1372 = vmatpush1.bf16.msra.mxu0 %v828
    %1373 = vmatprep.subr.bf16.mxu0 %v845
    %1374 = vmatpush1.bf16.msra.mxu0 %v844
    %1375 = vmatprep.subr.bf16.mxu0 %v861
    %1376 = vmatpush1.bf16.msra.mxu0 %v860
    %1377 = vmatprep.subr.bf16.mxu0 %v877
    %1378 = vmatpush1.bf16.msra.mxu0 %v876
    %1379 = vmatprep.subr.bf16.mxu0 %v893
    %1380 = vmatpush1.bf16.msra.mxu0 %v892
    %1381 = vmatprep.subr.bf16.mxu0 %v909
    %1382 = vmatpush1.bf16.msra.mxu0 %v908
    %1383 = vmatprep.subr.bf16.mxu0 %v925
    %1384 = vmatpush1.bf16.msra.mxu0 %v924
    %1385 = vmatprep.subr.bf16.mxu0 %v941
    %1386 = vmatpush1.bf16.msra.mxu0 %v940
    %1387 = vmatprep.subr.bf16.mxu0 0
    %1388 = vmatpush1.bf16.msra.mxu0 0
    %1389 = vmatprep.subr.bf16.mxu0 0
    %1390 = vmatpush1.bf16.msra.mxu0 0
    %1391 = vmatprep.subr.bf16.mxu0 0
    %1392 = vmatpush1.bf16.msra.mxu0 0
    %1393 = vmatprep.subr.bf16.mxu0 0
    %1394 = vmatpush1.bf16.msra.mxu0 0
    %1395 = vmatprep.subr.bf16.mxu0 0
    %1396 = vmatpush1.bf16.msra.mxu0 0
    %1397 = vmatprep.subr.bf16.mxu0 0
    %1398 = vmatpush1.bf16.msra.mxu0 0
    %1399 = vmatprep.subr.bf16.mxu0 0
    %1400 = vmatpush1.bf16.msra.mxu0 0
    %1401 = vmatprep.subr.bf16.mxu0 0
    %1402 = vmatpush1.bf16.msra.mxu0 0
    %1403 = vmatprep.mubr.bf16.mxu0 0
    %1404 = vmatmul.mubr.bf16.gmra.mrb[0].mxu0 %v428
    %v1405 = vpop.f32.mrb[0].mxu0
    %v1406 = vadd.f32 %v403, %v1405
    %v1407 = vpop.f32.mrb[0].mxu0
    %v1408 = vadd.f32 %v407, %v1407
    %v1409 = vpop.f32.mrb[0].mxu0
    %v1410 = vadd.f32 %v403, %v1409
    %v1411 = vpop.f32.mrb[0].mxu0
    %v1412 = vadd.f32 %v407, %v1411
    %1413 = vdwg.mxu0
    %v1414 = vld [vmem:[#allocation9] sm:$0xff]
    %v1415 = vld [vmem:[#allocation9 + $0x8] sm:$0xff]
    %v1416 = vld [vmem:[#allocation11] sm:$0xff]
    %v1417 = vld [vmem:[#allocation11 + $0x8] sm:$0xff]
    %v1418 = vadd.f32 %v1105, %v1107
    %v1419 = vadd.f32 %v1418, %v1148
    %v1420 = vadd.f32 %v1419, %v1150
    %v1421 = vadd.f32 %v1420, %v1191
    %v1422 = vadd.f32 %v1421, %v1193
    %v1423 = vadd.f32 %v1422, %v1234
    %v1424 = vadd.f32 %v1423, %v1236
    %v1425 = vadd.f32 %v1424, %v1277
    %v1426 = vadd.f32 %v1425, %v1279
    %v1427 = vadd.f32 %v1426, %v1320
    %v1428 = vadd.f32 %v1427, %v1322
    %v1429 = vadd.f32 %v1428, %v1363
    %v1430 = vadd.f32 %v1429, %v1365
    %v1431 = vadd.f32 %v1430, %v1406
    %v1432 = vadd.f32 %v1431, %v1408
    %1433 = vadd.xlane.f32.xlu0 %v1432
    %v1434 = vpop.xlane.xlu0 %1433
    %v1435 = vadd.f32 %v1109, %v1111
    %v1436 = vadd.f32 %v1435, %v1152
    %v1437 = vadd.f32 %v1436, %v1154
    %v1438 = vadd.f32 %v1437, %v1195
    %v1439 = vadd.f32 %v1438, %v1197
    %v1440 = vadd.f32 %v1439, %v1238
    %v1441 = vadd.f32 %v1440, %v1240
    %v1442 = vadd.f32 %v1441, %v1281
    %v1443 = vadd.f32 %v1442, %v1283
    %v1444 = vadd.f32 %v1443, %v1324
    %v1445 = vadd.f32 %v1444, %v1326
    %v1446 = vadd.f32 %v1445, %v1367
    %v1447 = vadd.f32 %v1446, %v1369
    %v1448 = vadd.f32 %v1447, %v1410
    %v1449 = vadd.f32 %v1448, %v1412
    %1450 = vadd.xlane.f32.xlu0 %v1449
    %v1451 = vpop.xlane.xlu0 %1450
    %v1452 = vrcp.pop 2048.0
    %v1453 = vmul.f32 %v1434, %v1452
    %v1454 = vmul.f32 %v1451, %v1452
    %v1455 = vsub.f32 %v1105, %v1453
    %v1456 = vsub.f32 %v1107, %v1453
    %v1457 = vsub.f32 %v1148, %v1453
    %v1458 = vsub.f32 %v1150, %v1453
    %v1459 = vsub.f32 %v1191, %v1453
    %v1460 = vsub.f32 %v1193, %v1453
    %v1461 = vsub.f32 %v1234, %v1453
    %v1462 = vsub.f32 %v1236, %v1453
    %v1463 = vsub.f32 %v1277, %v1453
    %v1464 = vsub.f32 %v1279, %v1453
    %v1465 = vsub.f32 %v1320, %v1453
    %v1466 = vsub.f32 %v1322, %v1453
    %v1467 = vsub.f32 %v1363, %v1453
    %v1468 = vsub.f32 %v1365, %v1453
    %v1469 = vsub.f32 %v1406, %v1453
    %v1470 = vsub.f32 %v1408, %v1453
    %v1471 = vsub.f32 %v1109, %v1454
    %v1472 = vsub.f32 %v1111, %v1454
    %v1473 = vsub.f32 %v1152, %v1454
    %v1474 = vsub.f32 %v1154, %v1454
    %v1475 = vsub.f32 %v1195, %v1454
    %v1476 = vsub.f32 %v1197, %v1454
    %v1477 = vsub.f32 %v1238, %v1454
    %v1478 = vsub.f32 %v1240, %v1454
    %v1479 = vsub.f32 %v1281, %v1454
    %v1480 = vsub.f32 %v1283, %v1454
    %v1481 = vsub.f32 %v1324, %v1454
    %v1482 = vsub.f32 %v1326, %v1454
    %v1483 = vsub.f32 %v1367, %v1454
    %v1484 = vsub.f32 %v1369, %v1454
    %v1485 = vsub.f32 %v1410, %v1454
    %v1486 = vsub.f32 %v1412, %v1454
    %v1487 = vmul.f32 %v1455, %v1455
    %v1488 = vmul.f32 %v1456, %v1456
    %v1489 = vmul.f32 %v1457, %v1457
    %v1490 = vmul.f32 %v1458, %v1458
    %v1491 = vmul.f32 %v1459, %v1459
    %v1492 = vmul.f32 %v1460, %v1460
    %v1493 = vmul.f32 %v1461, %v1461
    %v1494 = vmul.f32 %v1462, %v1462
    %v1495 = vmul.f32 %v1463, %v1463
    %v1496 = vmul.f32 %v1464, %v1464
    %v1497 = vmul.f32 %v1465, %v1465
    %v1498 = vmul.f32 %v1466, %v1466
    %v1499 = vmul.f32 %v1467, %v1467
    %v1500 = vmul.f32 %v1468, %v1468
    %v1501 = vmul.f32 %v1469, %v1469
    %v1502 = vmul.f32 %v1470, %v1470
    %v1503 = vmul.f32 %v1471, %v1471
    %v1504 = vmul.f32 %v1472, %v1472
    %v1505 = vmul.f32 %v1473, %v1473
    %v1506 = vmul.f32 %v1474, %v1474
    %v1507 = vmul.f32 %v1475, %v1475
    %v1508 = vmul.f32 %v1476, %v1476
    %v1509 = vmul.f32 %v1477, %v1477
    %v1510 = vmul.f32 %v1478, %v1478
    %v1511 = vmul.f32 %v1479, %v1479
    %v1512 = vmul.f32 %v1480, %v1480
    %v1513 = vmul.f32 %v1481, %v1481
    %v1514 = vmul.f32 %v1482, %v1482
    %v1515 = vmul.f32 %v1483, %v1483
    %v1516 = vmul.f32 %v1484, %v1484
    %v1517 = vmul.f32 %v1485, %v1485
    %v1518 = vmul.f32 %v1486, %v1486
    %v1519 = vadd.f32 %v1487, %v1488
    %v1520 = vadd.f32 %v1519, %v1489
    %v1521 = vadd.f32 %v1520, %v1490
    %v1522 = vadd.f32 %v1521, %v1491
    %v1523 = vadd.f32 %v1522, %v1492
    %v1524 = vadd.f32 %v1523, %v1493
    %v1525 = vadd.f32 %v1524, %v1494
    %v1526 = vadd.f32 %v1525, %v1495
    %v1527 = vadd.f32 %v1526, %v1496
    %v1528 = vadd.f32 %v1527, %v1497
    %v1529 = vadd.f32 %v1528, %v1498
    %v1530 = vadd.f32 %v1529, %v1499
    %v1531 = vadd.f32 %v1530, %v1500
    %v1532 = vadd.f32 %v1531, %v1501
    %v1533 = vadd.f32 %v1532, %v1502
    %1534 = vadd.xlane.f32.xlu0 %v1533
    %v1535 = vpop.xlane.xlu0 %1534
    %v1536 = vadd.f32 %v1503, %v1504
    %v1537 = vadd.f32 %v1536, %v1505
    %v1538 = vadd.f32 %v1537, %v1506
    %v1539 = vadd.f32 %v1538, %v1507
    %v1540 = vadd.f32 %v1539, %v1508
    %v1541 = vadd.f32 %v1540, %v1509
    %v1542 = vadd.f32 %v1541, %v1510
    %v1543 = vadd.f32 %v1542, %v1511
    %v1544 = vadd.f32 %v1543, %v1512
    %v1545 = vadd.f32 %v1544, %v1513
    %v1546 = vadd.f32 %v1545, %v1514
    %v1547 = vadd.f32 %v1546, %v1515
    %v1548 = vadd.f32 %v1547, %v1516
    %v1549 = vadd.f32 %v1548, %v1517
    %v1550 = vadd.f32 %v1549, %v1518
    %1551 = vadd.xlane.f32.xlu0 %v1550
    %v1552 = vpop.xlane.xlu0 %1551
    %v1553 = vmul.f32 %v1535, %v1452
    %v1554 = vmul.f32 %v1552, %v1452
    %v1555 = vadd.f32 %v1553, 1e-05
    %v1556 = vadd.f32 %v1554, 1e-05
    %v1557 = vrsqrt.pop %v1555
    %v1558 = vrsqrt.pop %v1556
    %v1559 = vmul.f32 %v1455, %v1557
    %v1560 = vmul.f32 %v1456, %v1557
    %v1561 = vmul.f32 %v1457, %v1557
    %v1562 = vmul.f32 %v1458, %v1557
    %v1563 = vmul.f32 %v1459, %v1557
    %v1564 = vmul.f32 %v1460, %v1557
    %v1565 = vmul.f32 %v1461, %v1557
    %v1566 = vmul.f32 %v1462, %v1557
    %v1567 = vmul.f32 %v1463, %v1557
    %v1568 = vmul.f32 %v1464, %v1557
    %v1569 = vmul.f32 %v1465, %v1557
    %v1570 = vmul.f32 %v1466, %v1557
    %v1571 = vmul.f32 %v1467, %v1557
    %v1572 = vmul.f32 %v1468, %v1557
    %v1573 = vmul.f32 %v1469, %v1557
    %v1574 = vmul.f32 %v1470, %v1557
    %v1575 = vmul.f32 %v1471, %v1558
    %v1576 = vmul.f32 %v1472, %v1558
    %v1577 = vmul.f32 %v1473, %v1558
    %v1578 = vmul.f32 %v1474, %v1558
    %v1579 = vmul.f32 %v1475, %v1558
    %v1580 = vmul.f32 %v1476, %v1558
    %v1581 = vmul.f32 %v1477, %v1558
    %v1582 = vmul.f32 %v1478, %v1558
    %v1583 = vmul.f32 %v1479, %v1558
    %v1584 = vmul.f32 %v1480, %v1558
    %v1585 = vmul.f32 %v1481, %v1558
    %v1586 = vmul.f32 %v1482, %v1558
    %v1587 = vmul.f32 %v1483, %v1558
    %v1588 = vmul.f32 %v1484, %v1558
    %v1589 = vmul.f32 %v1485, %v1558
    %v1590 = vmul.f32 %v1486, %v1558
    %v1593 = vlaneseq
    %v1594 = vshrl.u32 %v1593, 7
    %v1595 = vsub.s32 0, %v1594
    %v1596 = vrot.slane %v1414, %v1595
    %v1597 = vlaneseq
    %v1598 = vshrl.u32 %v1597, 7
    %v1599 = vsub.s32 1, %v1598
    %v1600 = vrot.slane %v1414, %v1599
    %v1601 = vlaneseq
    %v1602 = vshrl.u32 %v1601, 7
    %v1603 = vsub.s32 2, %v1602
    %v1604 = vrot.slane %v1414, %v1603
    %v1605 = vlaneseq
    %v1606 = vshrl.u32 %v1605, 7
    %v1607 = vsub.s32 3, %v1606
    %v1608 = vrot.slane %v1414, %v1607
    %v1609 = vlaneseq
    %v1610 = vshrl.u32 %v1609, 7
    %v1611 = vsub.s32 4, %v1610
    %v1612 = vrot.slane %v1414, %v1611
    %v1613 = vlaneseq
    %v1614 = vshrl.u32 %v1613, 7
    %v1615 = vsub.s32 5, %v1614
    %v1616 = vrot.slane %v1414, %v1615
    %v1617 = vlaneseq
    %v1618 = vshrl.u32 %v1617, 7
    %v1619 = vsub.s32 6, %v1618
    %v1620 = vrot.slane %v1414, %v1619
    %v1621 = vlaneseq
    %v1622 = vshrl.u32 %v1621, 7
    %v1623 = vsub.s32 7, %v1622
    %v1624 = vrot.slane %v1414, %v1623
    %v1625 = vlaneseq
    %v1626 = vshrl.u32 %v1625, 7
    %v1627 = vsub.s32 0, %v1626
    %v1628 = vrot.slane %v1415, %v1627
    %v1629 = vlaneseq
    %v1630 = vshrl.u32 %v1629, 7
    %v1631 = vsub.s32 1, %v1630
    %v1632 = vrot.slane %v1415, %v1631
    %v1633 = vlaneseq
    %v1634 = vshrl.u32 %v1633, 7
    %v1635 = vsub.s32 2, %v1634
    %v1636 = vrot.slane %v1415, %v1635
    %v1637 = vlaneseq
    %v1638 = vshrl.u32 %v1637, 7
    %v1639 = vsub.s32 3, %v1638
    %v1640 = vrot.slane %v1415, %v1639
    %v1641 = vlaneseq
    %v1642 = vshrl.u32 %v1641, 7
    %v1643 = vsub.s32 4, %v1642
    %v1644 = vrot.slane %v1415, %v1643
    %v1645 = vlaneseq
    %v1646 = vshrl.u32 %v1645, 7
    %v1647 = vsub.s32 5, %v1646
    %v1648 = vrot.slane %v1415, %v1647
    %v1649 = vlaneseq
    %v1650 = vshrl.u32 %v1649, 7
    %v1651 = vsub.s32 6, %v1650
    %v1652 = vrot.slane %v1415, %v1651
    %v1653 = vlaneseq
    %v1654 = vshrl.u32 %v1653, 7
    %v1655 = vsub.s32 7, %v1654
    %v1656 = vrot.slane %v1415, %v1655
    %v1673 = vmul.f32 %v1559, %v1596
    %v1674 = vmul.f32 %v1560, %v1600
    %v1675 = vmul.f32 %v1561, %v1604
    %v1676 = vmul.f32 %v1562, %v1608
    %v1677 = vmul.f32 %v1563, %v1612
    %v1678 = vmul.f32 %v1564, %v1616
    %v1679 = vmul.f32 %v1565, %v1620
    %v1680 = vmul.f32 %v1566, %v1624
    %v1681 = vmul.f32 %v1567, %v1628
    %v1682 = vmul.f32 %v1568, %v1632
    %v1683 = vmul.f32 %v1569, %v1636
    %v1684 = vmul.f32 %v1570, %v1640
    %v1685 = vmul.f32 %v1571, %v1644
    %v1686 = vmul.f32 %v1572, %v1648
    %v1687 = vmul.f32 %v1573, %v1652
    %v1688 = vmul.f32 %v1574, %v1656
    %v1689 = vmul.f32 %v1575, %v1596
    %v1690 = vmul.f32 %v1576, %v1600
    %v1691 = vmul.f32 %v1577, %v1604
    %v1692 = vmul.f32 %v1578, %v1608
    %v1693 = vmul.f32 %v1579, %v1612
    %v1694 = vmul.f32 %v1580, %v1616
    %v1695 = vmul.f32 %v1581, %v1620
    %v1696 = vmul.f32 %v1582, %v1624
    %v1697 = vmul.f32 %v1583, %v1628
    %v1698 = vmul.f32 %v1584, %v1632
    %v1699 = vmul.f32 %v1585, %v1636
    %v1700 = vmul.f32 %v1586, %v1640
    %v1701 = vmul.f32 %v1587, %v1644
    %v1702 = vmul.f32 %v1588, %v1648
    %v1703 = vmul.f32 %v1589, %v1652
    %v1704 = vmul.f32 %v1590, %v1656
    %v1707 = vlaneseq
    %v1708 = vshrl.u32 %v1707, 7
    %v1709 = vsub.s32 0, %v1708
    %v1710 = vrot.slane %v1416, %v1709
    %v1711 = vlaneseq
    %v1712 = vshrl.u32 %v1711, 7
    %v1713 = vsub.s32 1, %v1712
    %v1714 = vrot.slane %v1416, %v1713
    %v1715 = vlaneseq
    %v1716 = vshrl.u32 %v1715, 7
    %v1717 = vsub.s32 2, %v1716
    %v1718 = vrot.slane %v1416, %v1717
    %v1719 = vlaneseq
    %v1720 = vshrl.u32 %v1719, 7
    %v1721 = vsub.s32 3, %v1720
    %v1722 = vrot.slane %v1416, %v1721
    %v1723 = vlaneseq
    %v1724 = vshrl.u32 %v1723, 7
    %v1725 = vsub.s32 4, %v1724
    %v1726 = vrot.slane %v1416, %v1725
    %v1727 = vlaneseq
    %v1728 = vshrl.u32 %v1727, 7
    %v1729 = vsub.s32 5, %v1728
    %v1730 = vrot.slane %v1416, %v1729
    %v1731 = vlaneseq
    %v1732 = vshrl.u32 %v1731, 7
    %v1733 = vsub.s32 6, %v1732
    %v1734 = vrot.slane %v1416, %v1733
    %v1735 = vlaneseq
    %v1736 = vshrl.u32 %v1735, 7
    %v1737 = vsub.s32 7, %v1736
    %v1738 = vrot.slane %v1416, %v1737
    %v1739 = vlaneseq
    %v1740 = vshrl.u32 %v1739, 7
    %v1741 = vsub.s32 0, %v1740
    %v1742 = vrot.slane %v1417, %v1741
    %v1743 = vlaneseq
    %v1744 = vshrl.u32 %v1743, 7
    %v1745 = vsub.s32 1, %v1744
    %v1746 = vrot.slane %v1417, %v1745
    %v1747 = vlaneseq
    %v1748 = vshrl.u32 %v1747, 7
    %v1749 = vsub.s32 2, %v1748
    %v1750 = vrot.slane %v1417, %v1749
    %v1751 = vlaneseq
    %v1752 = vshrl.u32 %v1751, 7
    %v1753 = vsub.s32 3, %v1752
    %v1754 = vrot.slane %v1417, %v1753
    %v1755 = vlaneseq
    %v1756 = vshrl.u32 %v1755, 7
    %v1757 = vsub.s32 4, %v1756
    %v1758 = vrot.slane %v1417, %v1757
    %v1759 = vlaneseq
    %v1760 = vshrl.u32 %v1759, 7
    %v1761 = vsub.s32 5, %v1760
    %v1762 = vrot.slane %v1417, %v1761
    %v1763 = vlaneseq
    %v1764 = vshrl.u32 %v1763, 7
    %v1765 = vsub.s32 6, %v1764
    %v1766 = vrot.slane %v1417, %v1765
    %v1767 = vlaneseq
    %v1768 = vshrl.u32 %v1767, 7
    %v1769 = vsub.s32 7, %v1768
    %v1770 = vrot.slane %v1417, %v1769
    %v1787 = vadd.f32 %v1673, %v1710
    %v1788 = vadd.f32 %v1674, %v1714
    %v1789 = vadd.f32 %v1675, %v1718
    %v1790 = vadd.f32 %v1676, %v1722
    %v1791 = vadd.f32 %v1677, %v1726
    %v1792 = vadd.f32 %v1678, %v1730
    %v1793 = vadd.f32 %v1679, %v1734
    %v1794 = vadd.f32 %v1680, %v1738
    %v1795 = vadd.f32 %v1681, %v1742
    %v1796 = vadd.f32 %v1682, %v1746
    %v1797 = vadd.f32 %v1683, %v1750
    %v1798 = vadd.f32 %v1684, %v1754
    %v1799 = vadd.f32 %v1685, %v1758
    %v1800 = vadd.f32 %v1686, %v1762
    %v1801 = vadd.f32 %v1687, %v1766
    %v1802 = vadd.f32 %v1688, %v1770
    %v1803 = vadd.f32 %v1689, %v1710
    %v1804 = vadd.f32 %v1690, %v1714
    %v1805 = vadd.f32 %v1691, %v1718
    %v1806 = vadd.f32 %v1692, %v1722
    %v1807 = vadd.f32 %v1693, %v1726
    %v1808 = vadd.f32 %v1694, %v1730
    %v1809 = vadd.f32 %v1695, %v1734
    %v1810 = vadd.f32 %v1696, %v1738
    %v1811 = vadd.f32 %v1697, %v1742
    %v1812 = vadd.f32 %v1698, %v1746
    %v1813 = vadd.f32 %v1699, %v1750
    %v1814 = vadd.f32 %v1700, %v1754
    %v1815 = vadd.f32 %v1701, %v1758
    %v1816 = vadd.f32 %v1702, %v1762
    %v1817 = vadd.f32 %v1703, %v1766
    %v1818 = vadd.f32 %v1704, %v1770
    %v1819 = vmax.f32 %v1787, 0.0
    %v1820 = vmax.f32 %v1788, 0.0
    %v1821 = vmax.f32 %v1789, 0.0
    %v1822 = vmax.f32 %v1790, 0.0
    %v1823 = vmax.f32 %v1791, 0.0
    %v1824 = vmax.f32 %v1792, 0.0
    %v1825 = vmax.f32 %v1793, 0.0
    %v1826 = vmax.f32 %v1794, 0.0
    %v1827 = vmax.f32 %v1795, 0.0
    %v1828 = vmax.f32 %v1796, 0.0
    %v1829 = vmax.f32 %v1797, 0.0
    %v1830 = vmax.f32 %v1798, 0.0
    %v1831 = vmax.f32 %v1799, 0.0
    %v1832 = vmax.f32 %v1800, 0.0
    %v1833 = vmax.f32 %v1801, 0.0
    %v1834 = vmax.f32 %v1802, 0.0
    %v1835 = vmax.f32 %v1803, 0.0
    %v1836 = vmax.f32 %v1804, 0.0
    %v1837 = vmax.f32 %v1805, 0.0
    %v1838 = vmax.f32 %v1806, 0.0
    %v1839 = vmax.f32 %v1807, 0.0
    %v1840 = vmax.f32 %v1808, 0.0
    %v1841 = vmax.f32 %v1809, 0.0
    %v1842 = vmax.f32 %v1810, 0.0
    %v1843 = vmax.f32 %v1811, 0.0
    %v1844 = vmax.f32 %v1812, 0.0
    %v1845 = vmax.f32 %v1813, 0.0
    %v1846 = vmax.f32 %v1814, 0.0
    %v1847 = vmax.f32 %v1815, 0.0
    %v1848 = vmax.f32 %v1816, 0.0
    %v1849 = vmax.f32 %v1817, 0.0
    %v1850 = vmax.f32 %v1818, 0.0
    %v1851 = vpack.c.bf16 %v1835, %v1819
    %v1852 = vpack.c.bf16 %v1836, %v1820
    %v1853 = vpack.c.bf16 %v1837, %v1821
    %v1854 = vpack.c.bf16 %v1838, %v1822
    %v1855 = vpack.c.bf16 %v1839, %v1823
    %v1856 = vpack.c.bf16 %v1840, %v1824
    %v1857 = vpack.c.bf16 %v1841, %v1825
    %v1858 = vpack.c.bf16 %v1842, %v1826
    %v1859 = vpack.c.bf16 %v1843, %v1827
    %v1860 = vpack.c.bf16 %v1844, %v1828
    %v1861 = vpack.c.bf16 %v1845, %v1829
    %v1862 = vpack.c.bf16 %v1846, %v1830
    %v1863 = vpack.c.bf16 %v1847, %v1831
    %v1864 = vpack.c.bf16 %v1848, %v1832
    %v1865 = vpack.c.bf16 %v1849, %v1833
    %v1866 = vpack.c.bf16 %v1850, %v1834
    %v1867 = vld [vmem:[#allocation12] sm:$0xff]
    %v1868 = vld [vmem:[#allocation12 + $0x8] sm:$0xff]
    %v1869 = vld [vmem:[#allocation12 + $0x10] sm:$0xff]
    %v1870 = vld [vmem:[#allocation12 + $0x18] sm:$0xff]
    %v1871 = vld [vmem:[#allocation12 + $0x20] sm:$0xff]
    %v1872 = vld [vmem:[#allocation12 + $0x28] sm:$0xff]
    %v1873 = vld [vmem:[#allocation12 + $0x30] sm:$0xff]
    %v1874 = vld [vmem:[#allocation12 + $0x38] sm:$0xff]
    %v1875 = vld [vmem:[#allocation12 + $0x40] sm:$0xff]
    %v1876 = vld [vmem:[#allocation12 + $0x48] sm:$0xff]
    %v1877 = vld [vmem:[#allocation12 + $0x50] sm:$0xff]
    %v1878 = vld [vmem:[#allocation12 + $0x58] sm:$0xff]
    %v1879 = vld [vmem:[#allocation12 + $0x60] sm:$0xff]
    %v1880 = vld [vmem:[#allocation12 + $0x68] sm:$0xff]
    %v1881 = vld [vmem:[#allocation12 + $0x70] sm:$0xff]
    %v1882 = vld [vmem:[#allocation12 + $0x78] sm:$0xff]
    %v1883 = vld [vmem:[#allocation12 + $0x80] sm:$0xff]
    %v1884 = vld [vmem:[#allocation12 + $0x88] sm:$0xff]
    %v1885 = vld [vmem:[#allocation12 + $0x90] sm:$0xff]
    %v1886 = vld [vmem:[#allocation12 + $0x98] sm:$0xff]
    %v1887 = vld [vmem:[#allocation12 + $0xa0] sm:$0xff]
    %v1888 = vld [vmem:[#allocation12 + $0xa8] sm:$0xff]
    %v1889 = vld [vmem:[#allocation12 + $0xb0] sm:$0xff]
    %v1890 = vld [vmem:[#allocation12 + $0xb8] sm:$0xff]
    %v1891 = vld [vmem:[#allocation12 + $0xc0] sm:$0xff]
    %v1892 = vld [vmem:[#allocation12 + $0xc8] sm:$0xff]
    %v1893 = vld [vmem:[#allocation12 + $0xd0] sm:$0xff]
    %v1894 = vld [vmem:[#allocation12 + $0xd8] sm:$0xff]
    %v1895 = vld [vmem:[#allocation12 + $0xe0] sm:$0xff]
    %v1896 = vld [vmem:[#allocation12 + $0xe8] sm:$0xff]
    %v1897 = vld [vmem:[#allocation12 + $0xf0] sm:$0xff]
    %v1898 = vld [vmem:[#allocation12 + $0xf8] sm:$0xff]
    %v1899 = vld [vmem:[#allocation12 + $0x100] sm:$0xff]
    %v1900 = vld [vmem:[#allocation12 + $0x108] sm:$0xff]
    %v1901 = vld [vmem:[#allocation12 + $0x110] sm:$0xff]
    %v1902 = vld [vmem:[#allocation12 + $0x118] sm:$0xff]
    %v1903 = vld [vmem:[#allocation12 + $0x120] sm:$0xff]
    %v1904 = vld [vmem:[#allocation12 + $0x128] sm:$0xff]
    %v1905 = vld [vmem:[#allocation12 + $0x130] sm:$0xff]
    %v1906 = vld [vmem:[#allocation12 + $0x138] sm:$0xff]
    %v1907 = vld [vmem:[#allocation12 + $0x140] sm:$0xff]
    %v1908 = vld [vmem:[#allocation12 + $0x148] sm:$0xff]
    %v1909 = vld [vmem:[#allocation12 + $0x150] sm:$0xff]
    %v1910 = vld [vmem:[#allocation12 + $0x158] sm:$0xff]
    %v1911 = vld [vmem:[#allocation12 + $0x160] sm:$0xff]
    %v1912 = vld [vmem:[#allocation12 + $0x168] sm:$0xff]
    %v1913 = vld [vmem:[#allocation12 + $0x170] sm:$0xff]
    %v1914 = vld [vmem:[#allocation12 + $0x178] sm:$0xff]
    %v1915 = vld [vmem:[#allocation12 + $0x180] sm:$0xff]
    %v1916 = vld [vmem:[#allocation12 + $0x188] sm:$0xff]
    %v1917 = vld [vmem:[#allocation12 + $0x190] sm:$0xff]
    %v1918 = vld [vmem:[#allocation12 + $0x198] sm:$0xff]
    %v1919 = vld [vmem:[#allocation12 + $0x1a0] sm:$0xff]
    %v1920 = vld [vmem:[#allocation12 + $0x1a8] sm:$0xff]
    %v1921 = vld [vmem:[#allocation12 + $0x1b0] sm:$0xff]
    %v1922 = vld [vmem:[#allocation12 + $0x1b8] sm:$0xff]
    %v1923 = vld [vmem:[#allocation12 + $0x1c0] sm:$0xff]
    %v1924 = vld [vmem:[#allocation12 + $0x1c8] sm:$0xff]
    %v1925 = vld [vmem:[#allocation12 + $0x1d0] sm:$0xff]
    %v1926 = vld [vmem:[#allocation12 + $0x1d8] sm:$0xff]
    %v1927 = vld [vmem:[#allocation12 + $0x1e0] sm:$0xff]
    %v1928 = vld [vmem:[#allocation12 + $0x1e8] sm:$0xff]
    %v1929 = vld [vmem:[#allocation12 + $0x1f0] sm:$0xff]
    %v1930 = vld [vmem:[#allocation12 + $0x1f8] sm:$0xff]
    %v1931 = vld [vmem:[#allocation12 + $0x200] sm:$0xff]
    %v1932 = vld [vmem:[#allocation12 + $0x208] sm:$0xff]
    %v1933 = vld [vmem:[#allocation12 + $0x210] sm:$0xff]
    %v1934 = vld [vmem:[#allocation12 + $0x218] sm:$0xff]
    %v1935 = vld [vmem:[#allocation12 + $0x220] sm:$0xff]
    %v1936 = vld [vmem:[#allocation12 + $0x228] sm:$0xff]
    %v1937 = vld [vmem:[#allocation12 + $0x230] sm:$0xff]
    %v1938 = vld [vmem:[#allocation12 + $0x238] sm:$0xff]
    %v1939 = vld [vmem:[#allocation12 + $0x240] sm:$0xff]
    %v1940 = vld [vmem:[#allocation12 + $0x248] sm:$0xff]
    %v1941 = vld [vmem:[#allocation12 + $0x250] sm:$0xff]
    %v1942 = vld [vmem:[#allocation12 + $0x258] sm:$0xff]
    %v1943 = vld [vmem:[#allocation12 + $0x260] sm:$0xff]
    %v1944 = vld [vmem:[#allocation12 + $0x268] sm:$0xff]
    %v1945 = vld [vmem:[#allocation12 + $0x270] sm:$0xff]
    %v1946 = vld [vmem:[#allocation12 + $0x278] sm:$0xff]
    %v1947 = vld [vmem:[#allocation12 + $0x280] sm:$0xff]
    %v1948 = vld [vmem:[#allocation12 + $0x288] sm:$0xff]
    %v1949 = vld [vmem:[#allocation12 + $0x290] sm:$0xff]
    %v1950 = vld [vmem:[#allocation12 + $0x298] sm:$0xff]
    %v1951 = vld [vmem:[#allocation12 + $0x2a0] sm:$0xff]
    %v1952 = vld [vmem:[#allocation12 + $0x2a8] sm:$0xff]
    %v1953 = vld [vmem:[#allocation12 + $0x2b0] sm:$0xff]
    %v1954 = vld [vmem:[#allocation12 + $0x2b8] sm:$0xff]
    %v1955 = vld [vmem:[#allocation12 + $0x2c0] sm:$0xff]
    %v1956 = vld [vmem:[#allocation12 + $0x2c8] sm:$0xff]
    %v1957 = vld [vmem:[#allocation12 + $0x2d0] sm:$0xff]
    %v1958 = vld [vmem:[#allocation12 + $0x2d8] sm:$0xff]
    %v1959 = vld [vmem:[#allocation12 + $0x2e0] sm:$0xff]
    %v1960 = vld [vmem:[#allocation12 + $0x2e8] sm:$0xff]
    %v1961 = vld [vmem:[#allocation12 + $0x2f0] sm:$0xff]
    %v1962 = vld [vmem:[#allocation12 + $0x2f8] sm:$0xff]
    %v1963 = vld [vmem:[#allocation12 + $0x300] sm:$0xff]
    %v1964 = vld [vmem:[#allocation12 + $0x308] sm:$0xff]
    %v1965 = vld [vmem:[#allocation12 + $0x310] sm:$0xff]
    %v1966 = vld [vmem:[#allocation12 + $0x318] sm:$0xff]
    %v1967 = vld [vmem:[#allocation12 + $0x320] sm:$0xff]
    %v1968 = vld [vmem:[#allocation12 + $0x328] sm:$0xff]
    %v1969 = vld [vmem:[#allocation12 + $0x330] sm:$0xff]
    %v1970 = vld [vmem:[#allocation12 + $0x338] sm:$0xff]
    %v1971 = vld [vmem:[#allocation12 + $0x340] sm:$0xff]
    %v1972 = vld [vmem:[#allocation12 + $0x348] sm:$0xff]
    %v1973 = vld [vmem:[#allocation12 + $0x350] sm:$0xff]
    %v1974 = vld [vmem:[#allocation12 + $0x358] sm:$0xff]
    %v1975 = vld [vmem:[#allocation12 + $0x360] sm:$0xff]
    %v1976 = vld [vmem:[#allocation12 + $0x368] sm:$0xff]
    %v1977 = vld [vmem:[#allocation12 + $0x370] sm:$0xff]
    %v1978 = vld [vmem:[#allocation12 + $0x378] sm:$0xff]
    %v1979 = vld [vmem:[#allocation12 + $0x380] sm:$0xff]
    %v1980 = vld [vmem:[#allocation12 + $0x388] sm:$0xff]
    %v1981 = vld [vmem:[#allocation12 + $0x390] sm:$0xff]
    %v1982 = vld [vmem:[#allocation12 + $0x398] sm:$0xff]
    %v1983 = vld [vmem:[#allocation12 + $0x3a0] sm:$0xff]
    %v1984 = vld [vmem:[#allocation12 + $0x3a8] sm:$0xff]
    %v1985 = vld [vmem:[#allocation12 + $0x3b0] sm:$0xff]
    %v1986 = vld [vmem:[#allocation12 + $0x3b8] sm:$0xff]
    %v1987 = vld [vmem:[#allocation12 + $0x3c0] sm:$0xff]
    %v1988 = vld [vmem:[#allocation12 + $0x3c8] sm:$0xff]
    %v1989 = vld [vmem:[#allocation12 + $0x3d0] sm:$0xff]
    %v1990 = vld [vmem:[#allocation12 + $0x3d8] sm:$0xff]
    %v1991 = vld [vmem:[#allocation12 + $0x3e0] sm:$0xff]
    %v1992 = vld [vmem:[#allocation12 + $0x3e8] sm:$0xff]
    %v1993 = vld [vmem:[#allocation12 + $0x3f0] sm:$0xff]
    %v1994 = vld [vmem:[#allocation12 + $0x3f8] sm:$0xff]
    %v1995 = vld [vmem:[#allocation12 + $0x400] sm:$0xff]
    %v1996 = vld [vmem:[#allocation12 + $0x408] sm:$0xff]
    %v1997 = vld [vmem:[#allocation12 + $0x410] sm:$0xff]
    %v1998 = vld [vmem:[#allocation12 + $0x418] sm:$0xff]
    %v1999 = vld [vmem:[#allocation12 + $0x420] sm:$0xff]
    %v2000 = vld [vmem:[#allocation12 + $0x428] sm:$0xff]
    %v2001 = vld [vmem:[#allocation12 + $0x430] sm:$0xff]
    %v2002 = vld [vmem:[#allocation12 + $0x438] sm:$0xff]
    %v2003 = vld [vmem:[#allocation12 + $0x440] sm:$0xff]
    %v2004 = vld [vmem:[#allocation12 + $0x448] sm:$0xff]
    %v2005 = vld [vmem:[#allocation12 + $0x450] sm:$0xff]
    %v2006 = vld [vmem:[#allocation12 + $0x458] sm:$0xff]
    %v2007 = vld [vmem:[#allocation12 + $0x460] sm:$0xff]
    %v2008 = vld [vmem:[#allocation12 + $0x468] sm:$0xff]
    %v2009 = vld [vmem:[#allocation12 + $0x470] sm:$0xff]
    %v2010 = vld [vmem:[#allocation12 + $0x478] sm:$0xff]
    %v2011 = vld [vmem:[#allocation12 + $0x480] sm:$0xff]
    %v2012 = vld [vmem:[#allocation12 + $0x488] sm:$0xff]
    %v2013 = vld [vmem:[#allocation12 + $0x490] sm:$0xff]
    %v2014 = vld [vmem:[#allocation12 + $0x498] sm:$0xff]
    %v2015 = vld [vmem:[#allocation12 + $0x4a0] sm:$0xff]
    %v2016 = vld [vmem:[#allocation12 + $0x4a8] sm:$0xff]
    %v2017 = vld [vmem:[#allocation12 + $0x4b0] sm:$0xff]
    %v2018 = vld [vmem:[#allocation12 + $0x4b8] sm:$0xff]
    %v2019 = vld [vmem:[#allocation12 + $0x4c0] sm:$0xff]
    %v2020 = vld [vmem:[#allocation12 + $0x4c8] sm:$0xff]
    %v2021 = vld [vmem:[#allocation12 + $0x4d0] sm:$0xff]
    %v2022 = vld [vmem:[#allocation12 + $0x4d8] sm:$0xff]
    %v2023 = vld [vmem:[#allocation12 + $0x4e0] sm:$0xff]
    %v2024 = vld [vmem:[#allocation12 + $0x4e8] sm:$0xff]
    %v2025 = vld [vmem:[#allocation12 + $0x4f0] sm:$0xff]
    %v2026 = vld [vmem:[#allocation12 + $0x4f8] sm:$0xff]
    %v2027 = vld [vmem:[#allocation12 + $0x500] sm:$0xff]
    %v2028 = vld [vmem:[#allocation12 + $0x508] sm:$0xff]
    %v2029 = vld [vmem:[#allocation12 + $0x510] sm:$0xff]
    %v2030 = vld [vmem:[#allocation12 + $0x518] sm:$0xff]
    %v2031 = vld [vmem:[#allocation12 + $0x520] sm:$0xff]
    %v2032 = vld [vmem:[#allocation12 + $0x528] sm:$0xff]
    %v2033 = vld [vmem:[#allocation12 + $0x530] sm:$0xff]
    %v2034 = vld [vmem:[#allocation12 + $0x538] sm:$0xff]
    %v2035 = vld [vmem:[#allocation12 + $0x540] sm:$0xff]
    %v2036 = vld [vmem:[#allocation12 + $0x548] sm:$0xff]
    %v2037 = vld [vmem:[#allocation12 + $0x550] sm:$0xff]
    %v2038 = vld [vmem:[#allocation12 + $0x558] sm:$0xff]
    %v2039 = vld [vmem:[#allocation12 + $0x560] sm:$0xff]
    %v2040 = vld [vmem:[#allocation12 + $0x568] sm:$0xff]
    %v2041 = vld [vmem:[#allocation12 + $0x570] sm:$0xff]
    %v2042 = vld [vmem:[#allocation12 + $0x578] sm:$0xff]
    %v2043 = vld [vmem:[#allocation12 + $0x580] sm:$0xff]
    %v2044 = vld [vmem:[#allocation12 + $0x588] sm:$0xff]
    %v2045 = vld [vmem:[#allocation12 + $0x590] sm:$0xff]
    %v2046 = vld [vmem:[#allocation12 + $0x598] sm:$0xff]
    %v2047 = vld [vmem:[#allocation12 + $0x5a0] sm:$0xff]
    %v2048 = vld [vmem:[#allocation12 + $0x5a8] sm:$0xff]
    %v2049 = vld [vmem:[#allocation12 + $0x5b0] sm:$0xff]
    %v2050 = vld [vmem:[#allocation12 + $0x5b8] sm:$0xff]
    %v2051 = vld [vmem:[#allocation12 + $0x5c0] sm:$0xff]
    %v2052 = vld [vmem:[#allocation12 + $0x5c8] sm:$0xff]
    %v2053 = vld [vmem:[#allocation12 + $0x5d0] sm:$0xff]
    %v2054 = vld [vmem:[#allocation12 + $0x5d8] sm:$0xff]
    %v2055 = vld [vmem:[#allocation12 + $0x5e0] sm:$0xff]
    %v2056 = vld [vmem:[#allocation12 + $0x5e8] sm:$0xff]
    %v2057 = vld [vmem:[#allocation12 + $0x5f0] sm:$0xff]
    %v2058 = vld [vmem:[#allocation12 + $0x5f8] sm:$0xff]
    %v2059 = vld [vmem:[#allocation12 + $0x600] sm:$0xff]
    %v2060 = vld [vmem:[#allocation12 + $0x608] sm:$0xff]
    %v2061 = vld [vmem:[#allocation12 + $0x610] sm:$0xff]
    %v2062 = vld [vmem:[#allocation12 + $0x618] sm:$0xff]
    %v2063 = vld [vmem:[#allocation12 + $0x620] sm:$0xff]
    %v2064 = vld [vmem:[#allocation12 + $0x628] sm:$0xff]
    %v2065 = vld [vmem:[#allocation12 + $0x630] sm:$0xff]
    %v2066 = vld [vmem:[#allocation12 + $0x638] sm:$0xff]
    %v2067 = vld [vmem:[#allocation12 + $0x640] sm:$0xff]
    %v2068 = vld [vmem:[#allocation12 + $0x648] sm:$0xff]
    %v2069 = vld [vmem:[#allocation12 + $0x650] sm:$0xff]
    %v2070 = vld [vmem:[#allocation12 + $0x658] sm:$0xff]
    %v2071 = vld [vmem:[#allocation12 + $0x660] sm:$0xff]
    %v2072 = vld [vmem:[#allocation12 + $0x668] sm:$0xff]
    %v2073 = vld [vmem:[#allocation12 + $0x670] sm:$0xff]
    %v2074 = vld [vmem:[#allocation12 + $0x678] sm:$0xff]
    %v2075 = vld [vmem:[#allocation12 + $0x680] sm:$0xff]
    %v2076 = vld [vmem:[#allocation12 + $0x688] sm:$0xff]
    %v2077 = vld [vmem:[#allocation12 + $0x690] sm:$0xff]
    %v2078 = vld [vmem:[#allocation12 + $0x698] sm:$0xff]
    %v2079 = vld [vmem:[#allocation12 + $0x6a0] sm:$0xff]
    %v2080 = vld [vmem:[#allocation12 + $0x6a8] sm:$0xff]
    %v2081 = vld [vmem:[#allocation12 + $0x6b0] sm:$0xff]
    %v2082 = vld [vmem:[#allocation12 + $0x6b8] sm:$0xff]
    %v2083 = vld [vmem:[#allocation12 + $0x6c0] sm:$0xff]
    %v2084 = vld [vmem:[#allocation12 + $0x6c8] sm:$0xff]
    %v2085 = vld [vmem:[#allocation12 + $0x6d0] sm:$0xff]
    %v2086 = vld [vmem:[#allocation12 + $0x6d8] sm:$0xff]
    %v2087 = vld [vmem:[#allocation12 + $0x6e0] sm:$0xff]
    %v2088 = vld [vmem:[#allocation12 + $0x6e8] sm:$0xff]
    %v2089 = vld [vmem:[#allocation12 + $0x6f0] sm:$0xff]
    %v2090 = vld [vmem:[#allocation12 + $0x6f8] sm:$0xff]
    %v2091 = vld [vmem:[#allocation12 + $0x700] sm:$0xff]
    %v2092 = vld [vmem:[#allocation12 + $0x708] sm:$0xff]
    %v2093 = vld [vmem:[#allocation12 + $0x710] sm:$0xff]
    %v2094 = vld [vmem:[#allocation12 + $0x718] sm:$0xff]
    %v2095 = vld [vmem:[#allocation12 + $0x720] sm:$0xff]
    %v2096 = vld [vmem:[#allocation12 + $0x728] sm:$0xff]
    %v2097 = vld [vmem:[#allocation12 + $0x730] sm:$0xff]
    %v2098 = vld [vmem:[#allocation12 + $0x738] sm:$0xff]
    %v2099 = vld [vmem:[#allocation12 + $0x740] sm:$0xff]
    %v2100 = vld [vmem:[#allocation12 + $0x748] sm:$0xff]
    %v2101 = vld [vmem:[#allocation12 + $0x750] sm:$0xff]
    %v2102 = vld [vmem:[#allocation12 + $0x758] sm:$0xff]
    %v2103 = vld [vmem:[#allocation12 + $0x760] sm:$0xff]
    %v2104 = vld [vmem:[#allocation12 + $0x768] sm:$0xff]
    %v2105 = vld [vmem:[#allocation12 + $0x770] sm:$0xff]
    %v2106 = vld [vmem:[#allocation12 + $0x778] sm:$0xff]
    %v2107 = vld [vmem:[#allocation12 + $0x780] sm:$0xff]
    %v2108 = vld [vmem:[#allocation12 + $0x788] sm:$0xff]
    %v2109 = vld [vmem:[#allocation12 + $0x790] sm:$0xff]
    %v2110 = vld [vmem:[#allocation12 + $0x798] sm:$0xff]
    %v2111 = vld [vmem:[#allocation12 + $0x7a0] sm:$0xff]
    %v2112 = vld [vmem:[#allocation12 + $0x7a8] sm:$0xff]
    %v2113 = vld [vmem:[#allocation12 + $0x7b0] sm:$0xff]
    %v2114 = vld [vmem:[#allocation12 + $0x7b8] sm:$0xff]
    %v2115 = vld [vmem:[#allocation12 + $0x7c0] sm:$0xff]
    %v2116 = vld [vmem:[#allocation12 + $0x7c8] sm:$0xff]
    %v2117 = vld [vmem:[#allocation12 + $0x7d0] sm:$0xff]
    %v2118 = vld [vmem:[#allocation12 + $0x7d8] sm:$0xff]
    %v2119 = vld [vmem:[#allocation12 + $0x7e0] sm:$0xff]
    %v2120 = vld [vmem:[#allocation12 + $0x7e8] sm:$0xff]
    %v2121 = vld [vmem:[#allocation12 + $0x7f0] sm:$0xff]
    %v2122 = vld [vmem:[#allocation12 + $0x7f8] sm:$0xff]
    %v2123 = vld [vmem:[#allocation12 + $0x800] sm:$0xff]
    %v2124 = vld [vmem:[#allocation12 + $0x808] sm:$0xff]
    %v2125 = vld [vmem:[#allocation12 + $0x810] sm:$0xff]
    %v2126 = vld [vmem:[#allocation12 + $0x818] sm:$0xff]
    %v2127 = vld [vmem:[#allocation12 + $0x820] sm:$0xff]
    %v2128 = vld [vmem:[#allocation12 + $0x828] sm:$0xff]
    %v2129 = vld [vmem:[#allocation12 + $0x830] sm:$0xff]
    %v2130 = vld [vmem:[#allocation12 + $0x838] sm:$0xff]
    %v2131 = vld [vmem:[#allocation12 + $0x840] sm:$0xff]
    %v2132 = vld [vmem:[#allocation12 + $0x848] sm:$0xff]
    %v2133 = vld [vmem:[#allocation12 + $0x850] sm:$0xff]
    %v2134 = vld [vmem:[#allocation12 + $0x858] sm:$0xff]
    %v2135 = vld [vmem:[#allocation12 + $0x860] sm:$0xff]
    %v2136 = vld [vmem:[#allocation12 + $0x868] sm:$0xff]
    %v2137 = vld [vmem:[#allocation12 + $0x870] sm:$0xff]
    %v2138 = vld [vmem:[#allocation12 + $0x878] sm:$0xff]
    %v2139 = vld [vmem:[#allocation12 + $0x880] sm:$0xff]
    %v2140 = vld [vmem:[#allocation12 + $0x888] sm:$0xff]
    %v2141 = vld [vmem:[#allocation12 + $0x890] sm:$0xff]
    %v2142 = vld [vmem:[#allocation12 + $0x898] sm:$0xff]
    %v2143 = vld [vmem:[#allocation12 + $0x8a0] sm:$0xff]
    %v2144 = vld [vmem:[#allocation12 + $0x8a8] sm:$0xff]
    %v2145 = vld [vmem:[#allocation12 + $0x8b0] sm:$0xff]
    %v2146 = vld [vmem:[#allocation12 + $0x8b8] sm:$0xff]
    %v2147 = vld [vmem:[#allocation12 + $0x8c0] sm:$0xff]
    %v2148 = vld [vmem:[#allocation12 + $0x8c8] sm:$0xff]
    %v2149 = vld [vmem:[#allocation12 + $0x8d0] sm:$0xff]
    %v2150 = vld [vmem:[#allocation12 + $0x8d8] sm:$0xff]
    %v2151 = vld [vmem:[#allocation12 + $0x8e0] sm:$0xff]
    %v2152 = vld [vmem:[#allocation12 + $0x8e8] sm:$0xff]
    %v2153 = vld [vmem:[#allocation12 + $0x8f0] sm:$0xff]
    %v2154 = vld [vmem:[#allocation12 + $0x8f8] sm:$0xff]
    %v2155 = vld [vmem:[#allocation12 + $0x900] sm:$0xff]
    %v2156 = vld [vmem:[#allocation12 + $0x908] sm:$0xff]
    %v2157 = vld [vmem:[#allocation12 + $0x910] sm:$0xff]
    %v2158 = vld [vmem:[#allocation12 + $0x918] sm:$0xff]
    %v2159 = vld [vmem:[#allocation12 + $0x920] sm:$0xff]
    %v2160 = vld [vmem:[#allocation12 + $0x928] sm:$0xff]
    %v2161 = vld [vmem:[#allocation12 + $0x930] sm:$0xff]
    %v2162 = vld [vmem:[#allocation12 + $0x938] sm:$0xff]
    %v2163 = vld [vmem:[#allocation12 + $0x940] sm:$0xff]
    %v2164 = vld [vmem:[#allocation12 + $0x948] sm:$0xff]
    %v2165 = vld [vmem:[#allocation12 + $0x950] sm:$0xff]
    %v2166 = vld [vmem:[#allocation12 + $0x958] sm:$0xff]
    %v2167 = vld [vmem:[#allocation12 + $0x960] sm:$0xff]
    %v2168 = vld [vmem:[#allocation12 + $0x968] sm:$0xff]
    %v2169 = vld [vmem:[#allocation12 + $0x970] sm:$0xff]
    %v2170 = vld [vmem:[#allocation12 + $0x978] sm:$0xff]
    %v2171 = vld [vmem:[#allocation12 + $0x980] sm:$0xff]
    %v2172 = vld [vmem:[#allocation12 + $0x988] sm:$0xff]
    %v2173 = vld [vmem:[#allocation12 + $0x990] sm:$0xff]
    %v2174 = vld [vmem:[#allocation12 + $0x998] sm:$0xff]
    %v2175 = vld [vmem:[#allocation12 + $0x9a0] sm:$0xff]
    %v2176 = vld [vmem:[#allocation12 + $0x9a8] sm:$0xff]
    %v2177 = vld [vmem:[#allocation12 + $0x9b0] sm:$0xff]
    %v2178 = vld [vmem:[#allocation12 + $0x9b8] sm:$0xff]
    %v2179 = vld [vmem:[#allocation12 + $0x9c0] sm:$0xff]
    %v2180 = vld [vmem:[#allocation12 + $0x9c8] sm:$0xff]
    %v2181 = vld [vmem:[#allocation12 + $0x9d0] sm:$0xff]
    %v2182 = vld [vmem:[#allocation12 + $0x9d8] sm:$0xff]
    %v2183 = vld [vmem:[#allocation12 + $0x9e0] sm:$0xff]
    %v2184 = vld [vmem:[#allocation12 + $0x9e8] sm:$0xff]
    %v2185 = vld [vmem:[#allocation12 + $0x9f0] sm:$0xff]
    %v2186 = vld [vmem:[#allocation12 + $0x9f8] sm:$0xff]
    %v2187 = vld [vmem:[#allocation12 + $0xa00] sm:$0xff]
    %v2188 = vld [vmem:[#allocation12 + $0xa08] sm:$0xff]
    %v2189 = vld [vmem:[#allocation12 + $0xa10] sm:$0xff]
    %v2190 = vld [vmem:[#allocation12 + $0xa18] sm:$0xff]
    %v2191 = vld [vmem:[#allocation12 + $0xa20] sm:$0xff]
    %v2192 = vld [vmem:[#allocation12 + $0xa28] sm:$0xff]
    %v2193 = vld [vmem:[#allocation12 + $0xa30] sm:$0xff]
    %v2194 = vld [vmem:[#allocation12 + $0xa38] sm:$0xff]
    %v2195 = vld [vmem:[#allocation12 + $0xa40] sm:$0xff]
    %v2196 = vld [vmem:[#allocation12 + $0xa48] sm:$0xff]
    %v2197 = vld [vmem:[#allocation12 + $0xa50] sm:$0xff]
    %v2198 = vld [vmem:[#allocation12 + $0xa58] sm:$0xff]
    %v2199 = vld [vmem:[#allocation12 + $0xa60] sm:$0xff]
    %v2200 = vld [vmem:[#allocation12 + $0xa68] sm:$0xff]
    %v2201 = vld [vmem:[#allocation12 + $0xa70] sm:$0xff]
    %v2202 = vld [vmem:[#allocation12 + $0xa78] sm:$0xff]
    %v2203 = vld [vmem:[#allocation12 + $0xa80] sm:$0xff]
    %v2204 = vld [vmem:[#allocation12 + $0xa88] sm:$0xff]
    %v2205 = vld [vmem:[#allocation12 + $0xa90] sm:$0xff]
    %v2206 = vld [vmem:[#allocation12 + $0xa98] sm:$0xff]
    %v2207 = vld [vmem:[#allocation12 + $0xaa0] sm:$0xff]
    %v2208 = vld [vmem:[#allocation12 + $0xaa8] sm:$0xff]
    %v2209 = vld [vmem:[#allocation12 + $0xab0] sm:$0xff]
    %v2210 = vld [vmem:[#allocation12 + $0xab8] sm:$0xff]
    %v2211 = vld [vmem:[#allocation12 + $0xac0] sm:$0xff]
    %v2212 = vld [vmem:[#allocation12 + $0xac8] sm:$0xff]
    %v2213 = vld [vmem:[#allocation12 + $0xad0] sm:$0xff]
    %v2214 = vld [vmem:[#allocation12 + $0xad8] sm:$0xff]
    %v2215 = vld [vmem:[#allocation12 + $0xae0] sm:$0xff]
    %v2216 = vld [vmem:[#allocation12 + $0xae8] sm:$0xff]
    %v2217 = vld [vmem:[#allocation12 + $0xaf0] sm:$0xff]
    %v2218 = vld [vmem:[#allocation12 + $0xaf8] sm:$0xff]
    %v2219 = vld [vmem:[#allocation12 + $0xb00] sm:$0xff]
    %v2220 = vld [vmem:[#allocation12 + $0xb08] sm:$0xff]
    %v2221 = vld [vmem:[#allocation12 + $0xb10] sm:$0xff]
    %v2222 = vld [vmem:[#allocation12 + $0xb18] sm:$0xff]
    %v2223 = vld [vmem:[#allocation12 + $0xb20] sm:$0xff]
    %v2224 = vld [vmem:[#allocation12 + $0xb28] sm:$0xff]
    %v2225 = vld [vmem:[#allocation12 + $0xb30] sm:$0xff]
    %v2226 = vld [vmem:[#allocation12 + $0xb38] sm:$0xff]
    %v2227 = vld [vmem:[#allocation12 + $0xb40] sm:$0xff]
    %v2228 = vld [vmem:[#allocation12 + $0xb48] sm:$0xff]
    %v2229 = vld [vmem:[#allocation12 + $0xb50] sm:$0xff]
    %v2230 = vld [vmem:[#allocation12 + $0xb58] sm:$0xff]
    %v2231 = vld [vmem:[#allocation12 + $0xb60] sm:$0xff]
    %v2232 = vld [vmem:[#allocation12 + $0xb68] sm:$0xff]
    %v2233 = vld [vmem:[#allocation12 + $0xb70] sm:$0xff]
    %v2234 = vld [vmem:[#allocation12 + $0xb78] sm:$0xff]
    %v2235 = vld [vmem:[#allocation12 + $0xb80] sm:$0xff]
    %v2236 = vld [vmem:[#allocation12 + $0xb88] sm:$0xff]
    %v2237 = vld [vmem:[#allocation12 + $0xb90] sm:$0xff]
    %v2238 = vld [vmem:[#allocation12 + $0xb98] sm:$0xff]
    %v2239 = vld [vmem:[#allocation12 + $0xba0] sm:$0xff]
    %v2240 = vld [vmem:[#allocation12 + $0xba8] sm:$0xff]
    %v2241 = vld [vmem:[#allocation12 + $0xbb0] sm:$0xff]
    %v2242 = vld [vmem:[#allocation12 + $0xbb8] sm:$0xff]
    %v2243 = vld [vmem:[#allocation12 + $0xbc0] sm:$0xff]
    %v2244 = vld [vmem:[#allocation12 + $0xbc8] sm:$0xff]
    %v2245 = vld [vmem:[#allocation12 + $0xbd0] sm:$0xff]
    %v2246 = vld [vmem:[#allocation12 + $0xbd8] sm:$0xff]
    %v2247 = vld [vmem:[#allocation12 + $0xbe0] sm:$0xff]
    %v2248 = vld [vmem:[#allocation12 + $0xbe8] sm:$0xff]
    %v2249 = vld [vmem:[#allocation12 + $0xbf0] sm:$0xff]
    %v2250 = vld [vmem:[#allocation12 + $0xbf8] sm:$0xff]
    %v2251 = vld [vmem:[#allocation12 + $0xc00] sm:$0xff]
    %v2252 = vld [vmem:[#allocation12 + $0xc08] sm:$0xff]
    %v2253 = vld [vmem:[#allocation12 + $0xc10] sm:$0xff]
    %v2254 = vld [vmem:[#allocation12 + $0xc18] sm:$0xff]
    %v2255 = vld [vmem:[#allocation12 + $0xc20] sm:$0xff]
    %v2256 = vld [vmem:[#allocation12 + $0xc28] sm:$0xff]
    %v2257 = vld [vmem:[#allocation12 + $0xc30] sm:$0xff]
    %v2258 = vld [vmem:[#allocation12 + $0xc38] sm:$0xff]
    %v2259 = vld [vmem:[#allocation12 + $0xc40] sm:$0xff]
    %v2260 = vld [vmem:[#allocation12 + $0xc48] sm:$0xff]
    %v2261 = vld [vmem:[#allocation12 + $0xc50] sm:$0xff]
    %v2262 = vld [vmem:[#allocation12 + $0xc58] sm:$0xff]
    %v2263 = vld [vmem:[#allocation12 + $0xc60] sm:$0xff]
    %v2264 = vld [vmem:[#allocation12 + $0xc68] sm:$0xff]
    %v2265 = vld [vmem:[#allocation12 + $0xc70] sm:$0xff]
    %v2266 = vld [vmem:[#allocation12 + $0xc78] sm:$0xff]
    %v2267 = vld [vmem:[#allocation12 + $0xc80] sm:$0xff]
    %v2268 = vld [vmem:[#allocation12 + $0xc88] sm:$0xff]
    %v2269 = vld [vmem:[#allocation12 + $0xc90] sm:$0xff]
    %v2270 = vld [vmem:[#allocation12 + $0xc98] sm:$0xff]
    %v2271 = vld [vmem:[#allocation12 + $0xca0] sm:$0xff]
    %v2272 = vld [vmem:[#allocation12 + $0xca8] sm:$0xff]
    %v2273 = vld [vmem:[#allocation12 + $0xcb0] sm:$0xff]
    %v2274 = vld [vmem:[#allocation12 + $0xcb8] sm:$0xff]
    %v2275 = vld [vmem:[#allocation12 + $0xcc0] sm:$0xff]
    %v2276 = vld [vmem:[#allocation12 + $0xcc8] sm:$0xff]
    %v2277 = vld [vmem:[#allocation12 + $0xcd0] sm:$0xff]
    %v2278 = vld [vmem:[#allocation12 + $0xcd8] sm:$0xff]
    %v2279 = vld [vmem:[#allocation12 + $0xce0] sm:$0xff]
    %v2280 = vld [vmem:[#allocation12 + $0xce8] sm:$0xff]
    %v2281 = vld [vmem:[#allocation12 + $0xcf0] sm:$0xff]
    %v2282 = vld [vmem:[#allocation12 + $0xcf8] sm:$0xff]
    %v2283 = vld [vmem:[#allocation12 + $0xd00] sm:$0xff]
    %v2284 = vld [vmem:[#allocation12 + $0xd08] sm:$0xff]
    %v2285 = vld [vmem:[#allocation12 + $0xd10] sm:$0xff]
    %v2286 = vld [vmem:[#allocation12 + $0xd18] sm:$0xff]
    %v2287 = vld [vmem:[#allocation12 + $0xd20] sm:$0xff]
    %v2288 = vld [vmem:[#allocation12 + $0xd28] sm:$0xff]
    %v2289 = vld [vmem:[#allocation12 + $0xd30] sm:$0xff]
    %v2290 = vld [vmem:[#allocation12 + $0xd38] sm:$0xff]
    %v2291 = vld [vmem:[#allocation12 + $0xd40] sm:$0xff]
    %v2292 = vld [vmem:[#allocation12 + $0xd48] sm:$0xff]
    %v2293 = vld [vmem:[#allocation12 + $0xd50] sm:$0xff]
    %v2294 = vld [vmem:[#allocation12 + $0xd58] sm:$0xff]
    %v2295 = vld [vmem:[#allocation12 + $0xd60] sm:$0xff]
    %v2296 = vld [vmem:[#allocation12 + $0xd68] sm:$0xff]
    %v2297 = vld [vmem:[#allocation12 + $0xd70] sm:$0xff]
    %v2298 = vld [vmem:[#allocation12 + $0xd78] sm:$0xff]
    %v2299 = vld [vmem:[#allocation12 + $0xd80] sm:$0xff]
    %v2300 = vld [vmem:[#allocation12 + $0xd88] sm:$0xff]
    %v2301 = vld [vmem:[#allocation12 + $0xd90] sm:$0xff]
    %v2302 = vld [vmem:[#allocation12 + $0xd98] sm:$0xff]
    %v2303 = vld [vmem:[#allocation12 + $0xda0] sm:$0xff]
    %v2304 = vld [vmem:[#allocation12 + $0xda8] sm:$0xff]
    %v2305 = vld [vmem:[#allocation12 + $0xdb0] sm:$0xff]
    %v2306 = vld [vmem:[#allocation12 + $0xdb8] sm:$0xff]
    %v2307 = vld [vmem:[#allocation12 + $0xdc0] sm:$0xff]
    %v2308 = vld [vmem:[#allocation12 + $0xdc8] sm:$0xff]
    %v2309 = vld [vmem:[#allocation12 + $0xdd0] sm:$0xff]
    %v2310 = vld [vmem:[#allocation12 + $0xdd8] sm:$0xff]
    %v2311 = vld [vmem:[#allocation12 + $0xde0] sm:$0xff]
    %v2312 = vld [vmem:[#allocation12 + $0xde8] sm:$0xff]
    %v2313 = vld [vmem:[#allocation12 + $0xdf0] sm:$0xff]
    %v2314 = vld [vmem:[#allocation12 + $0xdf8] sm:$0xff]
    %v2315 = vld [vmem:[#allocation12 + $0xe00] sm:$0xff]
    %v2316 = vld [vmem:[#allocation12 + $0xe08] sm:$0xff]
    %v2317 = vld [vmem:[#allocation12 + $0xe10] sm:$0xff]
    %v2318 = vld [vmem:[#allocation12 + $0xe18] sm:$0xff]
    %v2319 = vld [vmem:[#allocation12 + $0xe20] sm:$0xff]
    %v2320 = vld [vmem:[#allocation12 + $0xe28] sm:$0xff]
    %v2321 = vld [vmem:[#allocation12 + $0xe30] sm:$0xff]
    %v2322 = vld [vmem:[#allocation12 + $0xe38] sm:$0xff]
    %v2323 = vld [vmem:[#allocation12 + $0xe40] sm:$0xff]
    %v2324 = vld [vmem:[#allocation12 + $0xe48] sm:$0xff]
    %v2325 = vld [vmem:[#allocation12 + $0xe50] sm:$0xff]
    %v2326 = vld [vmem:[#allocation12 + $0xe58] sm:$0xff]
    %v2327 = vld [vmem:[#allocation12 + $0xe60] sm:$0xff]
    %v2328 = vld [vmem:[#allocation12 + $0xe68] sm:$0xff]
    %v2329 = vld [vmem:[#allocation12 + $0xe70] sm:$0xff]
    %v2330 = vld [vmem:[#allocation12 + $0xe78] sm:$0xff]
    %v2331 = vld [vmem:[#allocation12 + $0xe80] sm:$0xff]
    %v2332 = vld [vmem:[#allocation12 + $0xe88] sm:$0xff]
    %v2333 = vld [vmem:[#allocation12 + $0xe90] sm:$0xff]
    %v2334 = vld [vmem:[#allocation12 + $0xe98] sm:$0xff]
    %v2335 = vld [vmem:[#allocation12 + $0xea0] sm:$0xff]
    %v2336 = vld [vmem:[#allocation12 + $0xea8] sm:$0xff]
    %v2337 = vld [vmem:[#allocation12 + $0xeb0] sm:$0xff]
    %v2338 = vld [vmem:[#allocation12 + $0xeb8] sm:$0xff]
    %v2339 = vld [vmem:[#allocation12 + $0xec0] sm:$0xff]
    %v2340 = vld [vmem:[#allocation12 + $0xec8] sm:$0xff]
    %v2341 = vld [vmem:[#allocation12 + $0xed0] sm:$0xff]
    %v2342 = vld [vmem:[#allocation12 + $0xed8] sm:$0xff]
    %v2343 = vld [vmem:[#allocation12 + $0xee0] sm:$0xff]
    %v2344 = vld [vmem:[#allocation12 + $0xee8] sm:$0xff]
    %v2345 = vld [vmem:[#allocation12 + $0xef0] sm:$0xff]
    %v2346 = vld [vmem:[#allocation12 + $0xef8] sm:$0xff]
    %v2347 = vld [vmem:[#allocation12 + $0xf00] sm:$0xff]
    %v2348 = vld [vmem:[#allocation12 + $0xf08] sm:$0xff]
    %v2349 = vld [vmem:[#allocation12 + $0xf10] sm:$0xff]
    %v2350 = vld [vmem:[#allocation12 + $0xf18] sm:$0xff]
    %v2351 = vld [vmem:[#allocation12 + $0xf20] sm:$0xff]
    %v2352 = vld [vmem:[#allocation12 + $0xf28] sm:$0xff]
    %v2353 = vld [vmem:[#allocation12 + $0xf30] sm:$0xff]
    %v2354 = vld [vmem:[#allocation12 + $0xf38] sm:$0xff]
    %v2355 = vld [vmem:[#allocation12 + $0xf40] sm:$0xff]
    %v2356 = vld [vmem:[#allocation12 + $0xf48] sm:$0xff]
    %v2357 = vld [vmem:[#allocation12 + $0xf50] sm:$0xff]
    %v2358 = vld [vmem:[#allocation12 + $0xf58] sm:$0xff]
    %v2359 = vld [vmem:[#allocation12 + $0xf60] sm:$0xff]
    %v2360 = vld [vmem:[#allocation12 + $0xf68] sm:$0xff]
    %v2361 = vld [vmem:[#allocation12 + $0xf70] sm:$0xff]
    %v2362 = vld [vmem:[#allocation12 + $0xf78] sm:$0xff]
    %v2363 = vld [vmem:[#allocation12 + $0xf80] sm:$0xff]
    %v2364 = vld [vmem:[#allocation12 + $0xf88] sm:$0xff]
    %v2365 = vld [vmem:[#allocation12 + $0xf90] sm:$0xff]
    %v2366 = vld [vmem:[#allocation12 + $0xf98] sm:$0xff]
    %v2367 = vld [vmem:[#allocation12 + $0xfa0] sm:$0xff]
    %v2368 = vld [vmem:[#allocation12 + $0xfa8] sm:$0xff]
    %v2369 = vld [vmem:[#allocation12 + $0xfb0] sm:$0xff]
    %v2370 = vld [vmem:[#allocation12 + $0xfb8] sm:$0xff]
    %v2371 = vld [vmem:[#allocation12 + $0xfc0] sm:$0xff]
    %v2372 = vld [vmem:[#allocation12 + $0xfc8] sm:$0xff]
    %v2373 = vld [vmem:[#allocation12 + $0xfd0] sm:$0xff]
    %v2374 = vld [vmem:[#allocation12 + $0xfd8] sm:$0xff]
    %v2375 = vld [vmem:[#allocation12 + $0xfe0] sm:$0xff]
    %v2376 = vld [vmem:[#allocation12 + $0xfe8] sm:$0xff]
    %v2377 = vld [vmem:[#allocation12 + $0xff0] sm:$0xff]
    %v2378 = vld [vmem:[#allocation12 + $0xff8] sm:$0xff]
    %v2379 = vld [vmem:[#allocation14] sm:$0xf]
    %v2381 = vlaneseq
    %v2382 = vshrl.u32 %v2381, 7
    %v2383 = vsub.s32 0, %v2382
    %v2384 = vrot.slane %v2379, %v2383
    %v2385 = vlaneseq
    %v2386 = vshrl.u32 %v2385, 7
    %v2387 = vsub.s32 1, %v2386
    %v2388 = vrot.slane %v2379, %v2387
    %v2389 = vlaneseq
    %v2390 = vshrl.u32 %v2389, 7
    %v2391 = vsub.s32 2, %v2390
    %v2392 = vrot.slane %v2379, %v2391
    %v2393 = vlaneseq
    %v2394 = vshrl.u32 %v2393, 7
    %v2395 = vsub.s32 3, %v2394
    %v2396 = vrot.slane %v2379, %v2395
    %v2913 = vunpack.c.l.b16 %v1867
    %v2914 = vunpack.c.h.b16 %v1867
    %v2915 = vunpack.c.l.b16 %v1868
    %v2916 = vunpack.c.h.b16 %v1868
    %v2917 = vunpack.c.l.b16 %v1869
    %v2918 = vunpack.c.h.b16 %v1869
    %v2919 = vunpack.c.l.b16 %v1870
    %v2920 = vunpack.c.h.b16 %v1870
    %v2921 = vunpack.c.l.b16 %v1871
    %v2922 = vunpack.c.h.b16 %v1871
    %v2923 = vunpack.c.l.b16 %v1872
    %v2924 = vunpack.c.h.b16 %v1872
    %v2925 = vunpack.c.l.b16 %v1873
    %v2926 = vunpack.c.h.b16 %v1873
    %v2927 = vunpack.c.l.b16 %v1874
    %v2928 = vunpack.c.h.b16 %v1874
    %v2929 = vunpack.c.l.b16 %v1875
    %v2930 = vunpack.c.h.b16 %v1875
    %v2931 = vunpack.c.l.b16 %v1876
    %v2932 = vunpack.c.h.b16 %v1876
    %v2933 = vunpack.c.l.b16 %v1877
    %v2934 = vunpack.c.h.b16 %v1877
    %v2935 = vunpack.c.l.b16 %v1878
    %v2936 = vunpack.c.h.b16 %v1878
    %v2937 = vunpack.c.l.b16 %v1879
    %v2938 = vunpack.c.h.b16 %v1879
    %v2939 = vunpack.c.l.b16 %v1880
    %v2940 = vunpack.c.h.b16 %v1880
    %v2941 = vunpack.c.l.b16 %v1881
    %v2942 = vunpack.c.h.b16 %v1881
    %v2943 = vunpack.c.l.b16 %v1882
    %v2944 = vunpack.c.h.b16 %v1882
    %v2945 = vunpack.c.l.b16 %v1883
    %v2946 = vunpack.c.h.b16 %v1883
    %v2947 = vunpack.c.l.b16 %v1884
    %v2948 = vunpack.c.h.b16 %v1884
    %v2949 = vunpack.c.l.b16 %v1885
    %v2950 = vunpack.c.h.b16 %v1885
    %v2951 = vunpack.c.l.b16 %v1886
    %v2952 = vunpack.c.h.b16 %v1886
    %v2953 = vunpack.c.l.b16 %v1887
    %v2954 = vunpack.c.h.b16 %v1887
    %v2955 = vunpack.c.l.b16 %v1888
    %v2956 = vunpack.c.h.b16 %v1888
    %v2957 = vunpack.c.l.b16 %v1889
    %v2958 = vunpack.c.h.b16 %v1889
    %v2959 = vunpack.c.l.b16 %v1890
    %v2960 = vunpack.c.h.b16 %v1890
    %v2961 = vunpack.c.l.b16 %v1891
    %v2962 = vunpack.c.h.b16 %v1891
    %v2963 = vunpack.c.l.b16 %v1892
    %v2964 = vunpack.c.h.b16 %v1892
    %v2965 = vunpack.c.l.b16 %v1893
    %v2966 = vunpack.c.h.b16 %v1893
    %v2967 = vunpack.c.l.b16 %v1894
    %v2968 = vunpack.c.h.b16 %v1894
    %v2969 = vunpack.c.l.b16 %v1895
    %v2970 = vunpack.c.h.b16 %v1895
    %v2971 = vunpack.c.l.b16 %v1896
    %v2972 = vunpack.c.h.b16 %v1896
    %v2973 = vunpack.c.l.b16 %v1897
    %v2974 = vunpack.c.h.b16 %v1897
    %v2975 = vunpack.c.l.b16 %v1898
    %v2976 = vunpack.c.h.b16 %v1898
    %v2977 = vunpack.c.l.b16 %v1899
    %v2978 = vunpack.c.h.b16 %v1899
    %v2979 = vunpack.c.l.b16 %v1900
    %v2980 = vunpack.c.h.b16 %v1900
    %v2981 = vunpack.c.l.b16 %v1901
    %v2982 = vunpack.c.h.b16 %v1901
    %v2983 = vunpack.c.l.b16 %v1902
    %v2984 = vunpack.c.h.b16 %v1902
    %v2985 = vunpack.c.l.b16 %v1903
    %v2986 = vunpack.c.h.b16 %v1903
    %v2987 = vunpack.c.l.b16 %v1904
    %v2988 = vunpack.c.h.b16 %v1904
    %v2989 = vunpack.c.l.b16 %v1905
    %v2990 = vunpack.c.h.b16 %v1905
    %v2991 = vunpack.c.l.b16 %v1906
    %v2992 = vunpack.c.h.b16 %v1906
    %v2993 = vunpack.c.l.b16 %v1907
    %v2994 = vunpack.c.h.b16 %v1907
    %v2995 = vunpack.c.l.b16 %v1908
    %v2996 = vunpack.c.h.b16 %v1908
    %v2997 = vunpack.c.l.b16 %v1909
    %v2998 = vunpack.c.h.b16 %v1909
    %v2999 = vunpack.c.l.b16 %v1910
    %v3000 = vunpack.c.h.b16 %v1910
    %v3001 = vunpack.c.l.b16 %v1911
    %v3002 = vunpack.c.h.b16 %v1911
    %v3003 = vunpack.c.l.b16 %v1912
    %v3004 = vunpack.c.h.b16 %v1912
    %v3005 = vunpack.c.l.b16 %v1913
    %v3006 = vunpack.c.h.b16 %v1913
    %v3007 = vunpack.c.l.b16 %v1914
    %v3008 = vunpack.c.h.b16 %v1914
    %v3009 = vunpack.c.l.b16 %v1915
    %v3010 = vunpack.c.h.b16 %v1915
    %v3011 = vunpack.c.l.b16 %v1916
    %v3012 = vunpack.c.h.b16 %v1916
    %v3013 = vunpack.c.l.b16 %v1917
    %v3014 = vunpack.c.h.b16 %v1917
    %v3015 = vunpack.c.l.b16 %v1918
    %v3016 = vunpack.c.h.b16 %v1918
    %v3017 = vunpack.c.l.b16 %v1919
    %v3018 = vunpack.c.h.b16 %v1919
    %v3019 = vunpack.c.l.b16 %v1920
    %v3020 = vunpack.c.h.b16 %v1920
    %v3021 = vunpack.c.l.b16 %v1921
    %v3022 = vunpack.c.h.b16 %v1921
    %v3023 = vunpack.c.l.b16 %v1922
    %v3024 = vunpack.c.h.b16 %v1922
    %v3025 = vunpack.c.l.b16 %v1923
    %v3026 = vunpack.c.h.b16 %v1923
    %v3027 = vunpack.c.l.b16 %v1924
    %v3028 = vunpack.c.h.b16 %v1924
    %v3029 = vunpack.c.l.b16 %v1925
    %v3030 = vunpack.c.h.b16 %v1925
    %v3031 = vunpack.c.l.b16 %v1926
    %v3032 = vunpack.c.h.b16 %v1926
    %v3033 = vunpack.c.l.b16 %v1927
    %v3034 = vunpack.c.h.b16 %v1927
    %v3035 = vunpack.c.l.b16 %v1928
    %v3036 = vunpack.c.h.b16 %v1928
    %v3037 = vunpack.c.l.b16 %v1929
    %v3038 = vunpack.c.h.b16 %v1929
    %v3039 = vunpack.c.l.b16 %v1930
    %v3040 = vunpack.c.h.b16 %v1930
    %v3041 = vunpack.c.l.b16 %v1931
    %v3042 = vunpack.c.h.b16 %v1931
    %v3043 = vunpack.c.l.b16 %v1932
    %v3044 = vunpack.c.h.b16 %v1932
    %v3045 = vunpack.c.l.b16 %v1933
    %v3046 = vunpack.c.h.b16 %v1933
    %v3047 = vunpack.c.l.b16 %v1934
    %v3048 = vunpack.c.h.b16 %v1934
    %v3049 = vunpack.c.l.b16 %v1935
    %v3050 = vunpack.c.h.b16 %v1935
    %v3051 = vunpack.c.l.b16 %v1936
    %v3052 = vunpack.c.h.b16 %v1936
    %v3053 = vunpack.c.l.b16 %v1937
    %v3054 = vunpack.c.h.b16 %v1937
    %v3055 = vunpack.c.l.b16 %v1938
    %v3056 = vunpack.c.h.b16 %v1938
    %v3057 = vunpack.c.l.b16 %v1939
    %v3058 = vunpack.c.h.b16 %v1939
    %v3059 = vunpack.c.l.b16 %v1940
    %v3060 = vunpack.c.h.b16 %v1940
    %v3061 = vunpack.c.l.b16 %v1941
    %v3062 = vunpack.c.h.b16 %v1941
    %v3063 = vunpack.c.l.b16 %v1942
    %v3064 = vunpack.c.h.b16 %v1942
    %v3065 = vunpack.c.l.b16 %v1943
    %v3066 = vunpack.c.h.b16 %v1943
    %v3067 = vunpack.c.l.b16 %v1944
    %v3068 = vunpack.c.h.b16 %v1944
    %v3069 = vunpack.c.l.b16 %v1945
    %v3070 = vunpack.c.h.b16 %v1945
    %v3071 = vunpack.c.l.b16 %v1946
    %v3072 = vunpack.c.h.b16 %v1946
    %v3073 = vunpack.c.l.b16 %v1947
    %v3074 = vunpack.c.h.b16 %v1947
    %v3075 = vunpack.c.l.b16 %v1948
    %v3076 = vunpack.c.h.b16 %v1948
    %v3077 = vunpack.c.l.b16 %v1949
    %v3078 = vunpack.c.h.b16 %v1949
    %v3079 = vunpack.c.l.b16 %v1950
    %v3080 = vunpack.c.h.b16 %v1950
    %v3081 = vunpack.c.l.b16 %v1951
    %v3082 = vunpack.c.h.b16 %v1951
    %v3083 = vunpack.c.l.b16 %v1952
    %v3084 = vunpack.c.h.b16 %v1952
    %v3085 = vunpack.c.l.b16 %v1953
    %v3086 = vunpack.c.h.b16 %v1953
    %v3087 = vunpack.c.l.b16 %v1954
    %v3088 = vunpack.c.h.b16 %v1954
    %v3089 = vunpack.c.l.b16 %v1955
    %v3090 = vunpack.c.h.b16 %v1955
    %v3091 = vunpack.c.l.b16 %v1956
    %v3092 = vunpack.c.h.b16 %v1956
    %v3093 = vunpack.c.l.b16 %v1957
    %v3094 = vunpack.c.h.b16 %v1957
    %v3095 = vunpack.c.l.b16 %v1958
    %v3096 = vunpack.c.h.b16 %v1958
    %v3097 = vunpack.c.l.b16 %v1959
    %v3098 = vunpack.c.h.b16 %v1959
    %v3099 = vunpack.c.l.b16 %v1960
    %v3100 = vunpack.c.h.b16 %v1960
    %v3101 = vunpack.c.l.b16 %v1961
    %v3102 = vunpack.c.h.b16 %v1961
    %v3103 = vunpack.c.l.b16 %v1962
    %v3104 = vunpack.c.h.b16 %v1962
    %v3105 = vunpack.c.l.b16 %v1963
    %v3106 = vunpack.c.h.b16 %v1963
    %v3107 = vunpack.c.l.b16 %v1964
    %v3108 = vunpack.c.h.b16 %v1964
    %v3109 = vunpack.c.l.b16 %v1965
    %v3110 = vunpack.c.h.b16 %v1965
    %v3111 = vunpack.c.l.b16 %v1966
    %v3112 = vunpack.c.h.b16 %v1966
    %v3113 = vunpack.c.l.b16 %v1967
    %v3114 = vunpack.c.h.b16 %v1967
    %v3115 = vunpack.c.l.b16 %v1968
    %v3116 = vunpack.c.h.b16 %v1968
    %v3117 = vunpack.c.l.b16 %v1969
    %v3118 = vunpack.c.h.b16 %v1969
    %v3119 = vunpack.c.l.b16 %v1970
    %v3120 = vunpack.c.h.b16 %v1970
    %v3121 = vunpack.c.l.b16 %v1971
    %v3122 = vunpack.c.h.b16 %v1971
    %v3123 = vunpack.c.l.b16 %v1972
    %v3124 = vunpack.c.h.b16 %v1972
    %v3125 = vunpack.c.l.b16 %v1973
    %v3126 = vunpack.c.h.b16 %v1973
    %v3127 = vunpack.c.l.b16 %v1974
    %v3128 = vunpack.c.h.b16 %v1974
    %v3129 = vunpack.c.l.b16 %v1975
    %v3130 = vunpack.c.h.b16 %v1975
    %v3131 = vunpack.c.l.b16 %v1976
    %v3132 = vunpack.c.h.b16 %v1976
    %v3133 = vunpack.c.l.b16 %v1977
    %v3134 = vunpack.c.h.b16 %v1977
    %v3135 = vunpack.c.l.b16 %v1978
    %v3136 = vunpack.c.h.b16 %v1978
    %v3137 = vunpack.c.l.b16 %v1979
    %v3138 = vunpack.c.h.b16 %v1979
    %v3139 = vunpack.c.l.b16 %v1980
    %v3140 = vunpack.c.h.b16 %v1980
    %v3141 = vunpack.c.l.b16 %v1981
    %v3142 = vunpack.c.h.b16 %v1981
    %v3143 = vunpack.c.l.b16 %v1982
    %v3144 = vunpack.c.h.b16 %v1982
    %v3145 = vunpack.c.l.b16 %v1983
    %v3146 = vunpack.c.h.b16 %v1983
    %v3147 = vunpack.c.l.b16 %v1984
    %v3148 = vunpack.c.h.b16 %v1984
    %v3149 = vunpack.c.l.b16 %v1985
    %v3150 = vunpack.c.h.b16 %v1985
    %v3151 = vunpack.c.l.b16 %v1986
    %v3152 = vunpack.c.h.b16 %v1986
    %v3153 = vunpack.c.l.b16 %v1987
    %v3154 = vunpack.c.h.b16 %v1987
    %v3155 = vunpack.c.l.b16 %v1988
    %v3156 = vunpack.c.h.b16 %v1988
    %v3157 = vunpack.c.l.b16 %v1989
    %v3158 = vunpack.c.h.b16 %v1989
    %v3159 = vunpack.c.l.b16 %v1990
    %v3160 = vunpack.c.h.b16 %v1990
    %v3161 = vunpack.c.l.b16 %v1991
    %v3162 = vunpack.c.h.b16 %v1991
    %v3163 = vunpack.c.l.b16 %v1992
    %v3164 = vunpack.c.h.b16 %v1992
    %v3165 = vunpack.c.l.b16 %v1993
    %v3166 = vunpack.c.h.b16 %v1993
    %v3167 = vunpack.c.l.b16 %v1994
    %v3168 = vunpack.c.h.b16 %v1994
    %v3169 = vunpack.c.l.b16 %v1995
    %v3170 = vunpack.c.h.b16 %v1995
    %v3171 = vunpack.c.l.b16 %v1996
    %v3172 = vunpack.c.h.b16 %v1996
    %v3173 = vunpack.c.l.b16 %v1997
    %v3174 = vunpack.c.h.b16 %v1997
    %v3175 = vunpack.c.l.b16 %v1998
    %v3176 = vunpack.c.h.b16 %v1998
    %v3177 = vunpack.c.l.b16 %v1999
    %v3178 = vunpack.c.h.b16 %v1999
    %v3179 = vunpack.c.l.b16 %v2000
    %v3180 = vunpack.c.h.b16 %v2000
    %v3181 = vunpack.c.l.b16 %v2001
    %v3182 = vunpack.c.h.b16 %v2001
    %v3183 = vunpack.c.l.b16 %v2002
    %v3184 = vunpack.c.h.b16 %v2002
    %v3185 = vunpack.c.l.b16 %v2003
    %v3186 = vunpack.c.h.b16 %v2003
    %v3187 = vunpack.c.l.b16 %v2004
    %v3188 = vunpack.c.h.b16 %v2004
    %v3189 = vunpack.c.l.b16 %v2005
    %v3190 = vunpack.c.h.b16 %v2005
    %v3191 = vunpack.c.l.b16 %v2006
    %v3192 = vunpack.c.h.b16 %v2006
    %v3193 = vunpack.c.l.b16 %v2007
    %v3194 = vunpack.c.h.b16 %v2007
    %v3195 = vunpack.c.l.b16 %v2008
    %v3196 = vunpack.c.h.b16 %v2008
    %v3197 = vunpack.c.l.b16 %v2009
    %v3198 = vunpack.c.h.b16 %v2009
    %v3199 = vunpack.c.l.b16 %v2010
    %v3200 = vunpack.c.h.b16 %v2010
    %v3201 = vunpack.c.l.b16 %v2011
    %v3202 = vunpack.c.h.b16 %v2011
    %v3203 = vunpack.c.l.b16 %v2012
    %v3204 = vunpack.c.h.b16 %v2012
    %v3205 = vunpack.c.l.b16 %v2013
    %v3206 = vunpack.c.h.b16 %v2013
    %v3207 = vunpack.c.l.b16 %v2014
    %v3208 = vunpack.c.h.b16 %v2014
    %v3209 = vunpack.c.l.b16 %v2015
    %v3210 = vunpack.c.h.b16 %v2015
    %v3211 = vunpack.c.l.b16 %v2016
    %v3212 = vunpack.c.h.b16 %v2016
    %v3213 = vunpack.c.l.b16 %v2017
    %v3214 = vunpack.c.h.b16 %v2017
    %v3215 = vunpack.c.l.b16 %v2018
    %v3216 = vunpack.c.h.b16 %v2018
    %v3217 = vunpack.c.l.b16 %v2019
    %v3218 = vunpack.c.h.b16 %v2019
    %v3219 = vunpack.c.l.b16 %v2020
    %v3220 = vunpack.c.h.b16 %v2020
    %v3221 = vunpack.c.l.b16 %v2021
    %v3222 = vunpack.c.h.b16 %v2021
    %v3223 = vunpack.c.l.b16 %v2022
    %v3224 = vunpack.c.h.b16 %v2022
    %v3225 = vunpack.c.l.b16 %v2023
    %v3226 = vunpack.c.h.b16 %v2023
    %v3227 = vunpack.c.l.b16 %v2024
    %v3228 = vunpack.c.h.b16 %v2024
    %v3229 = vunpack.c.l.b16 %v2025
    %v3230 = vunpack.c.h.b16 %v2025
    %v3231 = vunpack.c.l.b16 %v2026
    %v3232 = vunpack.c.h.b16 %v2026
    %v3233 = vunpack.c.l.b16 %v2027
    %v3234 = vunpack.c.h.b16 %v2027
    %v3235 = vunpack.c.l.b16 %v2028
    %v3236 = vunpack.c.h.b16 %v2028
    %v3237 = vunpack.c.l.b16 %v2029
    %v3238 = vunpack.c.h.b16 %v2029
    %v3239 = vunpack.c.l.b16 %v2030
    %v3240 = vunpack.c.h.b16 %v2030
    %v3241 = vunpack.c.l.b16 %v2031
    %v3242 = vunpack.c.h.b16 %v2031
    %v3243 = vunpack.c.l.b16 %v2032
    %v3244 = vunpack.c.h.b16 %v2032
    %v3245 = vunpack.c.l.b16 %v2033
    %v3246 = vunpack.c.h.b16 %v2033
    %v3247 = vunpack.c.l.b16 %v2034
    %v3248 = vunpack.c.h.b16 %v2034
    %v3249 = vunpack.c.l.b16 %v2035
    %v3250 = vunpack.c.h.b16 %v2035
    %v3251 = vunpack.c.l.b16 %v2036
    %v3252 = vunpack.c.h.b16 %v2036
    %v3253 = vunpack.c.l.b16 %v2037
    %v3254 = vunpack.c.h.b16 %v2037
    %v3255 = vunpack.c.l.b16 %v2038
    %v3256 = vunpack.c.h.b16 %v2038
    %v3257 = vunpack.c.l.b16 %v2039
    %v3258 = vunpack.c.h.b16 %v2039
    %v3259 = vunpack.c.l.b16 %v2040
    %v3260 = vunpack.c.h.b16 %v2040
    %v3261 = vunpack.c.l.b16 %v2041
    %v3262 = vunpack.c.h.b16 %v2041
    %v3263 = vunpack.c.l.b16 %v2042
    %v3264 = vunpack.c.h.b16 %v2042
    %v3265 = vunpack.c.l.b16 %v2043
    %v3266 = vunpack.c.h.b16 %v2043
    %v3267 = vunpack.c.l.b16 %v2044
    %v3268 = vunpack.c.h.b16 %v2044
    %v3269 = vunpack.c.l.b16 %v2045
    %v3270 = vunpack.c.h.b16 %v2045
    %v3271 = vunpack.c.l.b16 %v2046
    %v3272 = vunpack.c.h.b16 %v2046
    %v3273 = vunpack.c.l.b16 %v2047
    %v3274 = vunpack.c.h.b16 %v2047
    %v3275 = vunpack.c.l.b16 %v2048
    %v3276 = vunpack.c.h.b16 %v2048
    %v3277 = vunpack.c.l.b16 %v2049
    %v3278 = vunpack.c.h.b16 %v2049
    %v3279 = vunpack.c.l.b16 %v2050
    %v3280 = vunpack.c.h.b16 %v2050
    %v3281 = vunpack.c.l.b16 %v2051
    %v3282 = vunpack.c.h.b16 %v2051
    %v3283 = vunpack.c.l.b16 %v2052
    %v3284 = vunpack.c.h.b16 %v2052
    %v3285 = vunpack.c.l.b16 %v2053
    %v3286 = vunpack.c.h.b16 %v2053
    %v3287 = vunpack.c.l.b16 %v2054
    %v3288 = vunpack.c.h.b16 %v2054
    %v3289 = vunpack.c.l.b16 %v2055
    %v3290 = vunpack.c.h.b16 %v2055
    %v3291 = vunpack.c.l.b16 %v2056
    %v3292 = vunpack.c.h.b16 %v2056
    %v3293 = vunpack.c.l.b16 %v2057
    %v3294 = vunpack.c.h.b16 %v2057
    %v3295 = vunpack.c.l.b16 %v2058
    %v3296 = vunpack.c.h.b16 %v2058
    %v3297 = vunpack.c.l.b16 %v2059
    %v3298 = vunpack.c.h.b16 %v2059
    %v3299 = vunpack.c.l.b16 %v2060
    %v3300 = vunpack.c.h.b16 %v2060
    %v3301 = vunpack.c.l.b16 %v2061
    %v3302 = vunpack.c.h.b16 %v2061
    %v3303 = vunpack.c.l.b16 %v2062
    %v3304 = vunpack.c.h.b16 %v2062
    %v3305 = vunpack.c.l.b16 %v2063
    %v3306 = vunpack.c.h.b16 %v2063
    %v3307 = vunpack.c.l.b16 %v2064
    %v3308 = vunpack.c.h.b16 %v2064
    %v3309 = vunpack.c.l.b16 %v2065
    %v3310 = vunpack.c.h.b16 %v2065
    %v3311 = vunpack.c.l.b16 %v2066
    %v3312 = vunpack.c.h.b16 %v2066
    %v3313 = vunpack.c.l.b16 %v2067
    %v3314 = vunpack.c.h.b16 %v2067
    %v3315 = vunpack.c.l.b16 %v2068
    %v3316 = vunpack.c.h.b16 %v2068
    %v3317 = vunpack.c.l.b16 %v2069
    %v3318 = vunpack.c.h.b16 %v2069
    %v3319 = vunpack.c.l.b16 %v2070
    %v3320 = vunpack.c.h.b16 %v2070
    %v3321 = vunpack.c.l.b16 %v2071
    %v3322 = vunpack.c.h.b16 %v2071
    %v3323 = vunpack.c.l.b16 %v2072
    %v3324 = vunpack.c.h.b16 %v2072
    %v3325 = vunpack.c.l.b16 %v2073
    %v3326 = vunpack.c.h.b16 %v2073
    %v3327 = vunpack.c.l.b16 %v2074
    %v3328 = vunpack.c.h.b16 %v2074
    %v3329 = vunpack.c.l.b16 %v2075
    %v3330 = vunpack.c.h.b16 %v2075
    %v3331 = vunpack.c.l.b16 %v2076
    %v3332 = vunpack.c.h.b16 %v2076
    %v3333 = vunpack.c.l.b16 %v2077
    %v3334 = vunpack.c.h.b16 %v2077
    %v3335 = vunpack.c.l.b16 %v2078
    %v3336 = vunpack.c.h.b16 %v2078
    %v3337 = vunpack.c.l.b16 %v2079
    %v3338 = vunpack.c.h.b16 %v2079
    %v3339 = vunpack.c.l.b16 %v2080
    %v3340 = vunpack.c.h.b16 %v2080
    %v3341 = vunpack.c.l.b16 %v2081
    %v3342 = vunpack.c.h.b16 %v2081
    %v3343 = vunpack.c.l.b16 %v2082
    %v3344 = vunpack.c.h.b16 %v2082
    %v3345 = vunpack.c.l.b16 %v2083
    %v3346 = vunpack.c.h.b16 %v2083
    %v3347 = vunpack.c.l.b16 %v2084
    %v3348 = vunpack.c.h.b16 %v2084
    %v3349 = vunpack.c.l.b16 %v2085
    %v3350 = vunpack.c.h.b16 %v2085
    %v3351 = vunpack.c.l.b16 %v2086
    %v3352 = vunpack.c.h.b16 %v2086
    %v3353 = vunpack.c.l.b16 %v2087
    %v3354 = vunpack.c.h.b16 %v2087
    %v3355 = vunpack.c.l.b16 %v2088
    %v3356 = vunpack.c.h.b16 %v2088
    %v3357 = vunpack.c.l.b16 %v2089
    %v3358 = vunpack.c.h.b16 %v2089
    %v3359 = vunpack.c.l.b16 %v2090
    %v3360 = vunpack.c.h.b16 %v2090
    %v3361 = vunpack.c.l.b16 %v2091
    %v3362 = vunpack.c.h.b16 %v2091
    %v3363 = vunpack.c.l.b16 %v2092
    %v3364 = vunpack.c.h.b16 %v2092
    %v3365 = vunpack.c.l.b16 %v2093
    %v3366 = vunpack.c.h.b16 %v2093
    %v3367 = vunpack.c.l.b16 %v2094
    %v3368 = vunpack.c.h.b16 %v2094
    %v3369 = vunpack.c.l.b16 %v2095
    %v3370 = vunpack.c.h.b16 %v2095
    %v3371 = vunpack.c.l.b16 %v2096
    %v3372 = vunpack.c.h.b16 %v2096
    %v3373 = vunpack.c.l.b16 %v2097
    %v3374 = vunpack.c.h.b16 %v2097
    %v3375 = vunpack.c.l.b16 %v2098
    %v3376 = vunpack.c.h.b16 %v2098
    %v3377 = vunpack.c.l.b16 %v2099
    %v3378 = vunpack.c.h.b16 %v2099
    %v3379 = vunpack.c.l.b16 %v2100
    %v3380 = vunpack.c.h.b16 %v2100
    %v3381 = vunpack.c.l.b16 %v2101
    %v3382 = vunpack.c.h.b16 %v2101
    %v3383 = vunpack.c.l.b16 %v2102
    %v3384 = vunpack.c.h.b16 %v2102
    %v3385 = vunpack.c.l.b16 %v2103
    %v3386 = vunpack.c.h.b16 %v2103
    %v3387 = vunpack.c.l.b16 %v2104
    %v3388 = vunpack.c.h.b16 %v2104
    %v3389 = vunpack.c.l.b16 %v2105
    %v3390 = vunpack.c.h.b16 %v2105
    %v3391 = vunpack.c.l.b16 %v2106
    %v3392 = vunpack.c.h.b16 %v2106
    %v3393 = vunpack.c.l.b16 %v2107
    %v3394 = vunpack.c.h.b16 %v2107
    %v3395 = vunpack.c.l.b16 %v2108
    %v3396 = vunpack.c.h.b16 %v2108
    %v3397 = vunpack.c.l.b16 %v2109
    %v3398 = vunpack.c.h.b16 %v2109
    %v3399 = vunpack.c.l.b16 %v2110
    %v3400 = vunpack.c.h.b16 %v2110
    %v3401 = vunpack.c.l.b16 %v2111
    %v3402 = vunpack.c.h.b16 %v2111
    %v3403 = vunpack.c.l.b16 %v2112
    %v3404 = vunpack.c.h.b16 %v2112
    %v3405 = vunpack.c.l.b16 %v2113
    %v3406 = vunpack.c.h.b16 %v2113
    %v3407 = vunpack.c.l.b16 %v2114
    %v3408 = vunpack.c.h.b16 %v2114
    %v3409 = vunpack.c.l.b16 %v2115
    %v3410 = vunpack.c.h.b16 %v2115
    %v3411 = vunpack.c.l.b16 %v2116
    %v3412 = vunpack.c.h.b16 %v2116
    %v3413 = vunpack.c.l.b16 %v2117
    %v3414 = vunpack.c.h.b16 %v2117
    %v3415 = vunpack.c.l.b16 %v2118
    %v3416 = vunpack.c.h.b16 %v2118
    %v3417 = vunpack.c.l.b16 %v2119
    %v3418 = vunpack.c.h.b16 %v2119
    %v3419 = vunpack.c.l.b16 %v2120
    %v3420 = vunpack.c.h.b16 %v2120
    %v3421 = vunpack.c.l.b16 %v2121
    %v3422 = vunpack.c.h.b16 %v2121
    %v3423 = vunpack.c.l.b16 %v2122
    %v3424 = vunpack.c.h.b16 %v2122
    %v3425 = vunpack.c.l.b16 %v2123
    %v3426 = vunpack.c.h.b16 %v2123
    %v3427 = vunpack.c.l.b16 %v2124
    %v3428 = vunpack.c.h.b16 %v2124
    %v3429 = vunpack.c.l.b16 %v2125
    %v3430 = vunpack.c.h.b16 %v2125
    %v3431 = vunpack.c.l.b16 %v2126
    %v3432 = vunpack.c.h.b16 %v2126
    %v3433 = vunpack.c.l.b16 %v2127
    %v3434 = vunpack.c.h.b16 %v2127
    %v3435 = vunpack.c.l.b16 %v2128
    %v3436 = vunpack.c.h.b16 %v2128
    %v3437 = vunpack.c.l.b16 %v2129
    %v3438 = vunpack.c.h.b16 %v2129
    %v3439 = vunpack.c.l.b16 %v2130
    %v3440 = vunpack.c.h.b16 %v2130
    %v3441 = vunpack.c.l.b16 %v2131
    %v3442 = vunpack.c.h.b16 %v2131
    %v3443 = vunpack.c.l.b16 %v2132
    %v3444 = vunpack.c.h.b16 %v2132
    %v3445 = vunpack.c.l.b16 %v2133
    %v3446 = vunpack.c.h.b16 %v2133
    %v3447 = vunpack.c.l.b16 %v2134
    %v3448 = vunpack.c.h.b16 %v2134
    %v3449 = vunpack.c.l.b16 %v2135
    %v3450 = vunpack.c.h.b16 %v2135
    %v3451 = vunpack.c.l.b16 %v2136
    %v3452 = vunpack.c.h.b16 %v2136
    %v3453 = vunpack.c.l.b16 %v2137
    %v3454 = vunpack.c.h.b16 %v2137
    %v3455 = vunpack.c.l.b16 %v2138
    %v3456 = vunpack.c.h.b16 %v2138
    %v3457 = vunpack.c.l.b16 %v2139
    %v3458 = vunpack.c.h.b16 %v2139
    %v3459 = vunpack.c.l.b16 %v2140
    %v3460 = vunpack.c.h.b16 %v2140
    %v3461 = vunpack.c.l.b16 %v2141
    %v3462 = vunpack.c.h.b16 %v2141
    %v3463 = vunpack.c.l.b16 %v2142
    %v3464 = vunpack.c.h.b16 %v2142
    %v3465 = vunpack.c.l.b16 %v2143
    %v3466 = vunpack.c.h.b16 %v2143
    %v3467 = vunpack.c.l.b16 %v2144
    %v3468 = vunpack.c.h.b16 %v2144
    %v3469 = vunpack.c.l.b16 %v2145
    %v3470 = vunpack.c.h.b16 %v2145
    %v3471 = vunpack.c.l.b16 %v2146
    %v3472 = vunpack.c.h.b16 %v2146
    %v3473 = vunpack.c.l.b16 %v2147
    %v3474 = vunpack.c.h.b16 %v2147
    %v3475 = vunpack.c.l.b16 %v2148
    %v3476 = vunpack.c.h.b16 %v2148
    %v3477 = vunpack.c.l.b16 %v2149
    %v3478 = vunpack.c.h.b16 %v2149
    %v3479 = vunpack.c.l.b16 %v2150
    %v3480 = vunpack.c.h.b16 %v2150
    %v3481 = vunpack.c.l.b16 %v2151
    %v3482 = vunpack.c.h.b16 %v2151
    %v3483 = vunpack.c.l.b16 %v2152
    %v3484 = vunpack.c.h.b16 %v2152
    %v3485 = vunpack.c.l.b16 %v2153
    %v3486 = vunpack.c.h.b16 %v2153
    %v3487 = vunpack.c.l.b16 %v2154
    %v3488 = vunpack.c.h.b16 %v2154
    %v3489 = vunpack.c.l.b16 %v2155
    %v3490 = vunpack.c.h.b16 %v2155
    %v3491 = vunpack.c.l.b16 %v2156
    %v3492 = vunpack.c.h.b16 %v2156
    %v3493 = vunpack.c.l.b16 %v2157
    %v3494 = vunpack.c.h.b16 %v2157
    %v3495 = vunpack.c.l.b16 %v2158
    %v3496 = vunpack.c.h.b16 %v2158
    %v3497 = vunpack.c.l.b16 %v2159
    %v3498 = vunpack.c.h.b16 %v2159
    %v3499 = vunpack.c.l.b16 %v2160
    %v3500 = vunpack.c.h.b16 %v2160
    %v3501 = vunpack.c.l.b16 %v2161
    %v3502 = vunpack.c.h.b16 %v2161
    %v3503 = vunpack.c.l.b16 %v2162
    %v3504 = vunpack.c.h.b16 %v2162
    %v3505 = vunpack.c.l.b16 %v2163
    %v3506 = vunpack.c.h.b16 %v2163
    %v3507 = vunpack.c.l.b16 %v2164
    %v3508 = vunpack.c.h.b16 %v2164
    %v3509 = vunpack.c.l.b16 %v2165
    %v3510 = vunpack.c.h.b16 %v2165
    %v3511 = vunpack.c.l.b16 %v2166
    %v3512 = vunpack.c.h.b16 %v2166
    %v3513 = vunpack.c.l.b16 %v2167
    %v3514 = vunpack.c.h.b16 %v2167
    %v3515 = vunpack.c.l.b16 %v2168
    %v3516 = vunpack.c.h.b16 %v2168
    %v3517 = vunpack.c.l.b16 %v2169
    %v3518 = vunpack.c.h.b16 %v2169
    %v3519 = vunpack.c.l.b16 %v2170
    %v3520 = vunpack.c.h.b16 %v2170
    %v3521 = vunpack.c.l.b16 %v2171
    %v3522 = vunpack.c.h.b16 %v2171
    %v3523 = vunpack.c.l.b16 %v2172
    %v3524 = vunpack.c.h.b16 %v2172
    %v3525 = vunpack.c.l.b16 %v2173
    %v3526 = vunpack.c.h.b16 %v2173
    %v3527 = vunpack.c.l.b16 %v2174
    %v3528 = vunpack.c.h.b16 %v2174
    %v3529 = vunpack.c.l.b16 %v2175
    %v3530 = vunpack.c.h.b16 %v2175
    %v3531 = vunpack.c.l.b16 %v2176
    %v3532 = vunpack.c.h.b16 %v2176
    %v3533 = vunpack.c.l.b16 %v2177
    %v3534 = vunpack.c.h.b16 %v2177
    %v3535 = vunpack.c.l.b16 %v2178
    %v3536 = vunpack.c.h.b16 %v2178
    %v3537 = vunpack.c.l.b16 %v2179
    %v3538 = vunpack.c.h.b16 %v2179
    %v3539 = vunpack.c.l.b16 %v2180
    %v3540 = vunpack.c.h.b16 %v2180
    %v3541 = vunpack.c.l.b16 %v2181
    %v3542 = vunpack.c.h.b16 %v2181
    %v3543 = vunpack.c.l.b16 %v2182
    %v3544 = vunpack.c.h.b16 %v2182
    %v3545 = vunpack.c.l.b16 %v2183
    %v3546 = vunpack.c.h.b16 %v2183
    %v3547 = vunpack.c.l.b16 %v2184
    %v3548 = vunpack.c.h.b16 %v2184
    %v3549 = vunpack.c.l.b16 %v2185
    %v3550 = vunpack.c.h.b16 %v2185
    %v3551 = vunpack.c.l.b16 %v2186
    %v3552 = vunpack.c.h.b16 %v2186
    %v3553 = vunpack.c.l.b16 %v2187
    %v3554 = vunpack.c.h.b16 %v2187
    %v3555 = vunpack.c.l.b16 %v2188
    %v3556 = vunpack.c.h.b16 %v2188
    %v3557 = vunpack.c.l.b16 %v2189
    %v3558 = vunpack.c.h.b16 %v2189
    %v3559 = vunpack.c.l.b16 %v2190
    %v3560 = vunpack.c.h.b16 %v2190
    %v3561 = vunpack.c.l.b16 %v2191
    %v3562 = vunpack.c.h.b16 %v2191
    %v3563 = vunpack.c.l.b16 %v2192
    %v3564 = vunpack.c.h.b16 %v2192
    %v3565 = vunpack.c.l.b16 %v2193
    %v3566 = vunpack.c.h.b16 %v2193
    %v3567 = vunpack.c.l.b16 %v2194
    %v3568 = vunpack.c.h.b16 %v2194
    %v3569 = vunpack.c.l.b16 %v2195
    %v3570 = vunpack.c.h.b16 %v2195
    %v3571 = vunpack.c.l.b16 %v2196
    %v3572 = vunpack.c.h.b16 %v2196
    %v3573 = vunpack.c.l.b16 %v2197
    %v3574 = vunpack.c.h.b16 %v2197
    %v3575 = vunpack.c.l.b16 %v2198
    %v3576 = vunpack.c.h.b16 %v2198
    %v3577 = vunpack.c.l.b16 %v2199
    %v3578 = vunpack.c.h.b16 %v2199
    %v3579 = vunpack.c.l.b16 %v2200
    %v3580 = vunpack.c.h.b16 %v2200
    %v3581 = vunpack.c.l.b16 %v2201
    %v3582 = vunpack.c.h.b16 %v2201
    %v3583 = vunpack.c.l.b16 %v2202
    %v3584 = vunpack.c.h.b16 %v2202
    %v3585 = vunpack.c.l.b16 %v2203
    %v3586 = vunpack.c.h.b16 %v2203
    %v3587 = vunpack.c.l.b16 %v2204
    %v3588 = vunpack.c.h.b16 %v2204
    %v3589 = vunpack.c.l.b16 %v2205
    %v3590 = vunpack.c.h.b16 %v2205
    %v3591 = vunpack.c.l.b16 %v2206
    %v3592 = vunpack.c.h.b16 %v2206
    %v3593 = vunpack.c.l.b16 %v2207
    %v3594 = vunpack.c.h.b16 %v2207
    %v3595 = vunpack.c.l.b16 %v2208
    %v3596 = vunpack.c.h.b16 %v2208
    %v3597 = vunpack.c.l.b16 %v2209
    %v3598 = vunpack.c.h.b16 %v2209
    %v3599 = vunpack.c.l.b16 %v2210
    %v3600 = vunpack.c.h.b16 %v2210
    %v3601 = vunpack.c.l.b16 %v2211
    %v3602 = vunpack.c.h.b16 %v2211
    %v3603 = vunpack.c.l.b16 %v2212
    %v3604 = vunpack.c.h.b16 %v2212
    %v3605 = vunpack.c.l.b16 %v2213
    %v3606 = vunpack.c.h.b16 %v2213
    %v3607 = vunpack.c.l.b16 %v2214
    %v3608 = vunpack.c.h.b16 %v2214
    %v3609 = vunpack.c.l.b16 %v2215
    %v3610 = vunpack.c.h.b16 %v2215
    %v3611 = vunpack.c.l.b16 %v2216
    %v3612 = vunpack.c.h.b16 %v2216
    %v3613 = vunpack.c.l.b16 %v2217
    %v3614 = vunpack.c.h.b16 %v2217
    %v3615 = vunpack.c.l.b16 %v2218
    %v3616 = vunpack.c.h.b16 %v2218
    %v3617 = vunpack.c.l.b16 %v2219
    %v3618 = vunpack.c.h.b16 %v2219
    %v3619 = vunpack.c.l.b16 %v2220
    %v3620 = vunpack.c.h.b16 %v2220
    %v3621 = vunpack.c.l.b16 %v2221
    %v3622 = vunpack.c.h.b16 %v2221
    %v3623 = vunpack.c.l.b16 %v2222
    %v3624 = vunpack.c.h.b16 %v2222
    %v3625 = vunpack.c.l.b16 %v2223
    %v3626 = vunpack.c.h.b16 %v2223
    %v3627 = vunpack.c.l.b16 %v2224
    %v3628 = vunpack.c.h.b16 %v2224
    %v3629 = vunpack.c.l.b16 %v2225
    %v3630 = vunpack.c.h.b16 %v2225
    %v3631 = vunpack.c.l.b16 %v2226
    %v3632 = vunpack.c.h.b16 %v2226
    %v3633 = vunpack.c.l.b16 %v2227
    %v3634 = vunpack.c.h.b16 %v2227
    %v3635 = vunpack.c.l.b16 %v2228
    %v3636 = vunpack.c.h.b16 %v2228
    %v3637 = vunpack.c.l.b16 %v2229
    %v3638 = vunpack.c.h.b16 %v2229
    %v3639 = vunpack.c.l.b16 %v2230
    %v3640 = vunpack.c.h.b16 %v2230
    %v3641 = vunpack.c.l.b16 %v2231
    %v3642 = vunpack.c.h.b16 %v2231
    %v3643 = vunpack.c.l.b16 %v2232
    %v3644 = vunpack.c.h.b16 %v2232
    %v3645 = vunpack.c.l.b16 %v2233
    %v3646 = vunpack.c.h.b16 %v2233
    %v3647 = vunpack.c.l.b16 %v2234
    %v3648 = vunpack.c.h.b16 %v2234
    %v3649 = vunpack.c.l.b16 %v2235
    %v3650 = vunpack.c.h.b16 %v2235
    %v3651 = vunpack.c.l.b16 %v2236
    %v3652 = vunpack.c.h.b16 %v2236
    %v3653 = vunpack.c.l.b16 %v2237
    %v3654 = vunpack.c.h.b16 %v2237
    %v3655 = vunpack.c.l.b16 %v2238
    %v3656 = vunpack.c.h.b16 %v2238
    %v3657 = vunpack.c.l.b16 %v2239
    %v3658 = vunpack.c.h.b16 %v2239
    %v3659 = vunpack.c.l.b16 %v2240
    %v3660 = vunpack.c.h.b16 %v2240
    %v3661 = vunpack.c.l.b16 %v2241
    %v3662 = vunpack.c.h.b16 %v2241
    %v3663 = vunpack.c.l.b16 %v2242
    %v3664 = vunpack.c.h.b16 %v2242
    %v3665 = vunpack.c.l.b16 %v2243
    %v3666 = vunpack.c.h.b16 %v2243
    %v3667 = vunpack.c.l.b16 %v2244
    %v3668 = vunpack.c.h.b16 %v2244
    %v3669 = vunpack.c.l.b16 %v2245
    %v3670 = vunpack.c.h.b16 %v2245
    %v3671 = vunpack.c.l.b16 %v2246
    %v3672 = vunpack.c.h.b16 %v2246
    %v3673 = vunpack.c.l.b16 %v2247
    %v3674 = vunpack.c.h.b16 %v2247
    %v3675 = vunpack.c.l.b16 %v2248
    %v3676 = vunpack.c.h.b16 %v2248
    %v3677 = vunpack.c.l.b16 %v2249
    %v3678 = vunpack.c.h.b16 %v2249
    %v3679 = vunpack.c.l.b16 %v2250
    %v3680 = vunpack.c.h.b16 %v2250
    %v3681 = vunpack.c.l.b16 %v2251
    %v3682 = vunpack.c.h.b16 %v2251
    %v3683 = vunpack.c.l.b16 %v2252
    %v3684 = vunpack.c.h.b16 %v2252
    %v3685 = vunpack.c.l.b16 %v2253
    %v3686 = vunpack.c.h.b16 %v2253
    %v3687 = vunpack.c.l.b16 %v2254
    %v3688 = vunpack.c.h.b16 %v2254
    %v3689 = vunpack.c.l.b16 %v2255
    %v3690 = vunpack.c.h.b16 %v2255
    %v3691 = vunpack.c.l.b16 %v2256
    %v3692 = vunpack.c.h.b16 %v2256
    %v3693 = vunpack.c.l.b16 %v2257
    %v3694 = vunpack.c.h.b16 %v2257
    %v3695 = vunpack.c.l.b16 %v2258
    %v3696 = vunpack.c.h.b16 %v2258
    %v3697 = vunpack.c.l.b16 %v2259
    %v3698 = vunpack.c.h.b16 %v2259
    %v3699 = vunpack.c.l.b16 %v2260
    %v3700 = vunpack.c.h.b16 %v2260
    %v3701 = vunpack.c.l.b16 %v2261
    %v3702 = vunpack.c.h.b16 %v2261
    %v3703 = vunpack.c.l.b16 %v2262
    %v3704 = vunpack.c.h.b16 %v2262
    %v3705 = vunpack.c.l.b16 %v2263
    %v3706 = vunpack.c.h.b16 %v2263
    %v3707 = vunpack.c.l.b16 %v2264
    %v3708 = vunpack.c.h.b16 %v2264
    %v3709 = vunpack.c.l.b16 %v2265
    %v3710 = vunpack.c.h.b16 %v2265
    %v3711 = vunpack.c.l.b16 %v2266
    %v3712 = vunpack.c.h.b16 %v2266
    %v3713 = vunpack.c.l.b16 %v2267
    %v3714 = vunpack.c.h.b16 %v2267
    %v3715 = vunpack.c.l.b16 %v2268
    %v3716 = vunpack.c.h.b16 %v2268
    %v3717 = vunpack.c.l.b16 %v2269
    %v3718 = vunpack.c.h.b16 %v2269
    %v3719 = vunpack.c.l.b16 %v2270
    %v3720 = vunpack.c.h.b16 %v2270
    %v3721 = vunpack.c.l.b16 %v2271
    %v3722 = vunpack.c.h.b16 %v2271
    %v3723 = vunpack.c.l.b16 %v2272
    %v3724 = vunpack.c.h.b16 %v2272
    %v3725 = vunpack.c.l.b16 %v2273
    %v3726 = vunpack.c.h.b16 %v2273
    %v3727 = vunpack.c.l.b16 %v2274
    %v3728 = vunpack.c.h.b16 %v2274
    %v3729 = vunpack.c.l.b16 %v2275
    %v3730 = vunpack.c.h.b16 %v2275
    %v3731 = vunpack.c.l.b16 %v2276
    %v3732 = vunpack.c.h.b16 %v2276
    %v3733 = vunpack.c.l.b16 %v2277
    %v3734 = vunpack.c.h.b16 %v2277
    %v3735 = vunpack.c.l.b16 %v2278
    %v3736 = vunpack.c.h.b16 %v2278
    %v3737 = vunpack.c.l.b16 %v2279
    %v3738 = vunpack.c.h.b16 %v2279
    %v3739 = vunpack.c.l.b16 %v2280
    %v3740 = vunpack.c.h.b16 %v2280
    %v3741 = vunpack.c.l.b16 %v2281
    %v3742 = vunpack.c.h.b16 %v2281
    %v3743 = vunpack.c.l.b16 %v2282
    %v3744 = vunpack.c.h.b16 %v2282
    %v3745 = vunpack.c.l.b16 %v2283
    %v3746 = vunpack.c.h.b16 %v2283
    %v3747 = vunpack.c.l.b16 %v2284
    %v3748 = vunpack.c.h.b16 %v2284
    %v3749 = vunpack.c.l.b16 %v2285
    %v3750 = vunpack.c.h.b16 %v2285
    %v3751 = vunpack.c.l.b16 %v2286
    %v3752 = vunpack.c.h.b16 %v2286
    %v3753 = vunpack.c.l.b16 %v2287
    %v3754 = vunpack.c.h.b16 %v2287
    %v3755 = vunpack.c.l.b16 %v2288
    %v3756 = vunpack.c.h.b16 %v2288
    %v3757 = vunpack.c.l.b16 %v2289
    %v3758 = vunpack.c.h.b16 %v2289
    %v3759 = vunpack.c.l.b16 %v2290
    %v3760 = vunpack.c.h.b16 %v2290
    %v3761 = vunpack.c.l.b16 %v2291
    %v3762 = vunpack.c.h.b16 %v2291
    %v3763 = vunpack.c.l.b16 %v2292
    %v3764 = vunpack.c.h.b16 %v2292
    %v3765 = vunpack.c.l.b16 %v2293
    %v3766 = vunpack.c.h.b16 %v2293
    %v3767 = vunpack.c.l.b16 %v2294
    %v3768 = vunpack.c.h.b16 %v2294
    %v3769 = vunpack.c.l.b16 %v2295
    %v3770 = vunpack.c.h.b16 %v2295
    %v3771 = vunpack.c.l.b16 %v2296
    %v3772 = vunpack.c.h.b16 %v2296
    %v3773 = vunpack.c.l.b16 %v2297
    %v3774 = vunpack.c.h.b16 %v2297
    %v3775 = vunpack.c.l.b16 %v2298
    %v3776 = vunpack.c.h.b16 %v2298
    %v3777 = vunpack.c.l.b16 %v2299
    %v3778 = vunpack.c.h.b16 %v2299
    %v3779 = vunpack.c.l.b16 %v2300
    %v3780 = vunpack.c.h.b16 %v2300
    %v3781 = vunpack.c.l.b16 %v2301
    %v3782 = vunpack.c.h.b16 %v2301
    %v3783 = vunpack.c.l.b16 %v2302
    %v3784 = vunpack.c.h.b16 %v2302
    %v3785 = vunpack.c.l.b16 %v2303
    %v3786 = vunpack.c.h.b16 %v2303
    %v3787 = vunpack.c.l.b16 %v2304
    %v3788 = vunpack.c.h.b16 %v2304
    %v3789 = vunpack.c.l.b16 %v2305
    %v3790 = vunpack.c.h.b16 %v2305
    %v3791 = vunpack.c.l.b16 %v2306
    %v3792 = vunpack.c.h.b16 %v2306
    %v3793 = vunpack.c.l.b16 %v2307
    %v3794 = vunpack.c.h.b16 %v2307
    %v3795 = vunpack.c.l.b16 %v2308
    %v3796 = vunpack.c.h.b16 %v2308
    %v3797 = vunpack.c.l.b16 %v2309
    %v3798 = vunpack.c.h.b16 %v2309
    %v3799 = vunpack.c.l.b16 %v2310
    %v3800 = vunpack.c.h.b16 %v2310
    %v3801 = vunpack.c.l.b16 %v2311
    %v3802 = vunpack.c.h.b16 %v2311
    %v3803 = vunpack.c.l.b16 %v2312
    %v3804 = vunpack.c.h.b16 %v2312
    %v3805 = vunpack.c.l.b16 %v2313
    %v3806 = vunpack.c.h.b16 %v2313
    %v3807 = vunpack.c.l.b16 %v2314
    %v3808 = vunpack.c.h.b16 %v2314
    %v3809 = vunpack.c.l.b16 %v2315
    %v3810 = vunpack.c.h.b16 %v2315
    %v3811 = vunpack.c.l.b16 %v2316
    %v3812 = vunpack.c.h.b16 %v2316
    %v3813 = vunpack.c.l.b16 %v2317
    %v3814 = vunpack.c.h.b16 %v2317
    %v3815 = vunpack.c.l.b16 %v2318
    %v3816 = vunpack.c.h.b16 %v2318
    %v3817 = vunpack.c.l.b16 %v2319
    %v3818 = vunpack.c.h.b16 %v2319
    %v3819 = vunpack.c.l.b16 %v2320
    %v3820 = vunpack.c.h.b16 %v2320
    %v3821 = vunpack.c.l.b16 %v2321
    %v3822 = vunpack.c.h.b16 %v2321
    %v3823 = vunpack.c.l.b16 %v2322
    %v3824 = vunpack.c.h.b16 %v2322
    %v3825 = vunpack.c.l.b16 %v2323
    %v3826 = vunpack.c.h.b16 %v2323
    %v3827 = vunpack.c.l.b16 %v2324
    %v3828 = vunpack.c.h.b16 %v2324
    %v3829 = vunpack.c.l.b16 %v2325
    %v3830 = vunpack.c.h.b16 %v2325
    %v3831 = vunpack.c.l.b16 %v2326
    %v3832 = vunpack.c.h.b16 %v2326
    %v3833 = vunpack.c.l.b16 %v2327
    %v3834 = vunpack.c.h.b16 %v2327
    %v3835 = vunpack.c.l.b16 %v2328
    %v3836 = vunpack.c.h.b16 %v2328
    %v3837 = vunpack.c.l.b16 %v2329
    %v3838 = vunpack.c.h.b16 %v2329
    %v3839 = vunpack.c.l.b16 %v2330
    %v3840 = vunpack.c.h.b16 %v2330
    %v3841 = vunpack.c.l.b16 %v2331
    %v3842 = vunpack.c.h.b16 %v2331
    %v3843 = vunpack.c.l.b16 %v2332
    %v3844 = vunpack.c.h.b16 %v2332
    %v3845 = vunpack.c.l.b16 %v2333
    %v3846 = vunpack.c.h.b16 %v2333
    %v3847 = vunpack.c.l.b16 %v2334
    %v3848 = vunpack.c.h.b16 %v2334
    %v3849 = vunpack.c.l.b16 %v2335
    %v3850 = vunpack.c.h.b16 %v2335
    %v3851 = vunpack.c.l.b16 %v2336
    %v3852 = vunpack.c.h.b16 %v2336
    %v3853 = vunpack.c.l.b16 %v2337
    %v3854 = vunpack.c.h.b16 %v2337
    %v3855 = vunpack.c.l.b16 %v2338
    %v3856 = vunpack.c.h.b16 %v2338
    %v3857 = vunpack.c.l.b16 %v2339
    %v3858 = vunpack.c.h.b16 %v2339
    %v3859 = vunpack.c.l.b16 %v2340
    %v3860 = vunpack.c.h.b16 %v2340
    %v3861 = vunpack.c.l.b16 %v2341
    %v3862 = vunpack.c.h.b16 %v2341
    %v3863 = vunpack.c.l.b16 %v2342
    %v3864 = vunpack.c.h.b16 %v2342
    %v3865 = vunpack.c.l.b16 %v2343
    %v3866 = vunpack.c.h.b16 %v2343
    %v3867 = vunpack.c.l.b16 %v2344
    %v3868 = vunpack.c.h.b16 %v2344
    %v3869 = vunpack.c.l.b16 %v2345
    %v3870 = vunpack.c.h.b16 %v2345
    %v3871 = vunpack.c.l.b16 %v2346
    %v3872 = vunpack.c.h.b16 %v2346
    %v3873 = vunpack.c.l.b16 %v2347
    %v3874 = vunpack.c.h.b16 %v2347
    %v3875 = vunpack.c.l.b16 %v2348
    %v3876 = vunpack.c.h.b16 %v2348
    %v3877 = vunpack.c.l.b16 %v2349
    %v3878 = vunpack.c.h.b16 %v2349
    %v3879 = vunpack.c.l.b16 %v2350
    %v3880 = vunpack.c.h.b16 %v2350
    %v3881 = vunpack.c.l.b16 %v2351
    %v3882 = vunpack.c.h.b16 %v2351
    %v3883 = vunpack.c.l.b16 %v2352
    %v3884 = vunpack.c.h.b16 %v2352
    %v3885 = vunpack.c.l.b16 %v2353
    %v3886 = vunpack.c.h.b16 %v2353
    %v3887 = vunpack.c.l.b16 %v2354
    %v3888 = vunpack.c.h.b16 %v2354
    %v3889 = vunpack.c.l.b16 %v2355
    %v3890 = vunpack.c.h.b16 %v2355
    %v3891 = vunpack.c.l.b16 %v2356
    %v3892 = vunpack.c.h.b16 %v2356
    %v3893 = vunpack.c.l.b16 %v2357
    %v3894 = vunpack.c.h.b16 %v2357
    %v3895 = vunpack.c.l.b16 %v2358
    %v3896 = vunpack.c.h.b16 %v2358
    %v3897 = vunpack.c.l.b16 %v2359
    %v3898 = vunpack.c.h.b16 %v2359
    %v3899 = vunpack.c.l.b16 %v2360
    %v3900 = vunpack.c.h.b16 %v2360
    %v3901 = vunpack.c.l.b16 %v2361
    %v3902 = vunpack.c.h.b16 %v2361
    %v3903 = vunpack.c.l.b16 %v2362
    %v3904 = vunpack.c.h.b16 %v2362
    %v3905 = vunpack.c.l.b16 %v2363
    %v3906 = vunpack.c.h.b16 %v2363
    %v3907 = vunpack.c.l.b16 %v2364
    %v3908 = vunpack.c.h.b16 %v2364
    %v3909 = vunpack.c.l.b16 %v2365
    %v3910 = vunpack.c.h.b16 %v2365
    %v3911 = vunpack.c.l.b16 %v2366
    %v3912 = vunpack.c.h.b16 %v2366
    %v3913 = vunpack.c.l.b16 %v2367
    %v3914 = vunpack.c.h.b16 %v2367
    %v3915 = vunpack.c.l.b16 %v2368
    %v3916 = vunpack.c.h.b16 %v2368
    %v3917 = vunpack.c.l.b16 %v2369
    %v3918 = vunpack.c.h.b16 %v2369
    %v3919 = vunpack.c.l.b16 %v2370
    %v3920 = vunpack.c.h.b16 %v2370
    %v3921 = vunpack.c.l.b16 %v2371
    %v3922 = vunpack.c.h.b16 %v2371
    %v3923 = vunpack.c.l.b16 %v2372
    %v3924 = vunpack.c.h.b16 %v2372
    %v3925 = vunpack.c.l.b16 %v2373
    %v3926 = vunpack.c.h.b16 %v2373
    %v3927 = vunpack.c.l.b16 %v2374
    %v3928 = vunpack.c.h.b16 %v2374
    %v3929 = vunpack.c.l.b16 %v2375
    %v3930 = vunpack.c.h.b16 %v2375
    %v3931 = vunpack.c.l.b16 %v2376
    %v3932 = vunpack.c.h.b16 %v2376
    %v3933 = vunpack.c.l.b16 %v2377
    %v3934 = vunpack.c.h.b16 %v2377
    %v3935 = vunpack.c.l.b16 %v2378
    %v3936 = vunpack.c.h.b16 %v2378
    %v3937 = vpack.c.b16 %v2917, %v2913
    %v3938 = vpack.c.b16 %v2918, %v2914
    %v3939 = vpack.c.b16 %v2919, %v2915
    %v3940 = vpack.c.b16 %v2920, %v2916
    %v3941 = vpack.c.b16 %v2925, %v2921
    %v3942 = vpack.c.b16 %v2926, %v2922
    %v3943 = vpack.c.b16 %v2927, %v2923
    %v3944 = vpack.c.b16 %v2928, %v2924
    %v3945 = vpack.c.b16 %v2933, %v2929
    %v3946 = vpack.c.b16 %v2934, %v2930
    %v3947 = vpack.c.b16 %v2935, %v2931
    %v3948 = vpack.c.b16 %v2936, %v2932
    %v3949 = vpack.c.b16 %v2941, %v2937
    %v3950 = vpack.c.b16 %v2942, %v2938
    %v3951 = vpack.c.b16 %v2943, %v2939
    %v3952 = vpack.c.b16 %v2944, %v2940
    %v3953 = vpack.c.b16 %v2949, %v2945
    %v3954 = vpack.c.b16 %v2950, %v2946
    %v3955 = vpack.c.b16 %v2951, %v2947
    %v3956 = vpack.c.b16 %v2952, %v2948
    %v3957 = vpack.c.b16 %v2957, %v2953
    %v3958 = vpack.c.b16 %v2958, %v2954
    %v3959 = vpack.c.b16 %v2959, %v2955
    %v3960 = vpack.c.b16 %v2960, %v2956
    %v3961 = vpack.c.b16 %v2965, %v2961
    %v3962 = vpack.c.b16 %v2966, %v2962
    %v3963 = vpack.c.b16 %v2967, %v2963
    %v3964 = vpack.c.b16 %v2968, %v2964
    %v3965 = vpack.c.b16 %v2973, %v2969
    %v3966 = vpack.c.b16 %v2974, %v2970
    %v3967 = vpack.c.b16 %v2975, %v2971
    %v3968 = vpack.c.b16 %v2976, %v2972
    %v3969 = vpack.c.b16 %v2981, %v2977
    %v3970 = vpack.c.b16 %v2982, %v2978
    %v3971 = vpack.c.b16 %v2983, %v2979
    %v3972 = vpack.c.b16 %v2984, %v2980
    %v3973 = vpack.c.b16 %v2989, %v2985
    %v3974 = vpack.c.b16 %v2990, %v2986
    %v3975 = vpack.c.b16 %v2991, %v2987
    %v3976 = vpack.c.b16 %v2992, %v2988
    %v3977 = vpack.c.b16 %v2997, %v2993
    %v3978 = vpack.c.b16 %v2998, %v2994
    %v3979 = vpack.c.b16 %v2999, %v2995
    %v3980 = vpack.c.b16 %v3000, %v2996
    %v3981 = vpack.c.b16 %v3005, %v3001
    %v3982 = vpack.c.b16 %v3006, %v3002
    %v3983 = vpack.c.b16 %v3007, %v3003
    %v3984 = vpack.c.b16 %v3008, %v3004
    %v3985 = vpack.c.b16 %v3013, %v3009
    %v3986 = vpack.c.b16 %v3014, %v3010
    %v3987 = vpack.c.b16 %v3015, %v3011
    %v3988 = vpack.c.b16 %v3016, %v3012
    %v3989 = vpack.c.b16 %v3021, %v3017
    %v3990 = vpack.c.b16 %v3022, %v3018
    %v3991 = vpack.c.b16 %v3023, %v3019
    %v3992 = vpack.c.b16 %v3024, %v3020
    %v3993 = vpack.c.b16 %v3029, %v3025
    %v3994 = vpack.c.b16 %v3030, %v3026
    %v3995 = vpack.c.b16 %v3031, %v3027
    %v3996 = vpack.c.b16 %v3032, %v3028
    %v3997 = vpack.c.b16 %v3037, %v3033
    %v3998 = vpack.c.b16 %v3038, %v3034
    %v3999 = vpack.c.b16 %v3039, %v3035
    %v4000 = vpack.c.b16 %v3040, %v3036
    %v4001 = vpack.c.b16 %v3045, %v3041
    %v4002 = vpack.c.b16 %v3046, %v3042
    %v4003 = vpack.c.b16 %v3047, %v3043
    %v4004 = vpack.c.b16 %v3048, %v3044
    %v4005 = vpack.c.b16 %v3053, %v3049
    %v4006 = vpack.c.b16 %v3054, %v3050
    %v4007 = vpack.c.b16 %v3055, %v3051
    %v4008 = vpack.c.b16 %v3056, %v3052
    %v4009 = vpack.c.b16 %v3061, %v3057
    %v4010 = vpack.c.b16 %v3062, %v3058
    %v4011 = vpack.c.b16 %v3063, %v3059
    %v4012 = vpack.c.b16 %v3064, %v3060
    %v4013 = vpack.c.b16 %v3069, %v3065
    %v4014 = vpack.c.b16 %v3070, %v3066
    %v4015 = vpack.c.b16 %v3071, %v3067
    %v4016 = vpack.c.b16 %v3072, %v3068
    %v4017 = vpack.c.b16 %v3077, %v3073
    %v4018 = vpack.c.b16 %v3078, %v3074
    %v4019 = vpack.c.b16 %v3079, %v3075
    %v4020 = vpack.c.b16 %v3080, %v3076
    %v4021 = vpack.c.b16 %v3085, %v3081
    %v4022 = vpack.c.b16 %v3086, %v3082
    %v4023 = vpack.c.b16 %v3087, %v3083
    %v4024 = vpack.c.b16 %v3088, %v3084
    %v4025 = vpack.c.b16 %v3093, %v3089
    %v4026 = vpack.c.b16 %v3094, %v3090
    %v4027 = vpack.c.b16 %v3095, %v3091
    %v4028 = vpack.c.b16 %v3096, %v3092
    %v4029 = vpack.c.b16 %v3101, %v3097
    %v4030 = vpack.c.b16 %v3102, %v3098
    %v4031 = vpack.c.b16 %v3103, %v3099
    %v4032 = vpack.c.b16 %v3104, %v3100
    %v4033 = vpack.c.b16 %v3109, %v3105
    %v4034 = vpack.c.b16 %v3110, %v3106
    %v4035 = vpack.c.b16 %v3111, %v3107
    %v4036 = vpack.c.b16 %v3112, %v3108
    %v4037 = vpack.c.b16 %v3117, %v3113
    %v4038 = vpack.c.b16 %v3118, %v3114
    %v4039 = vpack.c.b16 %v3119, %v3115
    %v4040 = vpack.c.b16 %v3120, %v3116
    %v4041 = vpack.c.b16 %v3125, %v3121
    %v4042 = vpack.c.b16 %v3126, %v3122
    %v4043 = vpack.c.b16 %v3127, %v3123
    %v4044 = vpack.c.b16 %v3128, %v3124
    %v4045 = vpack.c.b16 %v3133, %v3129
    %v4046 = vpack.c.b16 %v3134, %v3130
    %v4047 = vpack.c.b16 %v3135, %v3131
    %v4048 = vpack.c.b16 %v3136, %v3132
    %v4049 = vpack.c.b16 %v3141, %v3137
    %v4050 = vpack.c.b16 %v3142, %v3138
    %v4051 = vpack.c.b16 %v3143, %v3139
    %v4052 = vpack.c.b16 %v3144, %v3140
    %v4053 = vpack.c.b16 %v3149, %v3145
    %v4054 = vpack.c.b16 %v3150, %v3146
    %v4055 = vpack.c.b16 %v3151, %v3147
    %v4056 = vpack.c.b16 %v3152, %v3148
    %v4057 = vpack.c.b16 %v3157, %v3153
    %v4058 = vpack.c.b16 %v3158, %v3154
    %v4059 = vpack.c.b16 %v3159, %v3155
    %v4060 = vpack.c.b16 %v3160, %v3156
    %v4061 = vpack.c.b16 %v3165, %v3161
    %v4062 = vpack.c.b16 %v3166, %v3162
    %v4063 = vpack.c.b16 %v3167, %v3163
    %v4064 = vpack.c.b16 %v3168, %v3164
    %v4065 = vpack.c.b16 %v3173, %v3169
    %v4066 = vpack.c.b16 %v3174, %v3170
    %v4067 = vpack.c.b16 %v3175, %v3171
    %v4068 = vpack.c.b16 %v3176, %v3172
    %v4069 = vpack.c.b16 %v3181, %v3177
    %v4070 = vpack.c.b16 %v3182, %v3178
    %v4071 = vpack.c.b16 %v3183, %v3179
    %v4072 = vpack.c.b16 %v3184, %v3180
    %v4073 = vpack.c.b16 %v3189, %v3185
    %v4074 = vpack.c.b16 %v3190, %v3186
    %v4075 = vpack.c.b16 %v3191, %v3187
    %v4076 = vpack.c.b16 %v3192, %v3188
    %v4077 = vpack.c.b16 %v3197, %v3193
    %v4078 = vpack.c.b16 %v3198, %v3194
    %v4079 = vpack.c.b16 %v3199, %v3195
    %v4080 = vpack.c.b16 %v3200, %v3196
    %v4081 = vpack.c.b16 %v3205, %v3201
    %v4082 = vpack.c.b16 %v3206, %v3202
    %v4083 = vpack.c.b16 %v3207, %v3203
    %v4084 = vpack.c.b16 %v3208, %v3204
    %v4085 = vpack.c.b16 %v3213, %v3209
    %v4086 = vpack.c.b16 %v3214, %v3210
    %v4087 = vpack.c.b16 %v3215, %v3211
    %v4088 = vpack.c.b16 %v3216, %v3212
    %v4089 = vpack.c.b16 %v3221, %v3217
    %v4090 = vpack.c.b16 %v3222, %v3218
    %v4091 = vpack.c.b16 %v3223, %v3219
    %v4092 = vpack.c.b16 %v3224, %v3220
    %v4093 = vpack.c.b16 %v3229, %v3225
    %v4094 = vpack.c.b16 %v3230, %v3226
    %v4095 = vpack.c.b16 %v3231, %v3227
    %v4096 = vpack.c.b16 %v3232, %v3228
    %v4097 = vpack.c.b16 %v3237, %v3233
    %v4098 = vpack.c.b16 %v3238, %v3234
    %v4099 = vpack.c.b16 %v3239, %v3235
    %v4100 = vpack.c.b16 %v3240, %v3236
    %v4101 = vpack.c.b16 %v3245, %v3241
    %v4102 = vpack.c.b16 %v3246, %v3242
    %v4103 = vpack.c.b16 %v3247, %v3243
    %v4104 = vpack.c.b16 %v3248, %v3244
    %v4105 = vpack.c.b16 %v3253, %v3249
    %v4106 = vpack.c.b16 %v3254, %v3250
    %v4107 = vpack.c.b16 %v3255, %v3251
    %v4108 = vpack.c.b16 %v3256, %v3252
    %v4109 = vpack.c.b16 %v3261, %v3257
    %v4110 = vpack.c.b16 %v3262, %v3258
    %v4111 = vpack.c.b16 %v3263, %v3259
    %v4112 = vpack.c.b16 %v3264, %v3260
    %v4113 = vpack.c.b16 %v3269, %v3265
    %v4114 = vpack.c.b16 %v3270, %v3266
    %v4115 = vpack.c.b16 %v3271, %v3267
    %v4116 = vpack.c.b16 %v3272, %v3268
    %v4117 = vpack.c.b16 %v3277, %v3273
    %v4118 = vpack.c.b16 %v3278, %v3274
    %v4119 = vpack.c.b16 %v3279, %v3275
    %v4120 = vpack.c.b16 %v3280, %v3276
    %v4121 = vpack.c.b16 %v3285, %v3281
    %v4122 = vpack.c.b16 %v3286, %v3282
    %v4123 = vpack.c.b16 %v3287, %v3283
    %v4124 = vpack.c.b16 %v3288, %v3284
    %v4125 = vpack.c.b16 %v3293, %v3289
    %v4126 = vpack.c.b16 %v3294, %v3290
    %v4127 = vpack.c.b16 %v3295, %v3291
    %v4128 = vpack.c.b16 %v3296, %v3292
    %v4129 = vpack.c.b16 %v3301, %v3297
    %v4130 = vpack.c.b16 %v3302, %v3298
    %v4131 = vpack.c.b16 %v3303, %v3299
    %v4132 = vpack.c.b16 %v3304, %v3300
    %v4133 = vpack.c.b16 %v3309, %v3305
    %v4134 = vpack.c.b16 %v3310, %v3306
    %v4135 = vpack.c.b16 %v3311, %v3307
    %v4136 = vpack.c.b16 %v3312, %v3308
    %v4137 = vpack.c.b16 %v3317, %v3313
    %v4138 = vpack.c.b16 %v3318, %v3314
    %v4139 = vpack.c.b16 %v3319, %v3315
    %v4140 = vpack.c.b16 %v3320, %v3316
    %v4141 = vpack.c.b16 %v3325, %v3321
    %v4142 = vpack.c.b16 %v3326, %v3322
    %v4143 = vpack.c.b16 %v3327, %v3323
    %v4144 = vpack.c.b16 %v3328, %v3324
    %v4145 = vpack.c.b16 %v3333, %v3329
    %v4146 = vpack.c.b16 %v3334, %v3330
    %v4147 = vpack.c.b16 %v3335, %v3331
    %v4148 = vpack.c.b16 %v3336, %v3332
    %v4149 = vpack.c.b16 %v3341, %v3337
    %v4150 = vpack.c.b16 %v3342, %v3338
    %v4151 = vpack.c.b16 %v3343, %v3339
    %v4152 = vpack.c.b16 %v3344, %v3340
    %v4153 = vpack.c.b16 %v3349, %v3345
    %v4154 = vpack.c.b16 %v3350, %v3346
    %v4155 = vpack.c.b16 %v3351, %v3347
    %v4156 = vpack.c.b16 %v3352, %v3348
    %v4157 = vpack.c.b16 %v3357, %v3353
    %v4158 = vpack.c.b16 %v3358, %v3354
    %v4159 = vpack.c.b16 %v3359, %v3355
    %v4160 = vpack.c.b16 %v3360, %v3356
    %v4161 = vpack.c.b16 %v3365, %v3361
    %v4162 = vpack.c.b16 %v3366, %v3362
    %v4163 = vpack.c.b16 %v3367, %v3363
    %v4164 = vpack.c.b16 %v3368, %v3364
    %v4165 = vpack.c.b16 %v3373, %v3369
    %v4166 = vpack.c.b16 %v3374, %v3370
    %v4167 = vpack.c.b16 %v3375, %v3371
    %v4168 = vpack.c.b16 %v3376, %v3372
    %v4169 = vpack.c.b16 %v3381, %v3377
    %v4170 = vpack.c.b16 %v3382, %v3378
    %v4171 = vpack.c.b16 %v3383, %v3379
    %v4172 = vpack.c.b16 %v3384, %v3380
    %v4173 = vpack.c.b16 %v3389, %v3385
    %v4174 = vpack.c.b16 %v3390, %v3386
    %v4175 = vpack.c.b16 %v3391, %v3387
    %v4176 = vpack.c.b16 %v3392, %v3388
    %v4177 = vpack.c.b16 %v3397, %v3393
    %v4178 = vpack.c.b16 %v3398, %v3394
    %v4179 = vpack.c.b16 %v3399, %v3395
    %v4180 = vpack.c.b16 %v3400, %v3396
    %v4181 = vpack.c.b16 %v3405, %v3401
    %v4182 = vpack.c.b16 %v3406, %v3402
    %v4183 = vpack.c.b16 %v3407, %v3403
    %v4184 = vpack.c.b16 %v3408, %v3404
    %v4185 = vpack.c.b16 %v3413, %v3409
    %v4186 = vpack.c.b16 %v3414, %v3410
    %v4187 = vpack.c.b16 %v3415, %v3411
    %v4188 = vpack.c.b16 %v3416, %v3412
    %v4189 = vpack.c.b16 %v3421, %v3417
    %v4190 = vpack.c.b16 %v3422, %v3418
    %v4191 = vpack.c.b16 %v3423, %v3419
    %v4192 = vpack.c.b16 %v3424, %v3420
    %v4193 = vpack.c.b16 %v3429, %v3425
    %v4194 = vpack.c.b16 %v3430, %v3426
    %v4195 = vpack.c.b16 %v3431, %v3427
    %v4196 = vpack.c.b16 %v3432, %v3428
    %v4197 = vpack.c.b16 %v3437, %v3433
    %v4198 = vpack.c.b16 %v3438, %v3434
    %v4199 = vpack.c.b16 %v3439, %v3435
    %v4200 = vpack.c.b16 %v3440, %v3436
    %v4201 = vpack.c.b16 %v3445, %v3441
    %v4202 = vpack.c.b16 %v3446, %v3442
    %v4203 = vpack.c.b16 %v3447, %v3443
    %v4204 = vpack.c.b16 %v3448, %v3444
    %v4205 = vpack.c.b16 %v3453, %v3449
    %v4206 = vpack.c.b16 %v3454, %v3450
    %v4207 = vpack.c.b16 %v3455, %v3451
    %v4208 = vpack.c.b16 %v3456, %v3452
    %v4209 = vpack.c.b16 %v3461, %v3457
    %v4210 = vpack.c.b16 %v3462, %v3458
    %v4211 = vpack.c.b16 %v3463, %v3459
    %v4212 = vpack.c.b16 %v3464, %v3460
    %v4213 = vpack.c.b16 %v3469, %v3465
    %v4214 = vpack.c.b16 %v3470, %v3466
    %v4215 = vpack.c.b16 %v3471, %v3467
    %v4216 = vpack.c.b16 %v3472, %v3468
    %v4217 = vpack.c.b16 %v3477, %v3473
    %v4218 = vpack.c.b16 %v3478, %v3474
    %v4219 = vpack.c.b16 %v3479, %v3475
    %v4220 = vpack.c.b16 %v3480, %v3476
    %v4221 = vpack.c.b16 %v3485, %v3481
    %v4222 = vpack.c.b16 %v3486, %v3482
    %v4223 = vpack.c.b16 %v3487, %v3483
    %v4224 = vpack.c.b16 %v3488, %v3484
    %v4225 = vpack.c.b16 %v3493, %v3489
    %v4226 = vpack.c.b16 %v3494, %v3490
    %v4227 = vpack.c.b16 %v3495, %v3491
    %v4228 = vpack.c.b16 %v3496, %v3492
    %v4229 = vpack.c.b16 %v3501, %v3497
    %v4230 = vpack.c.b16 %v3502, %v3498
    %v4231 = vpack.c.b16 %v3503, %v3499
    %v4232 = vpack.c.b16 %v3504, %v3500
    %v4233 = vpack.c.b16 %v3509, %v3505
    %v4234 = vpack.c.b16 %v3510, %v3506
    %v4235 = vpack.c.b16 %v3511, %v3507
    %v4236 = vpack.c.b16 %v3512, %v3508
    %v4237 = vpack.c.b16 %v3517, %v3513
    %v4238 = vpack.c.b16 %v3518, %v3514
    %v4239 = vpack.c.b16 %v3519, %v3515
    %v4240 = vpack.c.b16 %v3520, %v3516
    %v4241 = vpack.c.b16 %v3525, %v3521
    %v4242 = vpack.c.b16 %v3526, %v3522
    %v4243 = vpack.c.b16 %v3527, %v3523
    %v4244 = vpack.c.b16 %v3528, %v3524
    %v4245 = vpack.c.b16 %v3533, %v3529
    %v4246 = vpack.c.b16 %v3534, %v3530
    %v4247 = vpack.c.b16 %v3535, %v3531
    %v4248 = vpack.c.b16 %v3536, %v3532
    %v4249 = vpack.c.b16 %v3541, %v3537
    %v4250 = vpack.c.b16 %v3542, %v3538
    %v4251 = vpack.c.b16 %v3543, %v3539
    %v4252 = vpack.c.b16 %v3544, %v3540
    %v4253 = vpack.c.b16 %v3549, %v3545
    %v4254 = vpack.c.b16 %v3550, %v3546
    %v4255 = vpack.c.b16 %v3551, %v3547
    %v4256 = vpack.c.b16 %v3552, %v3548
    %v4257 = vpack.c.b16 %v3557, %v3553
    %v4258 = vpack.c.b16 %v3558, %v3554
    %v4259 = vpack.c.b16 %v3559, %v3555
    %v4260 = vpack.c.b16 %v3560, %v3556
    %v4261 = vpack.c.b16 %v3565, %v3561
    %v4262 = vpack.c.b16 %v3566, %v3562
    %v4263 = vpack.c.b16 %v3567, %v3563
    %v4264 = vpack.c.b16 %v3568, %v3564
    %v4265 = vpack.c.b16 %v3573, %v3569
    %v4266 = vpack.c.b16 %v3574, %v3570
    %v4267 = vpack.c.b16 %v3575, %v3571
    %v4268 = vpack.c.b16 %v3576, %v3572
    %v4269 = vpack.c.b16 %v3581, %v3577
    %v4270 = vpack.c.b16 %v3582, %v3578
    %v4271 = vpack.c.b16 %v3583, %v3579
    %v4272 = vpack.c.b16 %v3584, %v3580
    %v4273 = vpack.c.b16 %v3589, %v3585
    %v4274 = vpack.c.b16 %v3590, %v3586
    %v4275 = vpack.c.b16 %v3591, %v3587
    %v4276 = vpack.c.b16 %v3592, %v3588
    %v4277 = vpack.c.b16 %v3597, %v3593
    %v4278 = vpack.c.b16 %v3598, %v3594
    %v4279 = vpack.c.b16 %v3599, %v3595
    %v4280 = vpack.c.b16 %v3600, %v3596
    %v4281 = vpack.c.b16 %v3605, %v3601
    %v4282 = vpack.c.b16 %v3606, %v3602
    %v4283 = vpack.c.b16 %v3607, %v3603
    %v4284 = vpack.c.b16 %v3608, %v3604
    %v4285 = vpack.c.b16 %v3613, %v3609
    %v4286 = vpack.c.b16 %v3614, %v3610
    %v4287 = vpack.c.b16 %v3615, %v3611
    %v4288 = vpack.c.b16 %v3616, %v3612
    %v4289 = vpack.c.b16 %v3621, %v3617
    %v4290 = vpack.c.b16 %v3622, %v3618
    %v4291 = vpack.c.b16 %v3623, %v3619
    %v4292 = vpack.c.b16 %v3624, %v3620
    %v4293 = vpack.c.b16 %v3629, %v3625
    %v4294 = vpack.c.b16 %v3630, %v3626
    %v4295 = vpack.c.b16 %v3631, %v3627
    %v4296 = vpack.c.b16 %v3632, %v3628
    %v4297 = vpack.c.b16 %v3637, %v3633
    %v4298 = vpack.c.b16 %v3638, %v3634
    %v4299 = vpack.c.b16 %v3639, %v3635
    %v4300 = vpack.c.b16 %v3640, %v3636
    %v4301 = vpack.c.b16 %v3645, %v3641
    %v4302 = vpack.c.b16 %v3646, %v3642
    %v4303 = vpack.c.b16 %v3647, %v3643
    %v4304 = vpack.c.b16 %v3648, %v3644
    %v4305 = vpack.c.b16 %v3653, %v3649
    %v4306 = vpack.c.b16 %v3654, %v3650
    %v4307 = vpack.c.b16 %v3655, %v3651
    %v4308 = vpack.c.b16 %v3656, %v3652
    %v4309 = vpack.c.b16 %v3661, %v3657
    %v4310 = vpack.c.b16 %v3662, %v3658
    %v4311 = vpack.c.b16 %v3663, %v3659
    %v4312 = vpack.c.b16 %v3664, %v3660
    %v4313 = vpack.c.b16 %v3669, %v3665
    %v4314 = vpack.c.b16 %v3670, %v3666
    %v4315 = vpack.c.b16 %v3671, %v3667
    %v4316 = vpack.c.b16 %v3672, %v3668
    %v4317 = vpack.c.b16 %v3677, %v3673
    %v4318 = vpack.c.b16 %v3678, %v3674
    %v4319 = vpack.c.b16 %v3679, %v3675
    %v4320 = vpack.c.b16 %v3680, %v3676
    %v4321 = vpack.c.b16 %v3685, %v3681
    %v4322 = vpack.c.b16 %v3686, %v3682
    %v4323 = vpack.c.b16 %v3687, %v3683
    %v4324 = vpack.c.b16 %v3688, %v3684
    %v4325 = vpack.c.b16 %v3693, %v3689
    %v4326 = vpack.c.b16 %v3694, %v3690
    %v4327 = vpack.c.b16 %v3695, %v3691
    %v4328 = vpack.c.b16 %v3696, %v3692
    %v4329 = vpack.c.b16 %v3701, %v3697
    %v4330 = vpack.c.b16 %v3702, %v3698
    %v4331 = vpack.c.b16 %v3703, %v3699
    %v4332 = vpack.c.b16 %v3704, %v3700
    %v4333 = vpack.c.b16 %v3709, %v3705
    %v4334 = vpack.c.b16 %v3710, %v3706
    %v4335 = vpack.c.b16 %v3711, %v3707
    %v4336 = vpack.c.b16 %v3712, %v3708
    %v4337 = vpack.c.b16 %v3717, %v3713
    %v4338 = vpack.c.b16 %v3718, %v3714
    %v4339 = vpack.c.b16 %v3719, %v3715
    %v4340 = vpack.c.b16 %v3720, %v3716
    %v4341 = vpack.c.b16 %v3725, %v3721
    %v4342 = vpack.c.b16 %v3726, %v3722
    %v4343 = vpack.c.b16 %v3727, %v3723
    %v4344 = vpack.c.b16 %v3728, %v3724
    %v4345 = vpack.c.b16 %v3733, %v3729
    %v4346 = vpack.c.b16 %v3734, %v3730
    %v4347 = vpack.c.b16 %v3735, %v3731
    %v4348 = vpack.c.b16 %v3736, %v3732
    %v4349 = vpack.c.b16 %v3741, %v3737
    %v4350 = vpack.c.b16 %v3742, %v3738
    %v4351 = vpack.c.b16 %v3743, %v3739
    %v4352 = vpack.c.b16 %v3744, %v3740
    %v4353 = vpack.c.b16 %v3749, %v3745
    %v4354 = vpack.c.b16 %v3750, %v3746
    %v4355 = vpack.c.b16 %v3751, %v3747
    %v4356 = vpack.c.b16 %v3752, %v3748
    %v4357 = vpack.c.b16 %v3757, %v3753
    %v4358 = vpack.c.b16 %v3758, %v3754
    %v4359 = vpack.c.b16 %v3759, %v3755
    %v4360 = vpack.c.b16 %v3760, %v3756
    %v4361 = vpack.c.b16 %v3765, %v3761
    %v4362 = vpack.c.b16 %v3766, %v3762
    %v4363 = vpack.c.b16 %v3767, %v3763
    %v4364 = vpack.c.b16 %v3768, %v3764
    %v4365 = vpack.c.b16 %v3773, %v3769
    %v4366 = vpack.c.b16 %v3774, %v3770
    %v4367 = vpack.c.b16 %v3775, %v3771
    %v4368 = vpack.c.b16 %v3776, %v3772
    %v4369 = vpack.c.b16 %v3781, %v3777
    %v4370 = vpack.c.b16 %v3782, %v3778
    %v4371 = vpack.c.b16 %v3783, %v3779
    %v4372 = vpack.c.b16 %v3784, %v3780
    %v4373 = vpack.c.b16 %v3789, %v3785
    %v4374 = vpack.c.b16 %v3790, %v3786
    %v4375 = vpack.c.b16 %v3791, %v3787
    %v4376 = vpack.c.b16 %v3792, %v3788
    %v4377 = vpack.c.b16 %v3797, %v3793
    %v4378 = vpack.c.b16 %v3798, %v3794
    %v4379 = vpack.c.b16 %v3799, %v3795
    %v4380 = vpack.c.b16 %v3800, %v3796
    %v4381 = vpack.c.b16 %v3805, %v3801
    %v4382 = vpack.c.b16 %v3806, %v3802
    %v4383 = vpack.c.b16 %v3807, %v3803
    %v4384 = vpack.c.b16 %v3808, %v3804
    %v4385 = vpack.c.b16 %v3813, %v3809
    %v4386 = vpack.c.b16 %v3814, %v3810
    %v4387 = vpack.c.b16 %v3815, %v3811
    %v4388 = vpack.c.b16 %v3816, %v3812
    %v4389 = vpack.c.b16 %v3821, %v3817
    %v4390 = vpack.c.b16 %v3822, %v3818
    %v4391 = vpack.c.b16 %v3823, %v3819
    %v4392 = vpack.c.b16 %v3824, %v3820
    %v4393 = vpack.c.b16 %v3829, %v3825
    %v4394 = vpack.c.b16 %v3830, %v3826
    %v4395 = vpack.c.b16 %v3831, %v3827
    %v4396 = vpack.c.b16 %v3832, %v3828
    %v4397 = vpack.c.b16 %v3837, %v3833
    %v4398 = vpack.c.b16 %v3838, %v3834
    %v4399 = vpack.c.b16 %v3839, %v3835
    %v4400 = vpack.c.b16 %v3840, %v3836
    %v4401 = vpack.c.b16 %v3845, %v3841
    %v4402 = vpack.c.b16 %v3846, %v3842
    %v4403 = vpack.c.b16 %v3847, %v3843
    %v4404 = vpack.c.b16 %v3848, %v3844
    %v4405 = vpack.c.b16 %v3853, %v3849
    %v4406 = vpack.c.b16 %v3854, %v3850
    %v4407 = vpack.c.b16 %v3855, %v3851
    %v4408 = vpack.c.b16 %v3856, %v3852
    %v4409 = vpack.c.b16 %v3861, %v3857
    %v4410 = vpack.c.b16 %v3862, %v3858
    %v4411 = vpack.c.b16 %v3863, %v3859
    %v4412 = vpack.c.b16 %v3864, %v3860
    %v4413 = vpack.c.b16 %v3869, %v3865
    %v4414 = vpack.c.b16 %v3870, %v3866
    %v4415 = vpack.c.b16 %v3871, %v3867
    %v4416 = vpack.c.b16 %v3872, %v3868
    %v4417 = vpack.c.b16 %v3877, %v3873
    %v4418 = vpack.c.b16 %v3878, %v3874
    %v4419 = vpack.c.b16 %v3879, %v3875
    %v4420 = vpack.c.b16 %v3880, %v3876
    %v4421 = vpack.c.b16 %v3885, %v3881
    %v4422 = vpack.c.b16 %v3886, %v3882
    %v4423 = vpack.c.b16 %v3887, %v3883
    %v4424 = vpack.c.b16 %v3888, %v3884
    %v4425 = vpack.c.b16 %v3893, %v3889
    %v4426 = vpack.c.b16 %v3894, %v3890
    %v4427 = vpack.c.b16 %v3895, %v3891
    %v4428 = vpack.c.b16 %v3896, %v3892
    %v4429 = vpack.c.b16 %v3901, %v3897
    %v4430 = vpack.c.b16 %v3902, %v3898
    %v4431 = vpack.c.b16 %v3903, %v3899
    %v4432 = vpack.c.b16 %v3904, %v3900
    %v4433 = vpack.c.b16 %v3909, %v3905
    %v4434 = vpack.c.b16 %v3910, %v3906
    %v4435 = vpack.c.b16 %v3911, %v3907
    %v4436 = vpack.c.b16 %v3912, %v3908
    %v4437 = vpack.c.b16 %v3917, %v3913
    %v4438 = vpack.c.b16 %v3918, %v3914
    %v4439 = vpack.c.b16 %v3919, %v3915
    %v4440 = vpack.c.b16 %v3920, %v3916
    %v4441 = vpack.c.b16 %v3925, %v3921
    %v4442 = vpack.c.b16 %v3926, %v3922
    %v4443 = vpack.c.b16 %v3927, %v3923
    %v4444 = vpack.c.b16 %v3928, %v3924
    %v4445 = vpack.c.b16 %v3933, %v3929
    %v4446 = vpack.c.b16 %v3934, %v3930
    %v4447 = vpack.c.b16 %v3935, %v3931
    %v4448 = vpack.c.b16 %v3936, %v3932
    %4961 = vmatprep.subr.bf16.mxu0 %v3938
    %4962 = vmatpush1.bf16.msra.mxu0 %v3937
    %4963 = vmatprep.subr.bf16.mxu0 %v3942
    %4964 = vmatpush1.bf16.msra.mxu0 %v3941
    %4965 = vmatprep.subr.bf16.mxu0 %v3946
    %4966 = vmatpush1.bf16.msra.mxu0 %v3945
    %4967 = vmatprep.subr.bf16.mxu0 %v3950
    %4968 = vmatpush1.bf16.msra.mxu0 %v3949
    %4969 = vmatprep.subr.bf16.mxu0 %v3954
    %4970 = vmatpush1.bf16.msra.mxu0 %v3953
    %4971 = vmatprep.subr.bf16.mxu0 %v3958
    %4972 = vmatpush1.bf16.msra.mxu0 %v3957
    %4973 = vmatprep.subr.bf16.mxu0 %v3962
    %4974 = vmatpush1.bf16.msra.mxu0 %v3961
    %4975 = vmatprep.subr.bf16.mxu0 %v3966
    %4976 = vmatpush1.bf16.msra.mxu0 %v3965
    %4977 = vmatprep.subr.bf16.mxu0 %v3970
    %4978 = vmatpush1.bf16.msra.mxu0 %v3969
    %4979 = vmatprep.subr.bf16.mxu0 %v3974
    %4980 = vmatpush1.bf16.msra.mxu0 %v3973
    %4981 = vmatprep.subr.bf16.mxu0 %v3978
    %4982 = vmatpush1.bf16.msra.mxu0 %v3977
    %4983 = vmatprep.subr.bf16.mxu0 %v3982
    %4984 = vmatpush1.bf16.msra.mxu0 %v3981
    %4985 = vmatprep.subr.bf16.mxu0 %v3986
    %4986 = vmatpush1.bf16.msra.mxu0 %v3985
    %4987 = vmatprep.subr.bf16.mxu0 %v3990
    %4988 = vmatpush1.bf16.msra.mxu0 %v3989
    %4989 = vmatprep.subr.bf16.mxu0 %v3994
    %4990 = vmatpush1.bf16.msra.mxu0 %v3993
    %4991 = vmatprep.subr.bf16.mxu0 %v3998
    %4992 = vmatpush1.bf16.msra.mxu0 %v3997
    %4993 = vmatprep.mubr.bf16.mxu0 %v1852
    %4994 = vmatmul.mubr.bf16.gmra.mrb[0].mxu0 %v1851
    %v4995 = vpop.f32.mrb[0].mxu0
    %v4996 = vadd.f32 %v2384, %v4995
    %v4997 = vpop.f32.mrb[0].mxu0
    %v4998 = vadd.f32 %v2388, %v4997
    %v4999 = vpop.f32.mrb[0].mxu0
    %v5000 = vadd.f32 %v2384, %v4999
    %v5001 = vpop.f32.mrb[0].mxu0
    %v5002 = vadd.f32 %v2388, %v5001
    %5003 = vdwg.mxu0
    %5004 = vmatprep.subr.bf16.mxu0 %v4002
    %5005 = vmatpush1.bf16.msra.mxu0 %v4001
    %5006 = vmatprep.subr.bf16.mxu0 %v4006
    %5007 = vmatpush1.bf16.msra.mxu0 %v4005
    %5008 = vmatprep.subr.bf16.mxu0 %v4010
    %5009 = vmatpush1.bf16.msra.mxu0 %v4009
    %5010 = vmatprep.subr.bf16.mxu0 %v4014
    %5011 = vmatpush1.bf16.msra.mxu0 %v4013
    %5012 = vmatprep.subr.bf16.mxu0 %v4018
    %5013 = vmatpush1.bf16.msra.mxu0 %v4017
    %5014 = vmatprep.subr.bf16.mxu0 %v4022
    %5015 = vmatpush1.bf16.msra.mxu0 %v4021
    %5016 = vmatprep.subr.bf16.mxu0 %v4026
    %5017 = vmatpush1.bf16.msra.mxu0 %v4025
    %5018 = vmatprep.subr.bf16.mxu0 %v4030
    %5019 = vmatpush1.bf16.msra.mxu0 %v4029
    %5020 = vmatprep.subr.bf16.mxu0 %v4034
    %5021 = vmatpush1.bf16.msra.mxu0 %v4033
    %5022 = vmatprep.subr.bf16.mxu0 %v4038
    %5023 = vmatpush1.bf16.msra.mxu0 %v4037
    %5024 = vmatprep.subr.bf16.mxu0 %v4042
    %5025 = vmatpush1.bf16.msra.mxu0 %v4041
    %5026 = vmatprep.subr.bf16.mxu0 %v4046
    %5027 = vmatpush1.bf16.msra.mxu0 %v4045
    %5028 = vmatprep.subr.bf16.mxu0 %v4050
    %5029 = vmatpush1.bf16.msra.mxu0 %v4049
    %5030 = vmatprep.subr.bf16.mxu0 %v4054
    %5031 = vmatpush1.bf16.msra.mxu0 %v4053
    %5032 = vmatprep.subr.bf16.mxu0 %v4058
    %5033 = vmatpush1.bf16.msra.mxu0 %v4057
    %5034 = vmatprep.subr.bf16.mxu0 %v4062
    %5035 = vmatpush1.bf16.msra.mxu0 %v4061
    %5036 = vmatprep.mubr.bf16.mxu0 %v1854
    %5037 = vmatmul.mubr.bf16.gmra.mrb[0].mxu0 %v1853
    %v5038 = vpop.f32.mrb[0].mxu0
    %v5039 = vadd.f32 %v4996, %v5038
    %v5040 = vpop.f32.mrb[0].mxu0
    %v5041 = vadd.f32 %v4998, %v5040
    %v5042 = vpop.f32.mrb[0].mxu0
    %v5043 = vadd.f32 %v5000, %v5042
    %v5044 = vpop.f32.mrb[0].mxu0
    %v5045 = vadd.f32 %v5002, %v5044
    %5046 = vdwg.mxu0
    %5047 = vmatprep.subr.bf16.mxu0 %v4066
    %5048 = vmatpush1.bf16.msra.mxu0 %v4065
    %5049 = vmatprep.subr.bf16.mxu0 %v4070
    %5050 = vmatpush1.bf16.msra.mxu0 %v4069
    %5051 = vmatprep.subr.bf16.mxu0 %v4074
    %5052 = vmatpush1.bf16.msra.mxu0 %v4073
    %5053 = vmatprep.subr.bf16.mxu0 %v4078
    %5054 = vmatpush1.bf16.msra.mxu0 %v4077
    %5055 = vmatprep.subr.bf16.mxu0 %v4082
    %5056 = vmatpush1.bf16.msra.mxu0 %v4081
    %5057 = vmatprep.subr.bf16.mxu0 %v4086
    %5058 = vmatpush1.bf16.msra.mxu0 %v4085
    %5059 = vmatprep.subr.bf16.mxu0 %v4090
    %5060 = vmatpush1.bf16.msra.mxu0 %v4089
    %5061 = vmatprep.subr.bf16.mxu0 %v4094
    %5062 = vmatpush1.bf16.msra.mxu0 %v4093
    %5063 = vmatprep.subr.bf16.mxu0 %v4098
    %5064 = vmatpush1.bf16.msra.mxu0 %v4097
    %5065 = vmatprep.subr.bf16.mxu0 %v4102
    %5066 = vmatpush1.bf16.msra.mxu0 %v4101
    %5067 = vmatprep.subr.bf16.mxu0 %v4106
    %5068 = vmatpush1.bf16.msra.mxu0 %v4105
    %5069 = vmatprep.subr.bf16.mxu0 %v4110
    %5070 = vmatpush1.bf16.msra.mxu0 %v4109
    %5071 = vmatprep.subr.bf16.mxu0 %v4114
    %5072 = vmatpush1.bf16.msra.mxu0 %v4113
    %5073 = vmatprep.subr.bf16.mxu0 %v4118
    %5074 = vmatpush1.bf16.msra.mxu0 %v4117
    %5075 = vmatprep.subr.bf16.mxu0 %v4122
    %5076 = vmatpush1.bf16.msra.mxu0 %v4121
    %5077 = vmatprep.subr.bf16.mxu0 %v4126
    %5078 = vmatpush1.bf16.msra.mxu0 %v4125
    %5079 = vmatprep.mubr.bf16.mxu0 %v1856
    %5080 = vmatmul.mubr.bf16.gmra.mrb[0].mxu0 %v1855
    %v5081 = vpop.f32.mrb[0].mxu0
    %v5082 = vadd.f32 %v5039, %v5081
    %v5083 = vpop.f32.mrb[0].mxu0
    %v5084 = vadd.f32 %v5041, %v5083
    %v5085 = vpop.f32.mrb[0].mxu0
    %v5086 = vadd.f32 %v5043, %v5085
    %v5087 = vpop.f32.mrb[0].mxu0
    %v5088 = vadd.f32 %v5045, %v5087
    %5089 = vdwg.mxu0
    %5090 = vmatprep.subr.bf16.mxu0 %v4130
    %5091 = vmatpush1.bf16.msra.mxu0 %v4129
    %5092 = vmatprep.subr.bf16.mxu0 %v4134
    %5093 = vmatpush1.bf16.msra.mxu0 %v4133
    %5094 = vmatprep.subr.bf16.mxu0 %v4138
    %5095 = vmatpush1.bf16.msra.mxu0 %v4137
    %5096 = vmatprep.subr.bf16.mxu0 %v4142
    %5097 = vmatpush1.bf16.msra.mxu0 %v4141
    %5098 = vmatprep.subr.bf16.mxu0 %v4146
    %5099 = vmatpush1.bf16.msra.mxu0 %v4145
    %5100 = vmatprep.subr.bf16.mxu0 %v4150
    %5101 = vmatpush1.bf16.msra.mxu0 %v4149
    %5102 = vmatprep.subr.bf16.mxu0 %v4154
    %5103 = vmatpush1.bf16.msra.mxu0 %v4153
    %5104 = vmatprep.subr.bf16.mxu0 %v4158
    %5105 = vmatpush1.bf16.msra.mxu0 %v4157
    %5106 = vmatprep.subr.bf16.mxu0 %v4162
    %5107 = vmatpush1.bf16.msra.mxu0 %v4161
    %5108 = vmatprep.subr.bf16.mxu0 %v4166
    %5109 = vmatpush1.bf16.msra.mxu0 %v4165
    %5110 = vmatprep.subr.bf16.mxu0 %v4170
    %5111 = vmatpush1.bf16.msra.mxu0 %v4169
    %5112 = vmatprep.subr.bf16.mxu0 %v4174
    %5113 = vmatpush1.bf16.msra.mxu0 %v4173
    %5114 = vmatprep.subr.bf16.mxu0 %v4178
    %5115 = vmatpush1.bf16.msra.mxu0 %v4177
    %5116 = vmatprep.subr.bf16.mxu0 %v4182
    %5117 = vmatpush1.bf16.msra.mxu0 %v4181
    %5118 = vmatprep.subr.bf16.mxu0 %v4186
    %5119 = vmatpush1.bf16.msra.mxu0 %v4185
    %5120 = vmatprep.subr.bf16.mxu0 %v4190
    %5121 = vmatpush1.bf16.msra.mxu0 %v4189
    %5122 = vmatprep.mubr.bf16.mxu0 %v1858
    %5123 = vmatmul.mubr.bf16.gmra.mrb[0].mxu0 %v1857
    %v5124 = vpop.f32.mrb[0].mxu0
    %v5125 = vadd.f32 %v5082, %v5124
    %v5126 = vpop.f32.mrb[0].mxu0
    %v5127 = vadd.f32 %v5084, %v5126
    %v5128 = vpop.f32.mrb[0].mxu0
    %v5129 = vadd.f32 %v5086, %v5128
    %v5130 = vpop.f32.mrb[0].mxu0
    %v5131 = vadd.f32 %v5088, %v5130
    %5132 = vdwg.mxu0
    %5133 = vmatprep.subr.bf16.mxu0 %v4194
    %5134 = vmatpush1.bf16.msra.mxu0 %v4193
    %5135 = vmatprep.subr.bf16.mxu0 %v4198
    %5136 = vmatpush1.bf16.msra.mxu0 %v4197
    %5137 = vmatprep.subr.bf16.mxu0 %v4202
    %5138 = vmatpush1.bf16.msra.mxu0 %v4201
    %5139 = vmatprep.subr.bf16.mxu0 %v4206
    %5140 = vmatpush1.bf16.msra.mxu0 %v4205
    %5141 = vmatprep.subr.bf16.mxu0 %v4210
    %5142 = vmatpush1.bf16.msra.mxu0 %v4209
    %5143 = vmatprep.subr.bf16.mxu0 %v4214
    %5144 = vmatpush1.bf16.msra.mxu0 %v4213
    %5145 = vmatprep.subr.bf16.mxu0 %v4218
    %5146 = vmatpush1.bf16.msra.mxu0 %v4217
    %5147 = vmatprep.subr.bf16.mxu0 %v4222
    %5148 = vmatpush1.bf16.msra.mxu0 %v4221
    %5149 = vmatprep.subr.bf16.mxu0 %v4226
    %5150 = vmatpush1.bf16.msra.mxu0 %v4225
    %5151 = vmatprep.subr.bf16.mxu0 %v4230
    %5152 = vmatpush1.bf16.msra.mxu0 %v4229
    %5153 = vmatprep.subr.bf16.mxu0 %v4234
    %5154 = vmatpush1.bf16.msra.mxu0 %v4233
    %5155 = vmatprep.subr.bf16.mxu0 %v4238
    %5156 = vmatpush1.bf16.msra.mxu0 %v4237
    %5157 = vmatprep.subr.bf16.mxu0 %v4242
    %5158 = vmatpush1.bf16.msra.mxu0 %v4241
    %5159 = vmatprep.subr.bf16.mxu0 %v4246
    %5160 = vmatpush1.bf16.msra.mxu0 %v4245
    %5161 = vmatprep.subr.bf16.mxu0 %v4250
    %5162 = vmatpush1.bf16.msra.mxu0 %v4249
    %5163 = vmatprep.subr.bf16.mxu0 %v4254
    %5164 = vmatpush1.bf16.msra.mxu0 %v4253
    %5165 = vmatprep.mubr.bf16.mxu0 %v1860
    %5166 = vmatmul.mubr.bf16.gmra.mrb[0].mxu0 %v1859
    %v5167 = vpop.f32.mrb[0].mxu0
    %v5168 = vadd.f32 %v5125, %v5167
    %v5169 = vpop.f32.mrb[0].mxu0
    %v5170 = vadd.f32 %v5127, %v5169
    %v5171 = vpop.f32.mrb[0].mxu0
    %v5172 = vadd.f32 %v5129, %v5171
    %v5173 = vpop.f32.mrb[0].mxu0
    %v5174 = vadd.f32 %v5131, %v5173
    %5175 = vdwg.mxu0
    %5176 = vmatprep.subr.bf16.mxu0 %v4258
    %5177 = vmatpush1.bf16.msra.mxu0 %v4257
    %5178 = vmatprep.subr.bf16.mxu0 %v4262
    %5179 = vmatpush1.bf16.msra.mxu0 %v4261
    %5180 = vmatprep.subr.bf16.mxu0 %v4266
    %5181 = vmatpush1.bf16.msra.mxu0 %v4265
    %5182 = vmatprep.subr.bf16.mxu0 %v4270
    %5183 = vmatpush1.bf16.msra.mxu0 %v4269
    %5184 = vmatprep.subr.bf16.mxu0 %v4274
    %5185 = vmatpush1.bf16.msra.mxu0 %v4273
    %5186 = vmatprep.subr.bf16.mxu0 %v4278
    %5187 = vmatpush1.bf16.msra.mxu0 %v4277
    %5188 = vmatprep.subr.bf16.mxu0 %v4282
    %5189 = vmatpush1.bf16.msra.mxu0 %v4281
    %5190 = vmatprep.subr.bf16.mxu0 %v4286
    %5191 = vmatpush1.bf16.msra.mxu0 %v4285
    %5192 = vmatprep.subr.bf16.mxu0 %v4290
    %5193 = vmatpush1.bf16.msra.mxu0 %v4289
    %5194 = vmatprep.subr.bf16.mxu0 %v4294
    %5195 = vmatpush1.bf16.msra.mxu0 %v4293
    %5196 = vmatprep.subr.bf16.mxu0 %v4298
    %5197 = vmatpush1.bf16.msra.mxu0 %v4297
    %5198 = vmatprep.subr.bf16.mxu0 %v4302
    %5199 = vmatpush1.bf16.msra.mxu0 %v4301
    %5200 = vmatprep.subr.bf16.mxu0 %v4306
    %5201 = vmatpush1.bf16.msra.mxu0 %v4305
    %5202 = vmatprep.subr.bf16.mxu0 %v4310
    %5203 = vmatpush1.bf16.msra.mxu0 %v4309
    %5204 = vmatprep.subr.bf16.mxu0 %v4314
    %5205 = vmatpush1.bf16.msra.mxu0 %v4313
    %5206 = vmatprep.subr.bf16.mxu0 %v4318
    %5207 = vmatpush1.bf16.msra.mxu0 %v4317
    %5208 = vmatprep.mubr.bf16.mxu0 %v1862
    %5209 = vmatmul.mubr.bf16.gmra.mrb[0].mxu0 %v1861
    %v5210 = vpop.f32.mrb[0].mxu0
    %v5211 = vadd.f32 %v5168, %v5210
    %v5212 = vpop.f32.mrb[0].mxu0
    %v5213 = vadd.f32 %v5170, %v5212
    %v5214 = vpop.f32.mrb[0].mxu0
    %v5215 = vadd.f32 %v5172, %v5214
    %v5216 = vpop.f32.mrb[0].mxu0
    %v5217 = vadd.f32 %v5174, %v5216
    %5218 = vdwg.mxu0
    %5219 = vmatprep.subr.bf16.mxu0 %v4322
    %5220 = vmatpush1.bf16.msra.mxu0 %v4321
    %5221 = vmatprep.subr.bf16.mxu0 %v4326
    %5222 = vmatpush1.bf16.msra.mxu0 %v4325
    %5223 = vmatprep.subr.bf16.mxu0 %v4330
    %5224 = vmatpush1.bf16.msra.mxu0 %v4329
    %5225 = vmatprep.subr.bf16.mxu0 %v4334
    %5226 = vmatpush1.bf16.msra.mxu0 %v4333
    %5227 = vmatprep.subr.bf16.mxu0 %v4338
    %5228 = vmatpush1.bf16.msra.mxu0 %v4337
    %5229 = vmatprep.subr.bf16.mxu0 %v4342
    %5230 = vmatpush1.bf16.msra.mxu0 %v4341
    %5231 = vmatprep.subr.bf16.mxu0 %v4346
    %5232 = vmatpush1.bf16.msra.mxu0 %v4345
    %5233 = vmatprep.subr.bf16.mxu0 %v4350
    %5234 = vmatpush1.bf16.msra.mxu0 %v4349
    %5235 = vmatprep.subr.bf16.mxu0 %v4354
    %5236 = vmatpush1.bf16.msra.mxu0 %v4353
    %5237 = vmatprep.subr.bf16.mxu0 %v4358
    %5238 = vmatpush1.bf16.msra.mxu0 %v4357
    %5239 = vmatprep.subr.bf16.mxu0 %v4362
    %5240 = vmatpush1.bf16.msra.mxu0 %v4361
    %5241 = vmatprep.subr.bf16.mxu0 %v4366
    %5242 = vmatpush1.bf16.msra.mxu0 %v4365
    %5243 = vmatprep.subr.bf16.mxu0 %v4370
    %5244 = vmatpush1.bf16.msra.mxu0 %v4369
    %5245 = vmatprep.subr.bf16.mxu0 %v4374
    %5246 = vmatpush1.bf16.msra.mxu0 %v4373
    %5247 = vmatprep.subr.bf16.mxu0 %v4378
    %5248 = vmatpush1.bf16.msra.mxu0 %v4377
    %5249 = vmatprep.subr.bf16.mxu0 %v4382
    %5250 = vmatpush1.bf16.msra.mxu0 %v4381
    %5251 = vmatprep.mubr.bf16.mxu0 %v1864
    %5252 = vmatmul.mubr.bf16.gmra.mrb[0].mxu0 %v1863
    %v5253 = vpop.f32.mrb[0].mxu0
    %v5254 = vadd.f32 %v5211, %v5253
    %v5255 = vpop.f32.mrb[0].mxu0
    %v5256 = vadd.f32 %v5213, %v5255
    %v5257 = vpop.f32.mrb[0].mxu0
    %v5258 = vadd.f32 %v5215, %v5257
    %v5259 = vpop.f32.mrb[0].mxu0
    %v5260 = vadd.f32 %v5217, %v5259
    %5261 = vdwg.mxu0
    %5262 = vmatprep.subr.bf16.mxu0 %v4386
    %5263 = vmatpush1.bf16.msra.mxu0 %v4385
    %5264 = vmatprep.subr.bf16.mxu0 %v4390
    %5265 = vmatpush1.bf16.msra.mxu0 %v4389
    %5266 = vmatprep.subr.bf16.mxu0 %v4394
    %5267 = vmatpush1.bf16.msra.mxu0 %v4393
    %5268 = vmatprep.subr.bf16.mxu0 %v4398
    %5269 = vmatpush1.bf16.msra.mxu0 %v4397
    %5270 = vmatprep.subr.bf16.mxu0 %v4402
    %5271 = vmatpush1.bf16.msra.mxu0 %v4401
    %5272 = vmatprep.subr.bf16.mxu0 %v4406
    %5273 = vmatpush1.bf16.msra.mxu0 %v4405
    %5274 = vmatprep.subr.bf16.mxu0 %v4410
    %5275 = vmatpush1.bf16.msra.mxu0 %v4409
    %5276 = vmatprep.subr.bf16.mxu0 %v4414
    %5277 = vmatpush1.bf16.msra.mxu0 %v4413
    %5278 = vmatprep.subr.bf16.mxu0 %v4418
    %5279 = vmatpush1.bf16.msra.mxu0 %v4417
    %5280 = vmatprep.subr.bf16.mxu0 %v4422
    %5281 = vmatpush1.bf16.msra.mxu0 %v4421
    %5282 = vmatprep.subr.bf16.mxu0 %v4426
    %5283 = vmatpush1.bf16.msra.mxu0 %v4425
    %5284 = vmatprep.subr.bf16.mxu0 %v4430
    %5285 = vmatpush1.bf16.msra.mxu0 %v4429
    %5286 = vmatprep.subr.bf16.mxu0 %v4434
    %5287 = vmatpush1.bf16.msra.mxu0 %v4433
    %5288 = vmatprep.subr.bf16.mxu0 %v4438
    %5289 = vmatpush1.bf16.msra.mxu0 %v4437
    %5290 = vmatprep.subr.bf16.mxu0 %v4442
    %5291 = vmatpush1.bf16.msra.mxu0 %v4441
    %5292 = vmatprep.subr.bf16.mxu0 %v4446
    %5293 = vmatpush1.bf16.msra.mxu0 %v4445
    %5294 = vmatprep.mubr.bf16.mxu0 %v1866
    %5295 = vmatmul.mubr.bf16.gmra.mrb[0].mxu0 %v1865
    %v5296 = vpop.f32.mrb[0].mxu0
    %v5297 = vadd.f32 %v5254, %v5296
    %v5298 = vpop.f32.mrb[0].mxu0
    %v5299 = vadd.f32 %v5256, %v5298
    %v5300 = vpop.f32.mrb[0].mxu0
    %v5301 = vadd.f32 %v5258, %v5300
    %v5302 = vpop.f32.mrb[0].mxu0
    %v5303 = vadd.f32 %v5260, %v5302
    %5304 = vdwg.mxu0
    %5305 = vmatprep.subr.bf16.mxu0 %v3940
    %5306 = vmatpush1.bf16.msra.mxu0 %v3939
    %5307 = vmatprep.subr.bf16.mxu0 %v3944
    %5308 = vmatpush1.bf16.msra.mxu0 %v3943
    %5309 = vmatprep.subr.bf16.mxu0 %v3948
    %5310 = vmatpush1.bf16.msra.mxu0 %v3947
    %5311 = vmatprep.subr.bf16.mxu0 %v3952
    %5312 = vmatpush1.bf16.msra.mxu0 %v3951
    %5313 = vmatprep.subr.bf16.mxu0 %v3956
    %5314 = vmatpush1.bf16.msra.mxu0 %v3955
    %5315 = vmatprep.subr.bf16.mxu0 %v3960
    %5316 = vmatpush1.bf16.msra.mxu0 %v3959
    %5317 = vmatprep.subr.bf16.mxu0 %v3964
    %5318 = vmatpush1.bf16.msra.mxu0 %v3963
    %5319 = vmatprep.subr.bf16.mxu0 %v3968
    %5320 = vmatpush1.bf16.msra.mxu0 %v3967
    %5321 = vmatprep.subr.bf16.mxu0 %v3972
    %5322 = vmatpush1.bf16.msra.mxu0 %v3971
    %5323 = vmatprep.subr.bf16.mxu0 %v3976
    %5324 = vmatpush1.bf16.msra.mxu0 %v3975
    %5325 = vmatprep.subr.bf16.mxu0 %v3980
    %5326 = vmatpush1.bf16.msra.mxu0 %v3979
    %5327 = vmatprep.subr.bf16.mxu0 %v3984
    %5328 = vmatpush1.bf16.msra.mxu0 %v3983
    %5329 = vmatprep.subr.bf16.mxu0 %v3988
    %5330 = vmatpush1.bf16.msra.mxu0 %v3987
    %5331 = vmatprep.subr.bf16.mxu0 %v3992
    %5332 = vmatpush1.bf16.msra.mxu0 %v3991
    %5333 = vmatprep.subr.bf16.mxu0 %v3996
    %5334 = vmatpush1.bf16.msra.mxu0 %v3995
    %5335 = vmatprep.subr.bf16.mxu0 %v4000
    %5336 = vmatpush1.bf16.msra.mxu0 %v3999
    %5337 = vmatprep.mubr.bf16.mxu0 %v1852
    %5338 = vmatmul.mubr.bf16.gmra.mrb[0].mxu0 %v1851
    %v5339 = vpop.f32.mrb[0].mxu0
    %v5340 = vadd.f32 %v2392, %v5339
    %v5341 = vpop.f32.mrb[0].mxu0
    %v5342 = vadd.f32 %v2396, %v5341
    %v5343 = vpop.f32.mrb[0].mxu0
    %v5344 = vadd.f32 %v2392, %v5343
    %v5345 = vpop.f32.mrb[0].mxu0
    %v5346 = vadd.f32 %v2396, %v5345
    %5347 = vdwg.mxu0
    %5348 = vmatprep.subr.bf16.mxu0 %v4004
    %5349 = vmatpush1.bf16.msra.mxu0 %v4003
    %5350 = vmatprep.subr.bf16.mxu0 %v4008
    %5351 = vmatpush1.bf16.msra.mxu0 %v4007
    %5352 = vmatprep.subr.bf16.mxu0 %v4012
    %5353 = vmatpush1.bf16.msra.mxu0 %v4011
    %5354 = vmatprep.subr.bf16.mxu0 %v4016
    %5355 = vmatpush1.bf16.msra.mxu0 %v4015
    %5356 = vmatprep.subr.bf16.mxu0 %v4020
    %5357 = vmatpush1.bf16.msra.mxu0 %v4019
    %5358 = vmatprep.subr.bf16.mxu0 %v4024
    %5359 = vmatpush1.bf16.msra.mxu0 %v4023
    %5360 = vmatprep.subr.bf16.mxu0 %v4028
    %5361 = vmatpush1.bf16.msra.mxu0 %v4027
    %5362 = vmatprep.subr.bf16.mxu0 %v4032
    %5363 = vmatpush1.bf16.msra.mxu0 %v4031
    %5364 = vmatprep.subr.bf16.mxu0 %v4036
    %5365 = vmatpush1.bf16.msra.mxu0 %v4035
    %5366 = vmatprep.subr.bf16.mxu0 %v4040
    %5367 = vmatpush1.bf16.msra.mxu0 %v4039
    %5368 = vmatprep.subr.bf16.mxu0 %v4044
    %5369 = vmatpush1.bf16.msra.mxu0 %v4043
    %5370 = vmatprep.subr.bf16.mxu0 %v4048
    %5371 = vmatpush1.bf16.msra.mxu0 %v4047
    %5372 = vmatprep.subr.bf16.mxu0 %v4052
    %5373 = vmatpush1.bf16.msra.mxu0 %v4051
    %5374 = vmatprep.subr.bf16.mxu0 %v4056
    %5375 = vmatpush1.bf16.msra.mxu0 %v4055
    %5376 = vmatprep.subr.bf16.mxu0 %v4060
    %5377 = vmatpush1.bf16.msra.mxu0 %v4059
    %5378 = vmatprep.subr.bf16.mxu0 %v4064
    %5379 = vmatpush1.bf16.msra.mxu0 %v4063
    %5380 = vmatprep.mubr.bf16.mxu0 %v1854
    %5381 = vmatmul.mubr.bf16.gmra.mrb[0].mxu0 %v1853
    %v5382 = vpop.f32.mrb[0].mxu0
    %v5383 = vadd.f32 %v5340, %v5382
    %v5384 = vpop.f32.mrb[0].mxu0
    %v5385 = vadd.f32 %v5342, %v5384
    %v5386 = vpop.f32.mrb[0].mxu0
    %v5387 = vadd.f32 %v5344, %v5386
    %v5388 = vpop.f32.mrb[0].mxu0
    %v5389 = vadd.f32 %v5346, %v5388
    %5390 = vdwg.mxu0
    %5391 = vmatprep.subr.bf16.mxu0 %v4068
    %5392 = vmatpush1.bf16.msra.mxu0 %v4067
    %5393 = vmatprep.subr.bf16.mxu0 %v4072
    %5394 = vmatpush1.bf16.msra.mxu0 %v4071
    %5395 = vmatprep.subr.bf16.mxu0 %v4076
    %5396 = vmatpush1.bf16.msra.mxu0 %v4075
    %5397 = vmatprep.subr.bf16.mxu0 %v4080
    %5398 = vmatpush1.bf16.msra.mxu0 %v4079
    %5399 = vmatprep.subr.bf16.mxu0 %v4084
    %5400 = vmatpush1.bf16.msra.mxu0 %v4083
    %5401 = vmatprep.subr.bf16.mxu0 %v4088
    %5402 = vmatpush1.bf16.msra.mxu0 %v4087
    %5403 = vmatprep.subr.bf16.mxu0 %v4092
    %5404 = vmatpush1.bf16.msra.mxu0 %v4091
    %5405 = vmatprep.subr.bf16.mxu0 %v4096
    %5406 = vmatpush1.bf16.msra.mxu0 %v4095
    %5407 = vmatprep.subr.bf16.mxu0 %v4100
    %5408 = vmatpush1.bf16.msra.mxu0 %v4099
    %5409 = vmatprep.subr.bf16.mxu0 %v4104
    %5410 = vmatpush1.bf16.msra.mxu0 %v4103
    %5411 = vmatprep.subr.bf16.mxu0 %v4108
    %5412 = vmatpush1.bf16.msra.mxu0 %v4107
    %5413 = vmatprep.subr.bf16.mxu0 %v4112
    %5414 = vmatpush1.bf16.msra.mxu0 %v4111
    %5415 = vmatprep.subr.bf16.mxu0 %v4116
    %5416 = vmatpush1.bf16.msra.mxu0 %v4115
    %5417 = vmatprep.subr.bf16.mxu0 %v4120
    %5418 = vmatpush1.bf16.msra.mxu0 %v4119
    %5419 = vmatprep.subr.bf16.mxu0 %v4124
    %5420 = vmatpush1.bf16.msra.mxu0 %v4123
    %5421 = vmatprep.subr.bf16.mxu0 %v4128
    %5422 = vmatpush1.bf16.msra.mxu0 %v4127
    %5423 = vmatprep.mubr.bf16.mxu0 %v1856
    %5424 = vmatmul.mubr.bf16.gmra.mrb[0].mxu0 %v1855
    %v5425 = vpop.f32.mrb[0].mxu0
    %v5426 = vadd.f32 %v5383, %v5425
    %v5427 = vpop.f32.mrb[0].mxu0
    %v5428 = vadd.f32 %v5385, %v5427
    %v5429 = vpop.f32.mrb[0].mxu0
    %v5430 = vadd.f32 %v5387, %v5429
    %v5431 = vpop.f32.mrb[0].mxu0
    %v5432 = vadd.f32 %v5389, %v5431
    %5433 = vdwg.mxu0
    %5434 = vmatprep.subr.bf16.mxu0 %v4132
    %5435 = vmatpush1.bf16.msra.mxu0 %v4131
    %5436 = vmatprep.subr.bf16.mxu0 %v4136
    %5437 = vmatpush1.bf16.msra.mxu0 %v4135
    %5438 = vmatprep.subr.bf16.mxu0 %v4140
    %5439 = vmatpush1.bf16.msra.mxu0 %v4139
    %5440 = vmatprep.subr.bf16.mxu0 %v4144
    %5441 = vmatpush1.bf16.msra.mxu0 %v4143
    %5442 = vmatprep.subr.bf16.mxu0 %v4148
    %5443 = vmatpush1.bf16.msra.mxu0 %v4147
    %5444 = vmatprep.subr.bf16.mxu0 %v4152
    %5445 = vmatpush1.bf16.msra.mxu0 %v4151
    %5446 = vmatprep.subr.bf16.mxu0 %v4156
    %5447 = vmatpush1.bf16.msra.mxu0 %v4155
    %5448 = vmatprep.subr.bf16.mxu0 %v4160
    %5449 = vmatpush1.bf16.msra.mxu0 %v4159
    %5450 = vmatprep.subr.bf16.mxu0 %v4164
    %5451 = vmatpush1.bf16.msra.mxu0 %v4163
    %5452 = vmatprep.subr.bf16.mxu0 %v4168
    %5453 = vmatpush1.bf16.msra.mxu0 %v4167
    %5454 = vmatprep.subr.bf16.mxu0 %v4172
    %5455 = vmatpush1.bf16.msra.mxu0 %v4171
    %5456 = vmatprep.subr.bf16.mxu0 %v4176
    %5457 = vmatpush1.bf16.msra.mxu0 %v4175
    %5458 = vmatprep.subr.bf16.mxu0 %v4180
    %5459 = vmatpush1.bf16.msra.mxu0 %v4179
    %5460 = vmatprep.subr.bf16.mxu0 %v4184
    %5461 = vmatpush1.bf16.msra.mxu0 %v4183
    %5462 = vmatprep.subr.bf16.mxu0 %v4188
    %5463 = vmatpush1.bf16.msra.mxu0 %v4187
    %5464 = vmatprep.subr.bf16.mxu0 %v4192
    %5465 = vmatpush1.bf16.msra.mxu0 %v4191
    %5466 = vmatprep.mubr.bf16.mxu0 %v1858
    %5467 = vmatmul.mubr.bf16.gmra.mrb[0].mxu0 %v1857
    %v5468 = vpop.f32.mrb[0].mxu0
    %v5469 = vadd.f32 %v5426, %v5468
    %v5470 = vpop.f32.mrb[0].mxu0
    %v5471 = vadd.f32 %v5428, %v5470
    %v5472 = vpop.f32.mrb[0].mxu0
    %v5473 = vadd.f32 %v5430, %v5472
    %v5474 = vpop.f32.mrb[0].mxu0
    %v5475 = vadd.f32 %v5432, %v5474
    %5476 = vdwg.mxu0
    %5477 = vmatprep.subr.bf16.mxu0 %v4196
    %5478 = vmatpush1.bf16.msra.mxu0 %v4195
    %5479 = vmatprep.subr.bf16.mxu0 %v4200
    %5480 = vmatpush1.bf16.msra.mxu0 %v4199
    %5481 = vmatprep.subr.bf16.mxu0 %v4204
    %5482 = vmatpush1.bf16.msra.mxu0 %v4203
    %5483 = vmatprep.subr.bf16.mxu0 %v4208
    %5484 = vmatpush1.bf16.msra.mxu0 %v4207
    %5485 = vmatprep.subr.bf16.mxu0 %v4212
    %5486 = vmatpush1.bf16.msra.mxu0 %v4211
    %5487 = vmatprep.subr.bf16.mxu0 %v4216
    %5488 = vmatpush1.bf16.msra.mxu0 %v4215
    %5489 = vmatprep.subr.bf16.mxu0 %v4220
    %5490 = vmatpush1.bf16.msra.mxu0 %v4219
    %5491 = vmatprep.subr.bf16.mxu0 %v4224
    %5492 = vmatpush1.bf16.msra.mxu0 %v4223
    %5493 = vmatprep.subr.bf16.mxu0 %v4228
    %5494 = vmatpush1.bf16.msra.mxu0 %v4227
    %5495 = vmatprep.subr.bf16.mxu0 %v4232
    %5496 = vmatpush1.bf16.msra.mxu0 %v4231
    %5497 = vmatprep.subr.bf16.mxu0 %v4236
    %5498 = vmatpush1.bf16.msra.mxu0 %v4235
    %5499 = vmatprep.subr.bf16.mxu0 %v4240
    %5500 = vmatpush1.bf16.msra.mxu0 %v4239
    %5501 = vmatprep.subr.bf16.mxu0 %v4244
    %5502 = vmatpush1.bf16.msra.mxu0 %v4243
    %5503 = vmatprep.subr.bf16.mxu0 %v4248
    %5504 = vmatpush1.bf16.msra.mxu0 %v4247
    %5505 = vmatprep.subr.bf16.mxu0 %v4252
    %5506 = vmatpush1.bf16.msra.mxu0 %v4251
    %5507 = vmatprep.subr.bf16.mxu0 %v4256
    %5508 = vmatpush1.bf16.msra.mxu0 %v4255
    %5509 = vmatprep.mubr.bf16.mxu0 %v1860
    %5510 = vmatmul.mubr.bf16.gmra.mrb[0].mxu0 %v1859
    %v5511 = vpop.f32.mrb[0].mxu0
    %v5512 = vadd.f32 %v5469, %v5511
    %v5513 = vpop.f32.mrb[0].mxu0
    %v5514 = vadd.f32 %v5471, %v5513
    %v5515 = vpop.f32.mrb[0].mxu0
    %v5516 = vadd.f32 %v5473, %v5515
    %v5517 = vpop.f32.mrb[0].mxu0
    %v5518 = vadd.f32 %v5475, %v5517
    %5519 = vdwg.mxu0
    %5520 = vmatprep.subr.bf16.mxu0 %v4260
    %5521 = vmatpush1.bf16.msra.mxu0 %v4259
    %5522 = vmatprep.subr.bf16.mxu0 %v4264
    %5523 = vmatpush1.bf16.msra.mxu0 %v4263
    %5524 = vmatprep.subr.bf16.mxu0 %v4268
    %5525 = vmatpush1.bf16.msra.mxu0 %v4267
    %5526 = vmatprep.subr.bf16.mxu0 %v4272
    %5527 = vmatpush1.bf16.msra.mxu0 %v4271
    %5528 = vmatprep.subr.bf16.mxu0 %v4276
    %5529 = vmatpush1.bf16.msra.mxu0 %v4275
    %5530 = vmatprep.subr.bf16.mxu0 %v4280
    %5531 = vmatpush1.bf16.msra.mxu0 %v4279
    %5532 = vmatprep.subr.bf16.mxu0 %v4284
    %5533 = vmatpush1.bf16.msra.mxu0 %v4283
    %5534 = vmatprep.subr.bf16.mxu0 %v4288
    %5535 = vmatpush1.bf16.msra.mxu0 %v4287
    %5536 = vmatprep.subr.bf16.mxu0 %v4292
    %5537 = vmatpush1.bf16.msra.mxu0 %v4291
    %5538 = vmatprep.subr.bf16.mxu0 %v4296
    %5539 = vmatpush1.bf16.msra.mxu0 %v4295
    %5540 = vmatprep.subr.bf16.mxu0 %v4300
    %5541 = vmatpush1.bf16.msra.mxu0 %v4299
    %5542 = vmatprep.subr.bf16.mxu0 %v4304
    %5543 = vmatpush1.bf16.msra.mxu0 %v4303
    %5544 = vmatprep.subr.bf16.mxu0 %v4308
    %5545 = vmatpush1.bf16.msra.mxu0 %v4307
    %5546 = vmatprep.subr.bf16.mxu0 %v4312
    %5547 = vmatpush1.bf16.msra.mxu0 %v4311
    %5548 = vmatprep.subr.bf16.mxu0 %v4316
    %5549 = vmatpush1.bf16.msra.mxu0 %v4315
    %5550 = vmatprep.subr.bf16.mxu0 %v4320
    %5551 = vmatpush1.bf16.msra.mxu0 %v4319
    %5552 = vmatprep.mubr.bf16.mxu0 %v1862
    %5553 = vmatmul.mubr.bf16.gmra.mrb[0].mxu0 %v1861
    %v5554 = vpop.f32.mrb[0].mxu0
    %v5555 = vadd.f32 %v5512, %v5554
    %v5556 = vpop.f32.mrb[0].mxu0
    %v5557 = vadd.f32 %v5514, %v5556
    %v5558 = vpop.f32.mrb[0].mxu0
    %v5559 = vadd.f32 %v5516, %v5558
    %v5560 = vpop.f32.mrb[0].mxu0
    %v5561 = vadd.f32 %v5518, %v5560
    %5562 = vdwg.mxu0
    %5563 = vmatprep.subr.bf16.mxu0 %v4324
    %5564 = vmatpush1.bf16.msra.mxu0 %v4323
    %5565 = vmatprep.subr.bf16.mxu0 %v4328
    %5566 = vmatpush1.bf16.msra.mxu0 %v4327
    %5567 = vmatprep.subr.bf16.mxu0 %v4332
    %5568 = vmatpush1.bf16.msra.mxu0 %v4331
    %5569 = vmatprep.subr.bf16.mxu0 %v4336
    %5570 = vmatpush1.bf16.msra.mxu0 %v4335
    %5571 = vmatprep.subr.bf16.mxu0 %v4340
    %5572 = vmatpush1.bf16.msra.mxu0 %v4339
    %5573 = vmatprep.subr.bf16.mxu0 %v4344
    %5574 = vmatpush1.bf16.msra.mxu0 %v4343
    %5575 = vmatprep.subr.bf16.mxu0 %v4348
    %5576 = vmatpush1.bf16.msra.mxu0 %v4347
    %5577 = vmatprep.subr.bf16.mxu0 %v4352
    %5578 = vmatpush1.bf16.msra.mxu0 %v4351
    %5579 = vmatprep.subr.bf16.mxu0 %v4356
    %5580 = vmatpush1.bf16.msra.mxu0 %v4355
    %5581 = vmatprep.subr.bf16.mxu0 %v4360
    %5582 = vmatpush1.bf16.msra.mxu0 %v4359
    %5583 = vmatprep.subr.bf16.mxu0 %v4364
    %5584 = vmatpush1.bf16.msra.mxu0 %v4363
    %5585 = vmatprep.subr.bf16.mxu0 %v4368
    %5586 = vmatpush1.bf16.msra.mxu0 %v4367
    %5587 = vmatprep.subr.bf16.mxu0 %v4372
    %5588 = vmatpush1.bf16.msra.mxu0 %v4371
    %5589 = vmatprep.subr.bf16.mxu0 %v4376
    %5590 = vmatpush1.bf16.msra.mxu0 %v4375
    %5591 = vmatprep.subr.bf16.mxu0 %v4380
    %5592 = vmatpush1.bf16.msra.mxu0 %v4379
    %5593 = vmatprep.subr.bf16.mxu0 %v4384
    %5594 = vmatpush1.bf16.msra.mxu0 %v4383
    %5595 = vmatprep.mubr.bf16.mxu0 %v1864
    %5596 = vmatmul.mubr.bf16.gmra.mrb[0].mxu0 %v1863
    %v5597 = vpop.f32.mrb[0].mxu0
    %v5598 = vadd.f32 %v5555, %v5597
    %v5599 = vpop.f32.mrb[0].mxu0
    %v5600 = vadd.f32 %v5557, %v5599
    %v5601 = vpop.f32.mrb[0].mxu0
    %v5602 = vadd.f32 %v5559, %v5601
    %v5603 = vpop.f32.mrb[0].mxu0
    %v5604 = vadd.f32 %v5561, %v5603
    %5605 = vdwg.mxu0
    %5606 = vmatprep.subr.bf16.mxu0 %v4388
    %5607 = vmatpush1.bf16.msra.mxu0 %v4387
    %5608 = vmatprep.subr.bf16.mxu0 %v4392
    %5609 = vmatpush1.bf16.msra.mxu0 %v4391
    %5610 = vmatprep.subr.bf16.mxu0 %v4396
    %5611 = vmatpush1.bf16.msra.mxu0 %v4395
    %5612 = vmatprep.subr.bf16.mxu0 %v4400
    %5613 = vmatpush1.bf16.msra.mxu0 %v4399
    %5614 = vmatprep.subr.bf16.mxu0 %v4404
    %5615 = vmatpush1.bf16.msra.mxu0 %v4403
    %5616 = vmatprep.subr.bf16.mxu0 %v4408
    %5617 = vmatpush1.bf16.msra.mxu0 %v4407
    %5618 = vmatprep.subr.bf16.mxu0 %v4412
    %5619 = vmatpush1.bf16.msra.mxu0 %v4411
    %5620 = vmatprep.subr.bf16.mxu0 %v4416
    %5621 = vmatpush1.bf16.msra.mxu0 %v4415
    %5622 = vmatprep.subr.bf16.mxu0 %v4420
    %5623 = vmatpush1.bf16.msra.mxu0 %v4419
    %5624 = vmatprep.subr.bf16.mxu0 %v4424
    %5625 = vmatpush1.bf16.msra.mxu0 %v4423
    %5626 = vmatprep.subr.bf16.mxu0 %v4428
    %5627 = vmatpush1.bf16.msra.mxu0 %v4427
    %5628 = vmatprep.subr.bf16.mxu0 %v4432
    %5629 = vmatpush1.bf16.msra.mxu0 %v4431
    %5630 = vmatprep.subr.bf16.mxu0 %v4436
    %5631 = vmatpush1.bf16.msra.mxu0 %v4435
    %5632 = vmatprep.subr.bf16.mxu0 %v4440
    %5633 = vmatpush1.bf16.msra.mxu0 %v4439
    %5634 = vmatprep.subr.bf16.mxu0 %v4444
    %5635 = vmatpush1.bf16.msra.mxu0 %v4443
    %5636 = vmatprep.subr.bf16.mxu0 %v4448
    %5637 = vmatpush1.bf16.msra.mxu0 %v4447
    %5638 = vmatprep.mubr.bf16.mxu0 %v1866
    %5639 = vmatmul.mubr.bf16.gmra.mrb[0].mxu0 %v1865
    %v5640 = vpop.f32.mrb[0].mxu0
    %v5641 = vadd.f32 %v5598, %v5640
    %v5642 = vpop.f32.mrb[0].mxu0
    %v5643 = vadd.f32 %v5600, %v5642
    %v5644 = vpop.f32.mrb[0].mxu0
    %v5645 = vadd.f32 %v5602, %v5644
    %v5646 = vpop.f32.mrb[0].mxu0
    %v5647 = vadd.f32 %v5604, %v5646
    %5648 = vdwg.mxu0
    %v5649 = vld [vmem:[#allocation15] sm:$0xf]
    %v5650 = vld [vmem:[#allocation17] sm:$0xf]
    %v5651 = vadd.f32 %v5297, %v5299
    %v5652 = vadd.f32 %v5651, %v5641
    %v5653 = vadd.f32 %v5652, %v5643
    %5654 = vadd.xlane.f32.xlu0 %v5653
    %v5655 = vpop.xlane.xlu0 %5654
    %v5656 = vadd.f32 %v5301, %v5303
    %v5657 = vadd.f32 %v5656, %v5645
    %v5658 = vadd.f32 %v5657, %v5647
    %5659 = vadd.xlane.f32.xlu0 %v5658
    %v5660 = vpop.xlane.xlu0 %5659
    %v5661 = vrcp.pop 512.0
    %v5662 = vmul.f32 %v5655, %v5661
    %v5663 = vmul.f32 %v5660, %v5661
    %v5664 = vsub.f32 %v5297, %v5662
    %v5665 = vsub.f32 %v5299, %v5662
    %v5666 = vsub.f32 %v5641, %v5662
    %v5667 = vsub.f32 %v5643, %v5662
    %v5668 = vsub.f32 %v5301, %v5663
    %v5669 = vsub.f32 %v5303, %v5663
    %v5670 = vsub.f32 %v5645, %v5663
    %v5671 = vsub.f32 %v5647, %v5663
    %v5672 = vmul.f32 %v5664, %v5664
    %v5673 = vmul.f32 %v5665, %v5665
    %v5674 = vmul.f32 %v5666, %v5666
    %v5675 = vmul.f32 %v5667, %v5667
    %v5676 = vmul.f32 %v5668, %v5668
    %v5677 = vmul.f32 %v5669, %v5669
    %v5678 = vmul.f32 %v5670, %v5670
    %v5679 = vmul.f32 %v5671, %v5671
    %v5680 = vadd.f32 %v5672, %v5673
    %v5681 = vadd.f32 %v5680, %v5674
    %v5682 = vadd.f32 %v5681, %v5675
    %5683 = vadd.xlane.f32.xlu0 %v5682
    %v5684 = vpop.xlane.xlu0 %5683
    %v5685 = vadd.f32 %v5676, %v5677
    %v5686 = vadd.f32 %v5685, %v5678
    %v5687 = vadd.f32 %v5686, %v5679
    %5688 = vadd.xlane.f32.xlu0 %v5687
    %v5689 = vpop.xlane.xlu0 %5688
    %v5690 = vmul.f32 %v5684, %v5661
    %v5691 = vmul.f32 %v5689, %v5661
    %v5692 = vadd.f32 %v5690, 1e-05
    %v5693 = vadd.f32 %v5691, 1e-05
    %v5694 = vrsqrt.pop %v5692
    %v5695 = vrsqrt.pop %v5693
    %v5696 = vmul.f32 %v5664, %v5694
    %v5697 = vmul.f32 %v5665, %v5694
    %v5698 = vmul.f32 %v5666, %v5694
    %v5699 = vmul.f32 %v5667, %v5694
    %v5700 = vmul.f32 %v5668, %v5695
    %v5701 = vmul.f32 %v5669, %v5695
    %v5702 = vmul.f32 %v5670, %v5695
    %v5703 = vmul.f32 %v5671, %v5695
    %v5705 = vlaneseq
    %v5706 = vshrl.u32 %v5705, 7
    %v5707 = vsub.s32 0, %v5706
    %v5708 = vrot.slane %v5649, %v5707
    %v5709 = vlaneseq
    %v5710 = vshrl.u32 %v5709, 7
    %v5711 = vsub.s32 1, %v5710
    %v5712 = vrot.slane %v5649, %v5711
    %v5713 = vlaneseq
    %v5714 = vshrl.u32 %v5713, 7
    %v5715 = vsub.s32 2, %v5714
    %v5716 = vrot.slane %v5649, %v5715
    %v5717 = vlaneseq
    %v5718 = vshrl.u32 %v5717, 7
    %v5719 = vsub.s32 3, %v5718
    %v5720 = vrot.slane %v5649, %v5719
    %v5725 = vmul.f32 %v5696, %v5708
    %v5726 = vmul.f32 %v5697, %v5712
    %v5727 = vmul.f32 %v5698, %v5716
    %v5728 = vmul.f32 %v5699, %v5720
    %v5729 = vmul.f32 %v5700, %v5708
    %v5730 = vmul.f32 %v5701, %v5712
    %v5731 = vmul.f32 %v5702, %v5716
    %v5732 = vmul.f32 %v5703, %v5720
    %v5734 = vlaneseq
    %v5735 = vshrl.u32 %v5734, 7
    %v5736 = vsub.s32 0, %v5735
    %v5737 = vrot.slane %v5650, %v5736
    %v5738 = vlaneseq
    %v5739 = vshrl.u32 %v5738, 7
    %v5740 = vsub.s32 1, %v5739
    %v5741 = vrot.slane %v5650, %v5740
    %v5742 = vlaneseq
    %v5743 = vshrl.u32 %v5742, 7
    %v5744 = vsub.s32 2, %v5743
    %v5745 = vrot.slane %v5650, %v5744
    %v5746 = vlaneseq
    %v5747 = vshrl.u32 %v5746, 7
    %v5748 = vsub.s32 3, %v5747
    %v5749 = vrot.slane %v5650, %v5748
    %v5754 = vadd.f32 %v5725, %v5737
    %v5755 = vadd.f32 %v5726, %v5741
    %v5756 = vadd.f32 %v5727, %v5745
    %v5757 = vadd.f32 %v5728, %v5749
    %v5758 = vadd.f32 %v5729, %v5737
    %v5759 = vadd.f32 %v5730, %v5741
    %v5760 = vadd.f32 %v5731, %v5745
    %v5761 = vadd.f32 %v5732, %v5749
    %v5762 = vmax.f32 %v5754, 0.0
    %v5763 = vmax.f32 %v5755, 0.0
    %v5764 = vmax.f32 %v5756, 0.0
    %v5765 = vmax.f32 %v5757, 0.0
    %v5766 = vmax.f32 %v5758, 0.0
    %v5767 = vmax.f32 %v5759, 0.0
    %v5768 = vmax.f32 %v5760, 0.0
    %v5769 = vmax.f32 %v5761, 0.0
    %v5770 = vpack.c.bf16 %v5766, %v5762
    %v5771 = vpack.c.bf16 %v5767, %v5763
    %v5772 = vpack.c.bf16 %v5768, %v5764
    %v5773 = vpack.c.bf16 %v5769, %v5765
    %v5774 = vld [vmem:[%s9] sm:$0xf]
    %v5775 = vld [vmem:[%s9 + $0x4] sm:$0xf]
    %v5776 = vld [vmem:[%s9 + $0x8] sm:$0xf]
    %v5777 = vld [vmem:[%s9 + $0xc] sm:$0xf]
    %v5778 = vld [vmem:[%s9 + $0x10] sm:$0xf]
    %v5779 = vld [vmem:[%s9 + $0x14] sm:$0xf]
    %v5780 = vld [vmem:[%s9 + $0x18] sm:$0xf]
    %v5781 = vld [vmem:[%s9 + $0x1c] sm:$0xf]
    %v5782 = vld [vmem:[%s9 + $0x20] sm:$0xf]
    %v5783 = vld [vmem:[%s9 + $0x24] sm:$0xf]
    %v5784 = vld [vmem:[%s9 + $0x28] sm:$0xf]
    %v5785 = vld [vmem:[%s9 + $0x2c] sm:$0xf]
    %v5786 = vld [vmem:[%s9 + $0x30] sm:$0xf]
    %v5787 = vld [vmem:[%s9 + $0x34] sm:$0xf]
    %v5788 = vld [vmem:[%s9 + $0x38] sm:$0xf]
    %v5789 = vld [vmem:[%s9 + $0x3c] sm:$0xf]
    %v5790 = vld [vmem:[%s9 + $0x40] sm:$0xf]
    %v5791 = vld [vmem:[%s9 + $0x44] sm:$0xf]
    %v5792 = vld [vmem:[%s9 + $0x48] sm:$0xf]
    %v5793 = vld [vmem:[%s9 + $0x4c] sm:$0xf]
    %v5794 = vld [vmem:[%s9 + $0x50] sm:$0xf]
    %v5795 = vld [vmem:[%s9 + $0x54] sm:$0xf]
    %v5796 = vld [vmem:[%s9 + $0x58] sm:$0xf]
    %v5797 = vld [vmem:[%s9 + $0x5c] sm:$0xf]
    %v5798 = vld [vmem:[%s9 + $0x60] sm:$0xf]
    %v5799 = vld [vmem:[%s9 + $0x64] sm:$0xf]
    %v5800 = vld [vmem:[%s9 + $0x68] sm:$0xf]
    %v5801 = vld [vmem:[%s9 + $0x6c] sm:$0xf]
    %v5802 = vld [vmem:[%s9 + $0x70] sm:$0xf]
    %v5803 = vld [vmem:[%s9 + $0x74] sm:$0xf]
    %v5804 = vld [vmem:[%s9 + $0x78] sm:$0xf]
    %v5805 = vld [vmem:[%s9 + $0x7c] sm:$0xf]
    %v5806 = vld [vmem:[%s9 + $0x80] sm:$0xf]
    %v5807 = vld [vmem:[%s9 + $0x84] sm:$0xf]
    %v5808 = vld [vmem:[%s9 + $0x88] sm:$0xf]
    %v5809 = vld [vmem:[%s9 + $0x8c] sm:$0xf]
    %v5810 = vld [vmem:[%s9 + $0x90] sm:$0xf]
    %v5811 = vld [vmem:[%s9 + $0x94] sm:$0xf]
    %v5812 = vld [vmem:[%s9 + $0x98] sm:$0xf]
    %v5813 = vld [vmem:[%s9 + $0x9c] sm:$0xf]
    %v5814 = vld [vmem:[%s9 + $0xa0] sm:$0xf]
    %v5815 = vld [vmem:[%s9 + $0xa4] sm:$0xf]
    %v5816 = vld [vmem:[%s9 + $0xa8] sm:$0xf]
    %v5817 = vld [vmem:[%s9 + $0xac] sm:$0xf]
    %v5818 = vld [vmem:[%s9 + $0xb0] sm:$0xf]
    %v5819 = vld [vmem:[%s9 + $0xb4] sm:$0xf]
    %v5820 = vld [vmem:[%s9 + $0xb8] sm:$0xf]
    %v5821 = vld [vmem:[%s9 + $0xbc] sm:$0xf]
    %v5822 = vld [vmem:[%s9 + $0xc0] sm:$0xf]
    %v5823 = vld [vmem:[%s9 + $0xc4] sm:$0xf]
    %v5824 = vld [vmem:[%s9 + $0xc8] sm:$0xf]
    %v5825 = vld [vmem:[%s9 + $0xcc] sm:$0xf]
    %v5826 = vld [vmem:[%s9 + $0xd0] sm:$0xf]
    %v5827 = vld [vmem:[%s9 + $0xd4] sm:$0xf]
    %v5828 = vld [vmem:[%s9 + $0xd8] sm:$0xf]
    %v5829 = vld [vmem:[%s9 + $0xdc] sm:$0xf]
    %v5830 = vld [vmem:[%s9 + $0xe0] sm:$0xf]
    %v5831 = vld [vmem:[%s9 + $0xe4] sm:$0xf]
    %v5832 = vld [vmem:[%s9 + $0xe8] sm:$0xf]
    %v5833 = vld [vmem:[%s9 + $0xec] sm:$0xf]
    %v5834 = vld [vmem:[%s9 + $0xf0] sm:$0xf]
    %v5835 = vld [vmem:[%s9 + $0xf4] sm:$0xf]
    %v5836 = vld [vmem:[%s9 + $0xf8] sm:$0xf]
    %v5837 = vld [vmem:[%s9 + $0xfc] sm:$0xf]
    %v5838 = vld [vmem:[#allocation18] sm:$0x1]
    %v5840 = vlaneseq
    %v5841 = vshrl.u32 %v5840, 7
    %v5842 = vsub.s32 0, %v5841
    %v5843 = vrot.slane %v5838, %v5842
    %v5909 = vunpack.c.l.b16 %v5774
    %v5910 = vunpack.c.l.b16 %v5775
    %v5911 = vunpack.c.l.b16 %v5776
    %v5912 = vunpack.c.l.b16 %v5777
    %v5913 = vunpack.c.l.b16 %v5778
    %v5914 = vunpack.c.l.b16 %v5779
    %v5915 = vunpack.c.l.b16 %v5780
    %v5916 = vunpack.c.l.b16 %v5781
    %v5917 = vunpack.c.l.b16 %v5782
    %v5918 = vunpack.c.l.b16 %v5783
    %v5919 = vunpack.c.l.b16 %v5784
    %v5920 = vunpack.c.l.b16 %v5785
    %v5921 = vunpack.c.l.b16 %v5786
    %v5922 = vunpack.c.l.b16 %v5787
    %v5923 = vunpack.c.l.b16 %v5788
    %v5924 = vunpack.c.l.b16 %v5789
    %v5925 = vunpack.c.l.b16 %v5790
    %v5926 = vunpack.c.l.b16 %v5791
    %v5927 = vunpack.c.l.b16 %v5792
    %v5928 = vunpack.c.l.b16 %v5793
    %v5929 = vunpack.c.l.b16 %v5794
    %v5930 = vunpack.c.l.b16 %v5795
    %v5931 = vunpack.c.l.b16 %v5796
    %v5932 = vunpack.c.l.b16 %v5797
    %v5933 = vunpack.c.l.b16 %v5798
    %v5934 = vunpack.c.l.b16 %v5799
    %v5935 = vunpack.c.l.b16 %v5800
    %v5936 = vunpack.c.l.b16 %v5801
    %v5937 = vunpack.c.l.b16 %v5802
    %v5938 = vunpack.c.l.b16 %v5803
    %v5939 = vunpack.c.l.b16 %v5804
    %v5940 = vunpack.c.l.b16 %v5805
    %v5941 = vunpack.c.l.b16 %v5806
    %v5942 = vunpack.c.l.b16 %v5807
    %v5943 = vunpack.c.l.b16 %v5808
    %v5944 = vunpack.c.l.b16 %v5809
    %v5945 = vunpack.c.l.b16 %v5810
    %v5946 = vunpack.c.l.b16 %v5811
    %v5947 = vunpack.c.l.b16 %v5812
    %v5948 = vunpack.c.l.b16 %v5813
    %v5949 = vunpack.c.l.b16 %v5814
    %v5950 = vunpack.c.l.b16 %v5815
    %v5951 = vunpack.c.l.b16 %v5816
    %v5952 = vunpack.c.l.b16 %v5817
    %v5953 = vunpack.c.l.b16 %v5818
    %v5954 = vunpack.c.l.b16 %v5819
    %v5955 = vunpack.c.l.b16 %v5820
    %v5956 = vunpack.c.l.b16 %v5821
    %v5957 = vunpack.c.l.b16 %v5822
    %v5958 = vunpack.c.l.b16 %v5823
    %v5959 = vunpack.c.l.b16 %v5824
    %v5960 = vunpack.c.l.b16 %v5825
    %v5961 = vunpack.c.l.b16 %v5826
    %v5962 = vunpack.c.l.b16 %v5827
    %v5963 = vunpack.c.l.b16 %v5828
    %v5964 = vunpack.c.l.b16 %v5829
    %v5965 = vunpack.c.l.b16 %v5830
    %v5966 = vunpack.c.l.b16 %v5831
    %v5967 = vunpack.c.l.b16 %v5832
    %v5968 = vunpack.c.l.b16 %v5833
    %v5969 = vunpack.c.l.b16 %v5834
    %v5970 = vunpack.c.l.b16 %v5835
    %v5971 = vunpack.c.l.b16 %v5836
    %v5972 = vunpack.c.l.b16 %v5837
    %v5973 = vpack.c.b16 %v5910, %v5909
    %v5974 = vpack.c.b16 %v5912, %v5911
    %v5975 = vpack.c.b16 %v5914, %v5913
    %v5976 = vpack.c.b16 %v5916, %v5915
    %v5977 = vpack.c.b16 %v5918, %v5917
    %v5978 = vpack.c.b16 %v5920, %v5919
    %v5979 = vpack.c.b16 %v5922, %v5921
    %v5980 = vpack.c.b16 %v5924, %v5923
    %v5981 = vpack.c.b16 %v5926, %v5925
    %v5982 = vpack.c.b16 %v5928, %v5927
    %v5983 = vpack.c.b16 %v5930, %v5929
    %v5984 = vpack.c.b16 %v5932, %v5931
    %v5985 = vpack.c.b16 %v5934, %v5933
    %v5986 = vpack.c.b16 %v5936, %v5935
    %v5987 = vpack.c.b16 %v5938, %v5937
    %v5988 = vpack.c.b16 %v5940, %v5939
    %v5989 = vpack.c.b16 %v5942, %v5941
    %v5990 = vpack.c.b16 %v5944, %v5943
    %v5991 = vpack.c.b16 %v5946, %v5945
    %v5992 = vpack.c.b16 %v5948, %v5947
    %v5993 = vpack.c.b16 %v5950, %v5949
    %v5994 = vpack.c.b16 %v5952, %v5951
    %v5995 = vpack.c.b16 %v5954, %v5953
    %v5996 = vpack.c.b16 %v5956, %v5955
    %v5997 = vpack.c.b16 %v5958, %v5957
    %v5998 = vpack.c.b16 %v5960, %v5959
    %v5999 = vpack.c.b16 %v5962, %v5961
    %v6000 = vpack.c.b16 %v5964, %v5963
    %v6001 = vpack.c.b16 %v5966, %v5965
    %v6002 = vpack.c.b16 %v5968, %v5967
    %v6003 = vpack.c.b16 %v5970, %v5969
    %v6004 = vpack.c.b16 %v5972, %v5971
    %6037 = vmatprep.subr.bf16.mxu0 0
    %6038 = vmatpush1.bf16.msra.mxu0 %v5973
    %6039 = vmatprep.subr.bf16.mxu0 0
    %6040 = vmatpush1.bf16.msra.mxu0 %v5974
    %6041 = vmatprep.subr.bf16.mxu0 0
    %6042 = vmatpush1.bf16.msra.mxu0 %v5975
    %6043 = vmatprep.subr.bf16.mxu0 0
    %6044 = vmatpush1.bf16.msra.mxu0 %v5976
    %6045 = vmatprep.subr.bf16.mxu0 0
    %6046 = vmatpush1.bf16.msra.mxu0 %v5977
    %6047 = vmatprep.subr.bf16.mxu0 0
    %6048 = vmatpush1.bf16.msra.mxu0 %v5978
    %6049 = vmatprep.subr.bf16.mxu0 0
    %6050 = vmatpush1.bf16.msra.mxu0 %v5979
    %6051 = vmatprep.subr.bf16.mxu0 0
    %6052 = vmatpush1.bf16.msra.mxu0 %v5980
    %6053 = vmatprep.subr.bf16.mxu0 0
    %6054 = vmatpush1.bf16.msra.mxu0 %v5981
    %6055 = vmatprep.subr.bf16.mxu0 0
    %6056 = vmatpush1.bf16.msra.mxu0 %v5982
    %6057 = vmatprep.subr.bf16.mxu0 0
    %6058 = vmatpush1.bf16.msra.mxu0 %v5983
    %6059 = vmatprep.subr.bf16.mxu0 0
    %6060 = vmatpush1.bf16.msra.mxu0 %v5984
    %6061 = vmatprep.subr.bf16.mxu0 0
    %6062 = vmatpush1.bf16.msra.mxu0 %v5985
    %6063 = vmatprep.subr.bf16.mxu0 0
    %6064 = vmatpush1.bf16.msra.mxu0 %v5986
    %6065 = vmatprep.subr.bf16.mxu0 0
    %6066 = vmatpush1.bf16.msra.mxu0 %v5987
    %6067 = vmatprep.subr.bf16.mxu0 0
    %6068 = vmatpush1.bf16.msra.mxu0 %v5988
    %6069 = vmatprep.mubr.bf16.mxu0 %v5771
    %6070 = vmatmul.mubr.bf16.gmra.mrb[0].mxu0 %v5770
    %v6071 = vpop.f32.mrb[0].mxu0
    %v6072 = vadd.f32 %v5843, %v6071
    %v6073 = vpop.f32.mrb[0].mxu0
    %v6074 = vpop.f32.mrb[0].mxu0
    %v6075 = vadd.f32 %v5843, %v6074
    %v6076 = vpop.f32.mrb[0].mxu0
    %6077 = vdwg.mxu0
    %6078 = vmatprep.subr.bf16.mxu0 0
    %6079 = vmatpush1.bf16.msra.mxu0 %v5989
    %6080 = vmatprep.subr.bf16.mxu0 0
    %6081 = vmatpush1.bf16.msra.mxu0 %v5990
    %6082 = vmatprep.subr.bf16.mxu0 0
    %6083 = vmatpush1.bf16.msra.mxu0 %v5991
    %6084 = vmatprep.subr.bf16.mxu0 0
    %6085 = vmatpush1.bf16.msra.mxu0 %v5992
    %6086 = vmatprep.subr.bf16.mxu0 0
    %6087 = vmatpush1.bf16.msra.mxu0 %v5993
    %6088 = vmatprep.subr.bf16.mxu0 0
    %6089 = vmatpush1.bf16.msra.mxu0 %v5994
    %6090 = vmatprep.subr.bf16.mxu0 0
    %6091 = vmatpush1.bf16.msra.mxu0 %v5995
    %6092 = vmatprep.subr.bf16.mxu0 0
    %6093 = vmatpush1.bf16.msra.mxu0 %v5996
    %6094 = vmatprep.subr.bf16.mxu0 0
    %6095 = vmatpush1.bf16.msra.mxu0 %v5997
    %6096 = vmatprep.subr.bf16.mxu0 0
    %6097 = vmatpush1.bf16.msra.mxu0 %v5998
    %6098 = vmatprep.subr.bf16.mxu0 0
    %6099 = vmatpush1.bf16.msra.mxu0 %v5999
    %6100 = vmatprep.subr.bf16.mxu0 0
    %6101 = vmatpush1.bf16.msra.mxu0 %v6000
    %6102 = vmatprep.subr.bf16.mxu0 0
    %6103 = vmatpush1.bf16.msra.mxu0 %v6001
    %6104 = vmatprep.subr.bf16.mxu0 0
    %6105 = vmatpush1.bf16.msra.mxu0 %v6002
    %6106 = vmatprep.subr.bf16.mxu0 0
    %6107 = vmatpush1.bf16.msra.mxu0 %v6003
    %6108 = vmatprep.subr.bf16.mxu0 0
    %6109 = vmatpush1.bf16.msra.mxu0 %v6004
    %6110 = vmatprep.mubr.bf16.mxu0 %v5773
    %6111 = vmatmul.mubr.bf16.gmra.mrb[0].mxu0 %v5772
    %v6112 = vpop.f32.mrb[0].mxu0
    %v6113 = vadd.f32 %v6072, %v6112
    %v6114 = vpop.f32.mrb[0].mxu0
    %v6115 = vpop.f32.mrb[0].mxu0
    %v6116 = vadd.f32 %v6075, %v6115
    %v6117 = vpop.f32.mrb[0].mxu0
    %6118 = vdwg.mxu0
    %v6119 = vld [vmem:[#allocation20] sm:$0x1]
    %v6120 = vld [vmem:[#allocation21] sm:$0x1]
    %vm6121 = vcmask 523264
    %v6122 = vsel %vm6121, %v6113, 0.0
    %6123 = vadd.xlane.f32.xlu0 %v6122
    %v6124 = vpop.xlane.xlu0 %6123
    %v6125 = vsel %vm6121, %v6116, 0.0
    %6126 = vadd.xlane.f32.xlu0 %v6125
    %v6127 = vpop.xlane.xlu0 %6126
    %v6128 = vrcp.pop 64.0
    %v6129 = vmul.f32 %v6124, %v6128
    %v6130 = vmul.f32 %v6127, %v6128
    %v6131 = vsub.f32 %v6113, %v6129
    %v6132 = vsub.f32 %v6116, %v6130
    %v6133 = vmul.f32 %v6131, %v6131
    %v6134 = vmul.f32 %v6132, %v6132
    %v6135 = vsel %vm6121, %v6133, 0.0
    %6136 = vadd.xlane.f32.xlu0 %v6135
    %v6137 = vpop.xlane.xlu0 %6136
    %v6138 = vsel %vm6121, %v6134, 0.0
    %6139 = vadd.xlane.f32.xlu0 %v6138
    %v6140 = vpop.xlane.xlu0 %6139
    %v6141 = vmul.f32 %v6137, %v6128
    %v6142 = vmul.f32 %v6140, %v6128
    %v6143 = vadd.f32 %v6141, 1e-05
    %v6144 = vadd.f32 %v6142, 1e-05
    %v6145 = vrsqrt.pop %v6143
    %v6146 = vrsqrt.pop %v6144
    %v6147 = vmul.f32 %v6131, %v6145
    %v6148 = vmul.f32 %v6132, %v6146
    %v6150 = vlaneseq
    %v6151 = vshrl.u32 %v6150, 7
    %v6152 = vsub.s32 0, %v6151
    %v6153 = vrot.slane %v6119, %v6152
    %v6155 = vmul.f32 %v6147, %v6153
    %v6156 = vmul.f32 %v6148, %v6153
    %v6158 = vlaneseq
    %v6159 = vshrl.u32 %v6158, 7
    %v6160 = vsub.s32 0, %v6159
    %v6161 = vrot.slane %v6120, %v6160
    %v6163 = vadd.f32 %v6155, %v6161
    %v6164 = vadd.f32 %v6156, %v6161
    %v6165 = vmax.f32 %v6163, 0.0
    %v6166 = vmax.f32 %v6164, 0.0
    %v6167 = vld [vmem:[#allocation23] sm:$0x1]
    %v6169 = vlaneseq
    %v6170 = vshrl.u32 %v6169, 7
    %v6171 = vsub.s32 0, %v6170
    %v6172 = vrot.slane %v6167, %v6171
    %v6174 = vmul.f32 %v6165, %v6172
    %v6175 = vmul.f32 %v6166, %v6172
    %v6176 = vsel %vm6121, %v6174, 0.0
    %6177 = vadd.xlane.f32.xlu0 %v6176
    %v6178 = vpop.xlane.xlu0 %6177
    %v6179 = vsel %vm6121, %v6175, 0.0
    %6180 = vadd.xlane.f32.xlu0 %v6179
    %v6181 = vpop.xlane.xlu0 %6180
    %v6182 = vld [vmem:[#allocation2] sm:$0x1]
    %v6184 = vlaneseq
    %v6185 = vshrl.u32 %v6184, 7
    %v6186 = vsub.s32 0, %v6185
    %v6187 = vrot.slane %v6182, %v6186
    %v6189 = vadd.f32 %v6178, %v6187
    %v6190 = vadd.f32 %v6181, %v6187
    %6192 = vset.pattern.permute.xlu0 0
    %6193 = vperm.xlu0 %6192, %v6189
    %v6194 = vpop.permute.xlu0 %6193
    %6197 = vset.pattern.permute.xlu0 0
    %6198 = vperm.xlu0 %6197, %v6190
    %v6199 = vpop.permute.xlu0 %6198
    %6201 = vst [vmem:[#allocation24] sm:$0xff] %v6194
    %6202 = vst [vmem:[#allocation24 + $0x8] sm:$0xff] %v6199
    // Predicated region
    $region114: #{tpu_custom_call.1} parent=1 // pred_check
      _
    $region115: #{tpu_custom_call.1} parent=1 // pred_check_branch
      %6204 = sbr.rel (0) target = $region117
    $region116: #{tpu_custom_call.1} parent=1 // pred_region
      %s6206 = ssub.s32 256, 256
      %6207 = vsyncadd [#allocation5], %s6206
      %s6208 = sshll.u32 [#allocation24], 4
      %s6209 = int_to_ptr.vmem [resolvable:$true] %s6208
      %6214 = dma.vmem_to_hbm [thread:$0]  %s6209, 256, %s15, [#allocation5], 128, 128, 8
    $region117: #{tpu_custom_call.1} parent=1 // pred_fallthru
      _
    // Predicated region
    $region118: #{tpu_custom_call.1} parent=1 // pred_check
      _
    $region119: #{tpu_custom_call.1} parent=1 // pred_check_branch
      %6216 = sbr.rel (0) target = $region121
    $region120: #{tpu_custom_call.1} parent=1 // pred_region
      %6217 = dma.done [#allocation5], 256
    $region121: #{tpu_custom_call.1} parent=1 // pred_fallthru
      _
    %6218 = vsyncpa [#allocation4], 1
    %6219 = vsyncpa [#allocation7], 1
    %6220 = vsyncpa [#allocation10], 1
    %6221 = vsyncpa [#allocation13], 1
    %6222 = vsyncpa [#allocation16], 1
    %6223 = vsyncpa [#allocation19], 1
    %6224 = vsyncpa [#allocation22], 1
    %6225 = vsyncpa [#allocation5], 1

</llo_original>
